<compile_context>
chip_gen: v5e
topology: v5e:2x2
jax: 0.10.0
libtpu: 0.0.40
codegen_flags: <defaults>
</compile_context>

<pallas_src>
import jax
import jax.numpy as jnp
from jax.experimental import pallas as pl
from jax.experimental.pallas import tpu as pltpu

BN_EPS = 1e-5
LANES = 128   # every channel dimension is zero-padded to this many lanes


def _pick_tile(m, cap=2048):
    """Largest row tile (multiple of 8, <= cap) that divides m, else m itself."""
    for t in (2048, 1024, 512, 256, 128, 64, 32, 16, 8):
        if t <= cap and m % t == 0:
            return t
    return m


# ----------------------------- Pallas kernels ------------------------------

def _make_conv_kernel(nk):
    """Packed-K conv kernel: one bf16 MXU dot per 128-lane K chunk, accumulated
    directly into the f32 output block; per-channel sum / sum-of-squares for
    BatchNorm accumulate across the row-tile grid axis."""

    def kernel(a_ref, w_ref, o_ref, sum_ref, ssq_ref):
        @pl.when(pl.program_id(1) == 0)
        def _():
            sum_ref[...] = jnp.zeros_like(sum_ref)
            ssq_ref[...] = jnp.zeros_like(ssq_ref)

        o_ref[...] = jnp.dot(a_ref[:, 0:LANES], w_ref[0],
                             preferred_element_type=jnp.float32)
        for k in range(1, nk):
            o_ref[...] += jnp.dot(a_ref[:, k * LANES:(k + 1) * LANES], w_ref[k],
                                  preferred_element_type=jnp.float32)

        y = o_ref[...]                       # read back for the stats epilogue
        sum_ref[...] += jnp.sum(y, axis=0, keepdims=True)
        ssq_ref[...] += jnp.sum(y * y, axis=0, keepdims=True)

    return kernel


def _bn_apply_res_kernel(y_ref, s_ref, b_ref, r_ref, o_ref):
    # out = conv * scale + shift + residual  (scale/shift broadcast over rows)
    o_ref[...] = y_ref[...] * s_ref[...] + b_ref[...] + r_ref[...]


def _bn_apply_kernel(y_ref, s_ref, b_ref, o_ref):
    o_ref[...] = y_ref[...] * s_ref[...] + b_ref[...]


# ----------------------------- conv + BN wrappers ----------------------------

def fused_conv(x, w, stride, pad):
    """x: (N, H, W, LANES) f32 channel-padded activation (first Cin lanes real);
    w: torch-layout (Cout, Cin, kh, kw) f32.

    Returns (y, ch_sum, ch_sumsq, count): y is (N, Ho, Wo, LANES) f32 and the
    per-channel statistics cover all N*Ho*Wo output pixels."""
    N, H, W, C = x.shape
    Cout, Cin, kh, kw = w.shape
    assert C == LANES and Cin <= C and Cout <= C
    s = stride
    Ho = (H + 2 * pad - kh) // s + 1
    Wo = (W + 2 * pad - kw) // s + 1
    rows = Ho * Wo

    # --- XLA prep: tiny im2col along the channel axis, packed K, bf16 ----------
    xr = x[..., :Cin]
    if pad:
        xr = jnp.pad(xr, ((0, 0), (pad, pad), (pad, pad), (0, 0)))
    taps = [xr[:, i:i + s * Ho:s, j:j + s * Wo:s, :]
            for i in range(kh) for j in range(kw)]
    a = taps[0] if len(taps) == 1 else jnp.concatenate(taps, axis=-1)
    K = Cin * kh * kw
    Kp = pl.cdiv(K, LANES) * LANES
    nk = Kp // LANES
    a = jnp.pad(a, ((0, 0), (0, 0), (0, 0), (0, Kp - K)))
    a = a.reshape(N, rows, Kp).astype(jnp.bfloat16)

    # Weights: (nk, 128, 128) bf16; K order = (tap, cin) to match the concat above.
    wt = jnp.transpose(w, (2, 3, 1, 0)).reshape(K, Cout)
    wt = jnp.pad(wt, ((0, Kp - K), (0, C - Cout))).astype(jnp.bfloat16)
    wt = wt.reshape(nk, LANES, C)

    rt = _pick_tile(rows)
    nr = rows // rt
    y, psum, pssq = pl.pallas_call(
        _make_conv_kernel(nk),
        grid=(N, nr),
        in_specs=[pl.BlockSpec((None, rt, Kp), lambda n, r: (n, r, 0)),
                  pl.BlockSpec((nk, LANES, C), lambda n, r: (0, 0, 0))],
        out_specs=(pl.BlockSpec((None, rt, C), lambda n, r: (n, r, 0)),
                   pl.BlockSpec((None, 1, C), lambda n, r: (n, 0, 0)),
                   pl.BlockSpec((None, 1, C), lambda n, r: (n, 0, 0))),
        out_shape=(jax.ShapeDtypeStruct((N, rows, C), jnp.float32),
                   jax.ShapeDtypeStruct((N, 1, C), jnp.float32),
                   jax.ShapeDtypeStruct((N, 1, C), jnp.float32)),
        compiler_params=pltpu.CompilerParams(
            dimension_semantics=("parallel", "arbitrary")),
    )(a, wt)
    return (y.reshape(N, Ho, Wo, C),
            jnp.sum(psum, axis=(0, 1)), jnp.sum(pssq, axis=(0, 1)), N * rows)


def batch_norm(y, ch_sum, ch_sumsq, count, gamma, beta, residual=None):
    """Training-mode BatchNorm2d forward (batch stats, biased variance) with an
    optionally fused residual add, applied by a row-tiled Pallas kernel."""
    N, Ho, Wo, C = y.shape
    mean = ch_sum / count
    # TODO(synk): E[x^2]-E[x]^2 is cancellation-prone for large activation means; a
    # centered two-pass variance would be safer if activations grow.
    var = jnp.maximum(ch_sumsq / count - mean * mean, 0.0)
    g = jnp.pad(gamma, (0, C - gamma.shape[0]))   # padded channels -> scale = shift = 0
    b = jnp.pad(beta, (0, C - beta.shape[0]))
    scale = g / jnp.sqrt(var + BN_EPS)
    shift = b - mean * scale

    M = N * Ho * Wo
    rt = _pick_tile(M)
    kernel = _bn_apply_kernel if residual is None else _bn_apply_res_kernel
    row_spec = pl.BlockSpec((rt, C), lambda i: (i, 0))
    vec_spec = pl.BlockSpec((1, C), lambda i: (0, 0))
    args = [y.reshape(M, C), scale.reshape(1, C), shift.reshape(1, C)]
    in_specs = [row_spec, vec_spec, vec_spec]
    if residual is not None:
        args.append(residual.reshape(M, C))
        in_specs.append(row_spec)
    out = pl.pallas_call(
        kernel,
        grid=(M // rt,),
        in_specs=in_specs,
        out_specs=row_spec,
        out_shape=jax.ShapeDtypeStruct((M, C), jnp.float32),
        compiler_params=pltpu.CompilerParams(dimension_semantics=("parallel",)),
    )(*args)
    return out.reshape(N, Ho, Wo, C)


# --------------------------- model glue (XLA, tiny ops) ----------------------

def avg_pool_2x2(x, stride):
    """AvgPool2d(kernel_size=2, stride=stride) used by the downsample path (plain XLA)."""
    N, H, W, C = x.shape
    Ho, Wo = H // stride, W // stride
    xr = x[:, :Ho * stride, :Wo * stride, :].reshape(N, Ho, stride, Wo, stride, C)
    return jnp.mean(xr, axis=(2, 4))


def basic_block(x, p, stride):
    y, cs, css, cnt = fused_conv(x, p['conv_w'], stride=stride, pad=1)       # 3x3 conv
    if p['down_conv_w'] is not None:
        r = avg_pool_2x2(x, stride)                                          # AvgPool2d(2, stride)
        ry, rs, rss, rcnt = fused_conv(r, p['down_conv_w'], stride=1, pad=0)  # conv1x1
        res = batch_norm(ry, rs, rss, rcnt, p['down_bn_g'], p['down_bn_b'])   # BN
    else:
        res = x
    return batch_norm(y, cs, css, cnt, p['bn_g'], p['bn_b'], residual=res)   # BN + residual


def birealnet_forward(params, x_nchw):
    # NCHW -> NHWC, zero-pad channels to LANES so every kernel store is lane-dense.
    x = jnp.transpose(x_nchw, (0, 2, 3, 1)).astype(jnp.float32)
    x = jnp.pad(x, ((0, 0), (0, 0), (0, 0), (0, LANES - x.shape[-1])))
    y, cs, css, cnt = fused_conv(x, params['conv1_w'], stride=1, pad=1)      # conv1
    x = batch_norm(y, cs, css, cnt, params['bn1_g'], params['bn1_b'])        # bn1
    # maxpool = identity (num_classes != 1000 path)
    for layer_blocks, layer_stride in zip(params['layers'], (1, 2, 2)):
        stride = layer_stride
        for bp in layer_blocks:
            x = basic_block(x, bp, stride)
            stride = 1
    # layer4 = identity (len(layers) == 3).
    # AdaptiveAvgPool2d((1,1)) + fc: tiny, run in plain XLA.
    feat = jnp.mean(x, axis=(1, 2))[:, :params['fc_w'].shape[0]]
    return feat @ params['fc_w'] + params['fc_b']


# ------------------------------- parameters --------------------------------

def init_params(key, num_channels=8, layers=(1, 1, 1), num_classes=10):
    keys = iter(jax.random.split(key, 128))

    def nrm(shape, s=0.1):
        return jax.random.normal(next(keys), shape, jnp.float32) * s

    C0 = num_channels
    params = {
        'conv1_w': nrm((C0, 3, 3, 3)),
        'bn1_g': 1.0 + nrm((C0,), 0.05),
        'bn1_b': nrm((C0,), 0.05),
    }
    inplanes = C0
    layer_params = []
    for n_blocks, mult, stride in zip(layers, (1, 2, 4), (1, 2, 2)):
        planes = C0 * mult
        blocks = []
        for b in range(n_blocks):
            bstride = stride if b == 0 else 1
            need_down = (bstride != 1) or (inplanes != planes)
            blocks.append({
                'conv_w': nrm((planes, inplanes, 3, 3)),
                'bn_g': 1.0 + nrm((planes,), 0.05),
                'bn_b': nrm((planes,), 0.05),
                'down_conv_w': nrm((planes, inplanes, 1, 1)) if need_down else None,
                'down_bn_g': (1.0 + nrm((planes,), 0.05)) if need_down else None,
                'down_bn_b': nrm((planes,), 0.05) if need_down else None,
            })
            inplanes = planes
        layer_params.append(blocks)
    params['layers'] = layer_params
    params['fc_w'] = nrm((inplanes, num_classes))   # stored transposed vs torch Linear
    params['fc_b'] = nrm((num_classes,))
    return params


# ---------------------------------- main ------------------------------------

if __name__ == "__main__":
    key = jax.random.PRNGKey(0)
    k_param, k_x = jax.random.split(key)
    params = init_params(k_param, num_channels=8, layers=(1, 1, 1), num_classes=10)
    x = jax.random.normal(k_x, (2, 3, 16, 16), jnp.float32)   # NCHW, like the PyTorch module

    fwd = jax.jit(birealnet_forward)
    logits = jax.block_until_ready(fwd(params, x))

    assert logits.shape == (2, 10), logits.shape
    assert bool(jnp.all(jnp.isfinite(logits)))
    print("KERNEL_OK")
</pallas_src>

<mosaic_0001>
module attributes {stable_mosaic.version = 11 : i64} {
  func.func @kernel(%arg0: i32, %arg1: i32, %arg2: memref<1x256x128xbf16, #tpu.memory_space<vmem>>, %arg3: memref<1x128x128xbf16, #tpu.memory_space<vmem>>, %arg4: memref<1x256x128xf32, #tpu.memory_space<vmem>>, %arg5: memref<1x1x128xf32, #tpu.memory_space<vmem>>, %arg6: memref<1x1x128xf32, #tpu.memory_space<vmem>>) attributes {dimension_semantics = [#tpu.dimension_semantics<parallel>, #tpu.dimension_semantics<arbitrary>], iteration_bounds = array<i64: 2, 1>, scalar_prefetch = 0 : i64, scratch_operands = 0 : i64, tpu.core_type = #tpu.core_type<tc>, window_params = [{transform_indices = @transform_0, window_bounds = array<i64: 1, 256, 128>}, {pipeline_mode = #tpu.pipeline_mode<synchronous>, transform_indices = @transform_1, window_bounds = array<i64: 1, 128, 128>}, {transform_indices = @transform_2, window_bounds = array<i64: 1, 256, 128>}, {transform_indices = @transform_3, window_bounds = array<i64: 1, 1, 128>}, {transform_indices = @transform_4, window_bounds = array<i64: 1, 1, 128>}]} {
    %c0_i32 = arith.constant 0 : i32
    %0 = arith.cmpi eq, %arg1, %c0_i32 : i32
    %1 = arith.extui %0 : i1 to i32
    %c0_i32_0 = arith.constant 0 : i32
    %2 = arith.cmpi ne, %1, %c0_i32_0 : i32
    scf.if %2 {
      %cst_26 = arith.constant 0.000000e+00 : f32
      %30 = vector.broadcast %cst_26 : f32 to vector<1x128xf32>
      %c0_27 = arith.constant 0 : index
      %c0_28 = arith.constant 0 : index
      %c0_29 = arith.constant 0 : index
      %31 = vector.load %arg5[%c0_27, %c0_28, %c0_29] : memref<1x1x128xf32, #tpu.memory_space<vmem>>, vector<1x1x128xf32>
      %32 = vector.shape_cast %31 : vector<1x1x128xf32> to vector<1x128xf32>
      %33 = vector.shape_cast %30 : vector<1x128xf32> to vector<1x1x128xf32>
      tpu.vector_store %arg5[%c0_27, %c0_28, %c0_29], %33 {strides = array<i32>} : memref<1x1x128xf32, #tpu.memory_space<vmem>>, vector<1x1x128xf32>,
      %cst_30 = arith.constant 0.000000e+00 : f32
      %34 = vector.broadcast %cst_30 : f32 to vector<1x128xf32>
      %c0_31 = arith.constant 0 : index
      %c0_32 = arith.constant 0 : index
      %c0_33 = arith.constant 0 : index
      %35 = vector.load %arg6[%c0_31, %c0_32, %c0_33] : memref<1x1x128xf32, #tpu.memory_space<vmem>>, vector<1x1x128xf32>
      %36 = vector.shape_cast %35 : vector<1x1x128xf32> to vector<1x128xf32>
      %37 = vector.shape_cast %34 : vector<1x128xf32> to vector<1x1x128xf32>
      tpu.vector_store %arg6[%c0_31, %c0_32, %c0_33], %37 {strides = array<i32>} : memref<1x1x128xf32, #tpu.memory_space<vmem>>, vector<1x1x128xf32>,
    } else {
    }
    %c0 = arith.constant 0 : index
    %c0_1 = arith.constant 0 : index
    %c0_2 = arith.constant 0 : index
    %3 = vector.load %arg2[%c0, %c0_1, %c0_2] : memref<1x256x128xbf16, #tpu.memory_space<vmem>>, vector<1x256x128xbf16>
    %4 = vector.shape_cast %3 : vector<1x256x128xbf16> to vector<256x128xbf16>
    %c0_3 = arith.constant 0 : index
    %c0_4 = arith.constant 0 : index
    %c0_5 = arith.constant 0 : index
    %5 = vector.load %arg3[%c0_3, %c0_4, %c0_5] : memref<1x128x128xbf16, #tpu.memory_space<vmem>>, vector<1x128x128xbf16>
    %6 = vector.shape_cast %5 : vector<1x128x128xbf16> to vector<128x128xbf16>
    %cst = arith.constant dense<0.000000e+00> : vector<256x128xf32>
    %7 = tpu.matmul %4, %6, %cst {dimension_numbers = #tpu.dot_dimension_numbers<[1], [0], [0], [1], [0, 0, 1, 1], [], []>} : vector<256x128xbf16>, vector<128x128xbf16>, vector<256x128xf32> -> vector<256x128xf32>
    %c0_6 = arith.constant 0 : index
    %c0_7 = arith.constant 0 : index
    %c0_8 = arith.constant 0 : index
    %8 = vector.load %arg4[%c0_6, %c0_7, %c0_8] : memref<1x256x128xf32, #tpu.memory_space<vmem>>, vector<1x256x128xf32>
    %9 = vector.shape_cast %8 : vector<1x256x128xf32> to vector<256x128xf32>
    %10 = vector.shape_cast %7 : vector<256x128xf32> to vector<1x256x128xf32>
    tpu.vector_store %arg4[%c0_6, %c0_7, %c0_8], %10 {strides = array<i32>} : memref<1x256x128xf32, #tpu.memory_space<vmem>>, vector<1x256x128xf32>,
    %c0_9 = arith.constant 0 : index
    %c0_10 = arith.constant 0 : index
    %c0_11 = arith.constant 0 : index
    %11 = vector.load %arg4[%c0_9, %c0_10, %c0_11] : memref<1x256x128xf32, #tpu.memory_space<vmem>>, vector<1x256x128xf32>
    %12 = vector.shape_cast %11 : vector<1x256x128xf32> to vector<256x128xf32>
    %c0_12 = arith.constant 0 : index
    %c0_13 = arith.constant 0 : index
    %c0_14 = arith.constant 0 : index
    %13 = vector.load %arg5[%c0_12, %c0_13, %c0_14] : memref<1x1x128xf32, #tpu.memory_space<vmem>>, vector<1x1x128xf32>
    %14 = vector.shape_cast %13 : vector<1x1x128xf32> to vector<1x128xf32>
    %cst_15 = arith.constant dense<0.000000e+00> : vector<128xf32>
    %15 = vector.multi_reduction <add>, %12, %cst_15 [0] : vector<256x128xf32> to vector<128xf32>
    %16 = vector.shape_cast %15 : vector<128xf32> to vector<1x128xf32>
    %17 = arith.addf %14, %16 : vector<1x128xf32>
    %c0_16 = arith.constant 0 : index
    %c0_17 = arith.constant 0 : index
    %c0_18 = arith.constant 0 : index
    %18 = vector.load %arg5[%c0_16, %c0_17, %c0_18] : memref<1x1x128xf32, #tpu.memory_space<vmem>>, vector<1x1x128xf32>
    %19 = vector.shape_cast %18 : vector<1x1x128xf32> to vector<1x128xf32>
    %20 = vector.shape_cast %17 : vector<1x128xf32> to vector<1x1x128xf32>
    tpu.vector_store %arg5[%c0_16, %c0_17, %c0_18], %20 {strides = array<i32>} : memref<1x1x128xf32, #tpu.memory_space<vmem>>, vector<1x1x128xf32>,
    %c0_19 = arith.constant 0 : index
    %c0_20 = arith.constant 0 : index
    %c0_21 = arith.constant 0 : index
    %21 = vector.load %arg6[%c0_19, %c0_20, %c0_21] : memref<1x1x128xf32, #tpu.memory_space<vmem>>, vector<1x1x128xf32>
    %22 = vector.shape_cast %21 : vector<1x1x128xf32> to vector<1x128xf32>
    %23 = arith.mulf %12, %12 : vector<256x128xf32>
    %cst_22 = arith.constant dense<0.000000e+00> : vector<128xf32>
    %24 = vector.multi_reduction <add>, %23, %cst_22 [0] : vector<256x128xf32> to vector<128xf32>
    %25 = vector.shape_cast %24 : vector<128xf32> to vector<1x128xf32>
    %26 = arith.addf %22, %25 : vector<1x128xf32>
    %c0_23 = arith.constant 0 : index
    %c0_24 = arith.constant 0 : index
    %c0_25 = arith.constant 0 : index
    %27 = vector.load %arg6[%c0_23, %c0_24, %c0_25] : memref<1x1x128xf32, #tpu.memory_space<vmem>>, vector<1x1x128xf32>
    %28 = vector.shape_cast %27 : vector<1x1x128xf32> to vector<1x128xf32>
    %29 = vector.shape_cast %26 : vector<1x128xf32> to vector<1x1x128xf32>
    tpu.vector_store %arg6[%c0_23, %c0_24, %c0_25], %29 {strides = array<i32>} : memref<1x1x128xf32, #tpu.memory_space<vmem>>, vector<1x1x128xf32>,
    return
  }
  func.func @transform_0(%arg0: i32, %arg1: i32) -> (i32, i32, i32) {
    %c0_i32 = arith.constant 0 : i32
    %c0_i32_0 = arith.constant 0 : i32
    return %arg0, %arg1, %c0_i32 : i32, i32, i32
  }
  func.func @transform_1(%arg0: i32, %arg1: i32) -> (i32, i32, i32) {
    %c0_i32 = arith.constant 0 : i32
    %c0_i32_0 = arith.constant 0 : i32
    %c0_i32_1 = arith.constant 0 : i32
    %c0_i32_2 = arith.constant 0 : i32
    return %c0_i32, %c0_i32_0, %c0_i32_1 : i32, i32, i32
  }
  func.func @transform_2(%arg0: i32, %arg1: i32) -> (i32, i32, i32) {
    %c0_i32 = arith.constant 0 : i32
    %c0_i32_0 = arith.constant 0 : i32
    return %arg0, %arg1, %c0_i32 : i32, i32, i32
  }
  func.func @transform_3(%arg0: i32, %arg1: i32) -> (i32, i32, i32) {
    %c0_i32 = arith.constant 0 : i32
    %c0_i32_0 = arith.constant 0 : i32
    %c0_i32_1 = arith.constant 0 : i32
    return %arg0, %c0_i32, %c0_i32_0 : i32, i32, i32
  }
  func.func @transform_4(%arg0: i32, %arg1: i32) -> (i32, i32, i32) {
    %c0_i32 = arith.constant 0 : i32
    %c0_i32_0 = arith.constant 0 : i32
    %c0_i32_1 = arith.constant 0 : i32
    return %arg0, %c0_i32, %c0_i32_0 : i32, i32, i32
  }
}

module attributes {stable_mosaic.version = 11 : i64} {
  func.func @_bn_apply_kernel(%arg0: i32, %arg1: memref<512x128xf32, #tpu.memory_space<vmem>>, %arg2: memref<1x128xf32, #tpu.memory_space<vmem>>, %arg3: memref<1x128xf32, #tpu.memory_space<vmem>>, %arg4: memref<512x128xf32, #tpu.memory_space<vmem>>) attributes {dimension_semantics = [#tpu.dimension_semantics<parallel>], iteration_bounds = array<i64: 1>, scalar_prefetch = 0 : i64, scratch_operands = 0 : i64, tpu.core_type = #tpu.core_type<tc>, window_params = [{transform_indices = @transform_0, window_bounds = array<i64: 512, 128>}, {pipeline_mode = #tpu.pipeline_mode<synchronous>, transform_indices = @transform_1, window_bounds = array<i64: 1, 128>}, {pipeline_mode = #tpu.pipeline_mode<synchronous>, transform_indices = @transform_2, window_bounds = array<i64: 1, 128>}, {transform_indices = @transform_3, window_bounds = array<i64: 512, 128>}]} {
    %c0 = arith.constant 0 : index
    %c0_0 = arith.constant 0 : index
    %0 = vector.load %arg1[%c0, %c0_0] : memref<512x128xf32, #tpu.memory_space<vmem>>, vector<512x128xf32>
    %c0_1 = arith.constant 0 : index
    %c0_2 = arith.constant 0 : index
    %1 = vector.load %arg2[%c0_1, %c0_2] : memref<1x128xf32, #tpu.memory_space<vmem>>, vector<1x128xf32>
    %2 = vector.broadcast %1 : vector<1x128xf32> to vector<512x128xf32>
    %3 = arith.mulf %0, %2 : vector<512x128xf32>
    %c0_3 = arith.constant 0 : index
    %c0_4 = arith.constant 0 : index
    %4 = vector.load %arg3[%c0_3, %c0_4] : memref<1x128xf32, #tpu.memory_space<vmem>>, vector<1x128xf32>
    %5 = vector.broadcast %4 : vector<1x128xf32> to vector<512x128xf32>
    %6 = arith.addf %3, %5 : vector<512x128xf32>
    %c0_5 = arith.constant 0 : index
    %c0_6 = arith.constant 0 : index
    %7 = vector.load %arg4[%c0_5, %c0_6] : memref<512x128xf32, #tpu.memory_space<vmem>>, vector<512x128xf32>
    tpu.vector_store %arg4[%c0_5, %c0_6], %6 {strides = array<i32>} : memref<512x128xf32, #tpu.memory_space<vmem>>, vector<512x128xf32>,
    return
  }
  func.func @transform_0(%arg0: i32) -> (i32, i32) {
    %c0_i32 = arith.constant 0 : i32
    %c0_i32_0 = arith.constant 0 : i32
    return %arg0, %c0_i32 : i32, i32
  }
  func.func @transform_1(%arg0: i32) -> (i32, i32) {
    %c0_i32 = arith.constant 0 : i32
    %c0_i32_0 = arith.constant 0 : i32
    %c0_i32_1 = arith.constant 0 : i32
    return %c0_i32, %c0_i32_0 : i32, i32
  }
  func.func @transform_2(%arg0: i32) -> (i32, i32) {
    %c0_i32 = arith.constant 0 : i32
    %c0_i32_0 = arith.constant 0 : i32
    %c0_i32_1 = arith.constant 0 : i32
    return %c0_i32, %c0_i32_0 : i32, i32
  }
  func.func @transform_3(%arg0: i32) -> (i32, i32) {
    %c0_i32 = arith.constant 0 : i32
    %c0_i32_0 = arith.constant 0 : i32
    return %arg0, %c0_i32 : i32, i32
  }
}

module attributes {stable_mosaic.version = 11 : i64} {
  func.func @_bn_apply_res_kernel(%arg0: i32, %arg1: memref<512x128xf32, #tpu.memory_space<vmem>>, %arg2: memref<1x128xf32, #tpu.memory_space<vmem>>, %arg3: memref<1x128xf32, #tpu.memory_space<vmem>>, %arg4: memref<512x128xf32, #tpu.memory_space<vmem>>, %arg5: memref<512x128xf32, #tpu.memory_space<vmem>>) attributes {dimension_semantics = [#tpu.dimension_semantics<parallel>], iteration_bounds = array<i64: 1>, scalar_prefetch = 0 : i64, scratch_operands = 0 : i64, tpu.core_type = #tpu.core_type<tc>, window_params = [{transform_indices = @transform_0, window_bounds = array<i64: 512, 128>}, {pipeline_mode = #tpu.pipeline_mode<synchronous>, transform_indices = @transform_1, window_bounds = array<i64: 1, 128>}, {pipeline_mode = #tpu.pipeline_mode<synchronous>, transform_indices = @transform_2, window_bounds = array<i64: 1, 128>}, {transform_indices = @transform_3, window_bounds = array<i64: 512, 128>}, {transform_indices = @transform_4, window_bounds = array<i64: 512, 128>}]} {
    %c0 = arith.constant 0 : index
    %c0_0 = arith.constant 0 : index
    %0 = vector.load %arg1[%c0, %c0_0] : memref<512x128xf32, #tpu.memory_space<vmem>>, vector<512x128xf32>
    %c0_1 = arith.constant 0 : index
    %c0_2 = arith.constant 0 : index
    %1 = vector.load %arg2[%c0_1, %c0_2] : memref<1x128xf32, #tpu.memory_space<vmem>>, vector<1x128xf32>
    %2 = vector.broadcast %1 : vector<1x128xf32> to vector<512x128xf32>
    %3 = arith.mulf %0, %2 : vector<512x128xf32>
    %c0_3 = arith.constant 0 : index
    %c0_4 = arith.constant 0 : index
    %4 = vector.load %arg3[%c0_3, %c0_4] : memref<1x128xf32, #tpu.memory_space<vmem>>, vector<1x128xf32>
    %5 = vector.broadcast %4 : vector<1x128xf32> to vector<512x128xf32>
    %6 = arith.addf %3, %5 : vector<512x128xf32>
    %c0_5 = arith.constant 0 : index
    %c0_6 = arith.constant 0 : index
    %7 = vector.load %arg4[%c0_5, %c0_6] : memref<512x128xf32, #tpu.memory_space<vmem>>, vector<512x128xf32>
    %8 = arith.addf %6, %7 : vector<512x128xf32>
    %c0_7 = arith.constant 0 : index
    %c0_8 = arith.constant 0 : index
    %9 = vector.load %arg5[%c0_7, %c0_8] : memref<512x128xf32, #tpu.memory_space<vmem>>, vector<512x128xf32>
    tpu.vector_store %arg5[%c0_7, %c0_8], %8 {strides = array<i32>} : memref<512x128xf32, #tpu.memory_space<vmem>>, vector<512x128xf32>,
    return
  }
  func.func @transform_0(%arg0: i32) -> (i32, i32) {
    %c0_i32 = arith.constant 0 : i32
    %c0_i32_0 = arith.constant 0 : i32
    return %arg0, %c0_i32 : i32, i32
  }
  func.func @transform_1(%arg0: i32) -> (i32, i32) {
    %c0_i32 = arith.constant 0 : i32
    %c0_i32_0 = arith.constant 0 : i32
    %c0_i32_1 = arith.constant 0 : i32
    return %c0_i32, %c0_i32_0 : i32, i32
  }
  func.func @transform_2(%arg0: i32) -> (i32, i32) {
    %c0_i32 = arith.constant 0 : i32
    %c0_i32_0 = arith.constant 0 : i32
    %c0_i32_1 = arith.constant 0 : i32
    return %c0_i32, %c0_i32_0 : i32, i32
  }
  func.func @transform_3(%arg0: i32) -> (i32, i32) {
    %c0_i32 = arith.constant 0 : i32
    %c0_i32_0 = arith.constant 0 : i32
    return %arg0, %c0_i32 : i32, i32
  }
  func.func @transform_4(%arg0: i32) -> (i32, i32) {
    %c0_i32 = arith.constant 0 : i32
    %c0_i32_0 = arith.constant 0 : i32
    return %arg0, %c0_i32 : i32, i32
  }
}

module attributes {stable_mosaic.version = 11 : i64} {
  func.func @kernel(%arg0: i32, %arg1: i32, %arg2: memref<1x64x128xbf16, #tpu.memory_space<vmem>>, %arg3: memref<1x128x128xbf16, #tpu.memory_space<vmem>>, %arg4: memref<1x64x128xf32, #tpu.memory_space<vmem>>, %arg5: memref<1x1x128xf32, #tpu.memory_space<vmem>>, %arg6: memref<1x1x128xf32, #tpu.memory_space<vmem>>) attributes {dimension_semantics = [#tpu.dimension_semantics<parallel>, #tpu.dimension_semantics<arbitrary>], iteration_bounds = array<i64: 2, 1>, scalar_prefetch = 0 : i64, scratch_operands = 0 : i64, tpu.core_type = #tpu.core_type<tc>, window_params = [{transform_indices = @transform_0, window_bounds = array<i64: 1, 64, 128>}, {pipeline_mode = #tpu.pipeline_mode<synchronous>, transform_indices = @transform_1, window_bounds = array<i64: 1, 128, 128>}, {transform_indices = @transform_2, window_bounds = array<i64: 1, 64, 128>}, {transform_indices = @transform_3, window_bounds = array<i64: 1, 1, 128>}, {transform_indices = @transform_4, window_bounds = array<i64: 1, 1, 128>}]} {
    %c0_i32 = arith.constant 0 : i32
    %0 = arith.cmpi eq, %arg1, %c0_i32 : i32
    %1 = arith.extui %0 : i1 to i32
    %c0_i32_0 = arith.constant 0 : i32
    %2 = arith.cmpi ne, %1, %c0_i32_0 : i32
    scf.if %2 {
      %cst_26 = arith.constant 0.000000e+00 : f32
      %30 = vector.broadcast %cst_26 : f32 to vector<1x128xf32>
      %c0_27 = arith.constant 0 : index
      %c0_28 = arith.constant 0 : index
      %c0_29 = arith.constant 0 : index
      %31 = vector.load %arg5[%c0_27, %c0_28, %c0_29] : memref<1x1x128xf32, #tpu.memory_space<vmem>>, vector<1x1x128xf32>
      %32 = vector.shape_cast %31 : vector<1x1x128xf32> to vector<1x128xf32>
      %33 = vector.shape_cast %30 : vector<1x128xf32> to vector<1x1x128xf32>
      tpu.vector_store %arg5[%c0_27, %c0_28, %c0_29], %33 {strides = array<i32>} : memref<1x1x128xf32, #tpu.memory_space<vmem>>, vector<1x1x128xf32>,
      %cst_30 = arith.constant 0.000000e+00 : f32
      %34 = vector.broadcast %cst_30 : f32 to vector<1x128xf32>
      %c0_31 = arith.constant 0 : index
      %c0_32 = arith.constant 0 : index
      %c0_33 = arith.constant 0 : index
      %35 = vector.load %arg6[%c0_31, %c0_32, %c0_33] : memref<1x1x128xf32, #tpu.memory_space<vmem>>, vector<1x1x128xf32>
      %36 = vector.shape_cast %35 : vector<1x1x128xf32> to vector<1x128xf32>
      %37 = vector.shape_cast %34 : vector<1x128xf32> to vector<1x1x128xf32>
      tpu.vector_store %arg6[%c0_31, %c0_32, %c0_33], %37 {strides = array<i32>} : memref<1x1x128xf32, #tpu.memory_space<vmem>>, vector<1x1x128xf32>,
    } else {
    }
    %c0 = arith.constant 0 : index
    %c0_1 = arith.constant 0 : index
    %c0_2 = arith.constant 0 : index
    %3 = vector.load %arg2[%c0, %c0_1, %c0_2] : memref<1x64x128xbf16, #tpu.memory_space<vmem>>, vector<1x64x128xbf16>
    %4 = vector.shape_cast %3 : vector<1x64x128xbf16> to vector<64x128xbf16>
    %c0_3 = arith.constant 0 : index
    %c0_4 = arith.constant 0 : index
    %c0_5 = arith.constant 0 : index
    %5 = vector.load %arg3[%c0_3, %c0_4, %c0_5] : memref<1x128x128xbf16, #tpu.memory_space<vmem>>, vector<1x128x128xbf16>
    %6 = vector.shape_cast %5 : vector<1x128x128xbf16> to vector<128x128xbf16>
    %cst = arith.constant dense<0.000000e+00> : vector<64x128xf32>
    %7 = tpu.matmul %4, %6, %cst {dimension_numbers = #tpu.dot_dimension_numbers<[1], [0], [0], [1], [0, 0, 1, 1], [], []>} : vector<64x128xbf16>, vector<128x128xbf16>, vector<64x128xf32> -> vector<64x128xf32>
    %c0_6 = arith.constant 0 : index
    %c0_7 = arith.constant 0 : index
    %c0_8 = arith.constant 0 : index
    %8 = vector.load %arg4[%c0_6, %c0_7, %c0_8] : memref<1x64x128xf32, #tpu.memory_space<vmem>>, vector<1x64x128xf32>
    %9 = vector.shape_cast %8 : vector<1x64x128xf32> to vector<64x128xf32>
    %10 = vector.shape_cast %7 : vector<64x128xf32> to vector<1x64x128xf32>
    tpu.vector_store %arg4[%c0_6, %c0_7, %c0_8], %10 {strides = array<i32>} : memref<1x64x128xf32, #tpu.memory_space<vmem>>, vector<1x64x128xf32>,
    %c0_9 = arith.constant 0 : index
    %c0_10 = arith.constant 0 : index
    %c0_11 = arith.constant 0 : index
    %11 = vector.load %arg4[%c0_9, %c0_10, %c0_11] : memref<1x64x128xf32, #tpu.memory_space<vmem>>, vector<1x64x128xf32>
    %12 = vector.shape_cast %11 : vector<1x64x128xf32> to vector<64x128xf32>
    %c0_12 = arith.constant 0 : index
    %c0_13 = arith.constant 0 : index
    %c0_14 = arith.constant 0 : index
    %13 = vector.load %arg5[%c0_12, %c0_13, %c0_14] : memref<1x1x128xf32, #tpu.memory_space<vmem>>, vector<1x1x128xf32>
    %14 = vector.shape_cast %13 : vector<1x1x128xf32> to vector<1x128xf32>
    %cst_15 = arith.constant dense<0.000000e+00> : vector<128xf32>
    %15 = vector.multi_reduction <add>, %12, %cst_15 [0] : vector<64x128xf32> to vector<128xf32>
    %16 = vector.shape_cast %15 : vector<128xf32> to vector<1x128xf32>
    %17 = arith.addf %14, %16 : vector<1x128xf32>
    %c0_16 = arith.constant 0 : index
    %c0_17 = arith.constant 0 : index
    %c0_18 = arith.constant 0 : index
    %18 = vector.load %arg5[%c0_16, %c0_17, %c0_18] : memref<1x1x128xf32, #tpu.memory_space<vmem>>, vector<1x1x128xf32>
    %19 = vector.shape_cast %18 : vector<1x1x128xf32> to vector<1x128xf32>
    %20 = vector.shape_cast %17 : vector<1x128xf32> to vector<1x1x128xf32>
    tpu.vector_store %arg5[%c0_16, %c0_17, %c0_18], %20 {strides = array<i32>} : memref<1x1x128xf32, #tpu.memory_space<vmem>>, vector<1x1x128xf32>,
    %c0_19 = arith.constant 0 : index
    %c0_20 = arith.constant 0 : index
    %c0_21 = arith.constant 0 : index
    %21 = vector.load %arg6[%c0_19, %c0_20, %c0_21] : memref<1x1x128xf32, #tpu.memory_space<vmem>>, vector<1x1x128xf32>
    %22 = vector.shape_cast %21 : vector<1x1x128xf32> to vector<1x128xf32>
    %23 = arith.mulf %12, %12 : vector<64x128xf32>
    %cst_22 = arith.constant dense<0.000000e+00> : vector<128xf32>
    %24 = vector.multi_reduction <add>, %23, %cst_22 [0] : vector<64x128xf32> to vector<128xf32>
    %25 = vector.shape_cast %24 : vector<128xf32> to vector<1x128xf32>
    %26 = arith.addf %22, %25 : vector<1x128xf32>
    %c0_23 = arith.constant 0 : index
    %c0_24 = arith.constant 0 : index
    %c0_25 = arith.constant 0 : index
    %27 = vector.load %arg6[%c0_23, %c0_24, %c0_25] : memref<1x1x128xf32, #tpu.memory_space<vmem>>, vector<1x1x128xf32>
    %28 = vector.shape_cast %27 : vector<1x1x128xf32> to vector<1x128xf32>
    %29 = vector.shape_cast %26 : vector<1x128xf32> to vector<1x1x128xf32>
    tpu.vector_store %arg6[%c0_23, %c0_24, %c0_25], %29 {strides = array<i32>} : memref<1x1x128xf32, #tpu.memory_space<vmem>>, vector<1x1x128xf32>,
    return
  }
  func.func @transform_0(%arg0: i32, %arg1: i32) -> (i32, i32, i32) {
    %c0_i32 = arith.constant 0 : i32
    %c0_i32_0 = arith.constant 0 : i32
    return %arg0, %arg1, %c0_i32 : i32, i32, i32
  }
  func.func @transform_1(%arg0: i32, %arg1: i32) -> (i32, i32, i32) {
    %c0_i32 = arith.constant 0 : i32
    %c0_i32_0 = arith.constant 0 : i32
    %c0_i32_1 = arith.constant 0 : i32
    %c0_i32_2 = arith.constant 0 : i32
    return %c0_i32, %c0_i32_0, %c0_i32_1 : i32, i32, i32
  }
  func.func @transform_2(%arg0: i32, %arg1: i32) -> (i32, i32, i32) {
    %c0_i32 = arith.constant 0 : i32
    %c0_i32_0 = arith.constant 0 : i32
    return %arg0, %arg1, %c0_i32 : i32, i32, i32
  }
  func.func @transform_3(%arg0: i32, %arg1: i32) -> (i32, i32, i32) {
    %c0_i32 = arith.constant 0 : i32
    %c0_i32_0 = arith.constant 0 : i32
    %c0_i32_1 = arith.constant 0 : i32
    return %arg0, %c0_i32, %c0_i32_0 : i32, i32, i32
  }
  func.func @transform_4(%arg0: i32, %arg1: i32) -> (i32, i32, i32) {
    %c0_i32 = arith.constant 0 : i32
    %c0_i32_0 = arith.constant 0 : i32
    %c0_i32_1 = arith.constant 0 : i32
    return %arg0, %c0_i32, %c0_i32_0 : i32, i32, i32
  }
}

module attributes {stable_mosaic.version = 11 : i64} {
  func.func @_bn_apply_kernel(%arg0: i32, %arg1: memref<128x128xf32, #tpu.memory_space<vmem>>, %arg2: memref<1x128xf32, #tpu.memory_space<vmem>>, %arg3: memref<1x128xf32, #tpu.memory_space<vmem>>, %arg4: memref<128x128xf32, #tpu.memory_space<vmem>>) attributes {dimension_semantics = [#tpu.dimension_semantics<parallel>], iteration_bounds = array<i64: 1>, scalar_prefetch = 0 : i64, scratch_operands = 0 : i64, tpu.core_type = #tpu.core_type<tc>, window_params = [{transform_indices = @transform_0, window_bounds = array<i64: 128, 128>}, {pipeline_mode = #tpu.pipeline_mode<synchronous>, transform_indices = @transform_1, window_bounds = array<i64: 1, 128>}, {pipeline_mode = #tpu.pipeline_mode<synchronous>, transform_indices = @transform_2, window_bounds = array<i64: 1, 128>}, {transform_indices = @transform_3, window_bounds = array<i64: 128, 128>}]} {
    %c0 = arith.constant 0 : index
    %c0_0 = arith.constant 0 : index
    %0 = vector.load %arg1[%c0, %c0_0] : memref<128x128xf32, #tpu.memory_space<vmem>>, vector<128x128xf32>
    %c0_1 = arith.constant 0 : index
    %c0_2 = arith.constant 0 : index
    %1 = vector.load %arg2[%c0_1, %c0_2] : memref<1x128xf32, #tpu.memory_space<vmem>>, vector<1x128xf32>
    %2 = vector.broadcast %1 : vector<1x128xf32> to vector<128x128xf32>
    %3 = arith.mulf %0, %2 : vector<128x128xf32>
    %c0_3 = arith.constant 0 : index
    %c0_4 = arith.constant 0 : index
    %4 = vector.load %arg3[%c0_3, %c0_4] : memref<1x128xf32, #tpu.memory_space<vmem>>, vector<1x128xf32>
    %5 = vector.broadcast %4 : vector<1x128xf32> to vector<128x128xf32>
    %6 = arith.addf %3, %5 : vector<128x128xf32>
    %c0_5 = arith.constant 0 : index
    %c0_6 = arith.constant 0 : index
    %7 = vector.load %arg4[%c0_5, %c0_6] : memref<128x128xf32, #tpu.memory_space<vmem>>, vector<128x128xf32>
    tpu.vector_store %arg4[%c0_5, %c0_6], %6 {strides = array<i32>} : memref<128x128xf32, #tpu.memory_space<vmem>>, vector<128x128xf32>,
    return
  }
  func.func @transform_0(%arg0: i32) -> (i32, i32) {
    %c0_i32 = arith.constant 0 : i32
    %c0_i32_0 = arith.constant 0 : i32
    return %arg0, %c0_i32 : i32, i32
  }
  func.func @transform_1(%arg0: i32) -> (i32, i32) {
    %c0_i32 = arith.constant 0 : i32
    %c0_i32_0 = arith.constant 0 : i32
    %c0_i32_1 = arith.constant 0 : i32
    return %c0_i32, %c0_i32_0 : i32, i32
  }
  func.func @transform_2(%arg0: i32) -> (i32, i32) {
    %c0_i32 = arith.constant 0 : i32
    %c0_i32_0 = arith.constant 0 : i32
    %c0_i32_1 = arith.constant 0 : i32
    return %c0_i32, %c0_i32_0 : i32, i32
  }
  func.func @transform_3(%arg0: i32) -> (i32, i32) {
    %c0_i32 = arith.constant 0 : i32
    %c0_i32_0 = arith.constant 0 : i32
    return %arg0, %c0_i32 : i32, i32
  }
}

module attributes {stable_mosaic.version = 11 : i64} {
  func.func @_bn_apply_res_kernel(%arg0: i32, %arg1: memref<128x128xf32, #tpu.memory_space<vmem>>, %arg2: memref<1x128xf32, #tpu.memory_space<vmem>>, %arg3: memref<1x128xf32, #tpu.memory_space<vmem>>, %arg4: memref<128x128xf32, #tpu.memory_space<vmem>>, %arg5: memref<128x128xf32, #tpu.memory_space<vmem>>) attributes {dimension_semantics = [#tpu.dimension_semantics<parallel>], iteration_bounds = array<i64: 1>, scalar_prefetch = 0 : i64, scratch_operands = 0 : i64, tpu.core_type = #tpu.core_type<tc>, window_params = [{transform_indices = @transform_0, window_bounds = array<i64: 128, 128>}, {pipeline_mode = #tpu.pipeline_mode<synchronous>, transform_indices = @transform_1, window_bounds = array<i64: 1, 128>}, {pipeline_mode = #tpu.pipeline_mode<synchronous>, transform_indices = @transform_2, window_bounds = array<i64: 1, 128>}, {transform_indices = @transform_3, window_bounds = array<i64: 128, 128>}, {transform_indices = @transform_4, window_bounds = array<i64: 128, 128>}]} {
    %c0 = arith.constant 0 : index
    %c0_0 = arith.constant 0 : index
    %0 = vector.load %arg1[%c0, %c0_0] : memref<128x128xf32, #tpu.memory_space<vmem>>, vector<128x128xf32>
    %c0_1 = arith.constant 0 : index
    %c0_2 = arith.constant 0 : index
    %1 = vector.load %arg2[%c0_1, %c0_2] : memref<1x128xf32, #tpu.memory_space<vmem>>, vector<1x128xf32>
    %2 = vector.broadcast %1 : vector<1x128xf32> to vector<128x128xf32>
    %3 = arith.mulf %0, %2 : vector<128x128xf32>
    %c0_3 = arith.constant 0 : index
    %c0_4 = arith.constant 0 : index
    %4 = vector.load %arg3[%c0_3, %c0_4] : memref<1x128xf32, #tpu.memory_space<vmem>>, vector<1x128xf32>
    %5 = vector.broadcast %4 : vector<1x128xf32> to vector<128x128xf32>
    %6 = arith.addf %3, %5 : vector<128x128xf32>
    %c0_5 = arith.constant 0 : index
    %c0_6 = arith.constant 0 : index
    %7 = vector.load %arg4[%c0_5, %c0_6] : memref<128x128xf32, #tpu.memory_space<vmem>>, vector<128x128xf32>
    %8 = arith.addf %6, %7 : vector<128x128xf32>
    %c0_7 = arith.constant 0 : index
    %c0_8 = arith.constant 0 : index
    %9 = vector.load %arg5[%c0_7, %c0_8] : memref<128x128xf32, #tpu.memory_space<vmem>>, vector<128x128xf32>
    tpu.vector_store %arg5[%c0_7, %c0_8], %8 {strides = array<i32>} : memref<128x128xf32, #tpu.memory_space<vmem>>, vector<128x128xf32>,
    return
  }
  func.func @transform_0(%arg0: i32) -> (i32, i32) {
    %c0_i32 = arith.constant 0 : i32
    %c0_i32_0 = arith.constant 0 : i32
    return %arg0, %c0_i32 : i32, i32
  }
  func.func @transform_1(%arg0: i32) -> (i32, i32) {
    %c0_i32 = arith.constant 0 : i32
    %c0_i32_0 = arith.constant 0 : i32
    %c0_i32_1 = arith.constant 0 : i32
    return %c0_i32, %c0_i32_0 : i32, i32
  }
  func.func @transform_2(%arg0: i32) -> (i32, i32) {
    %c0_i32 = arith.constant 0 : i32
    %c0_i32_0 = arith.constant 0 : i32
    %c0_i32_1 = arith.constant 0 : i32
    return %c0_i32, %c0_i32_0 : i32, i32
  }
  func.func @transform_3(%arg0: i32) -> (i32, i32) {
    %c0_i32 = arith.constant 0 : i32
    %c0_i32_0 = arith.constant 0 : i32
    return %arg0, %c0_i32 : i32, i32
  }
  func.func @transform_4(%arg0: i32) -> (i32, i32) {
    %c0_i32 = arith.constant 0 : i32
    %c0_i32_0 = arith.constant 0 : i32
    return %arg0, %c0_i32 : i32, i32
  }
}

module attributes {stable_mosaic.version = 11 : i64} {
  func.func @kernel(%arg0: i32, %arg1: i32, %arg2: memref<1x16x128xbf16, #tpu.memory_space<vmem>>, %arg3: memref<1x128x128xbf16, #tpu.memory_space<vmem>>, %arg4: memref<1x16x128xf32, #tpu.memory_space<vmem>>, %arg5: memref<1x1x128xf32, #tpu.memory_space<vmem>>, %arg6: memref<1x1x128xf32, #tpu.memory_space<vmem>>) attributes {dimension_semantics = [#tpu.dimension_semantics<parallel>, #tpu.dimension_semantics<arbitrary>], iteration_bounds = array<i64: 2, 1>, scalar_prefetch = 0 : i64, scratch_operands = 0 : i64, tpu.core_type = #tpu.core_type<tc>, window_params = [{transform_indices = @transform_0, window_bounds = array<i64: 1, 16, 128>}, {pipeline_mode = #tpu.pipeline_mode<synchronous>, transform_indices = @transform_1, window_bounds = array<i64: 1, 128, 128>}, {transform_indices = @transform_2, window_bounds = array<i64: 1, 16, 128>}, {transform_indices = @transform_3, window_bounds = array<i64: 1, 1, 128>}, {transform_indices = @transform_4, window_bounds = array<i64: 1, 1, 128>}]} {
    %c0_i32 = arith.constant 0 : i32
    %0 = arith.cmpi eq, %arg1, %c0_i32 : i32
    %1 = arith.extui %0 : i1 to i32
    %c0_i32_0 = arith.constant 0 : i32
    %2 = arith.cmpi ne, %1, %c0_i32_0 : i32
    scf.if %2 {
      %cst_26 = arith.constant 0.000000e+00 : f32
      %30 = vector.broadcast %cst_26 : f32 to vector<1x128xf32>
      %c0_27 = arith.constant 0 : index
      %c0_28 = arith.constant 0 : index
      %c0_29 = arith.constant 0 : index
      %31 = vector.load %arg5[%c0_27, %c0_28, %c0_29] : memref<1x1x128xf32, #tpu.memory_space<vmem>>, vector<1x1x128xf32>
      %32 = vector.shape_cast %31 : vector<1x1x128xf32> to vector<1x128xf32>
      %33 = vector.shape_cast %30 : vector<1x128xf32> to vector<1x1x128xf32>
      tpu.vector_store %arg5[%c0_27, %c0_28, %c0_29], %33 {strides = array<i32>} : memref<1x1x128xf32, #tpu.memory_space<vmem>>, vector<1x1x128xf32>,
      %cst_30 = arith.constant 0.000000e+00 : f32
      %34 = vector.broadcast %cst_30 : f32 to vector<1x128xf32>
      %c0_31 = arith.constant 0 : index
      %c0_32 = arith.constant 0 : index
      %c0_33 = arith.constant 0 : index
      %35 = vector.load %arg6[%c0_31, %c0_32, %c0_33] : memref<1x1x128xf32, #tpu.memory_space<vmem>>, vector<1x1x128xf32>
      %36 = vector.shape_cast %35 : vector<1x1x128xf32> to vector<1x128xf32>
      %37 = vector.shape_cast %34 : vector<1x128xf32> to vector<1x1x128xf32>
      tpu.vector_store %arg6[%c0_31, %c0_32, %c0_33], %37 {strides = array<i32>} : memref<1x1x128xf32, #tpu.memory_space<vmem>>, vector<1x1x128xf32>,
    } else {
    }
    %c0 = arith.constant 0 : index
    %c0_1 = arith.constant 0 : index
    %c0_2 = arith.constant 0 : index
    %3 = vector.load %arg2[%c0, %c0_1, %c0_2] : memref<1x16x128xbf16, #tpu.memory_space<vmem>>, vector<1x16x128xbf16>
    %4 = vector.shape_cast %3 : vector<1x16x128xbf16> to vector<16x128xbf16>
    %c0_3 = arith.constant 0 : index
    %c0_4 = arith.constant 0 : index
    %c0_5 = arith.constant 0 : index
    %5 = vector.load %arg3[%c0_3, %c0_4, %c0_5] : memref<1x128x128xbf16, #tpu.memory_space<vmem>>, vector<1x128x128xbf16>
    %6 = vector.shape_cast %5 : vector<1x128x128xbf16> to vector<128x128xbf16>
    %cst = arith.constant dense<0.000000e+00> : vector<16x128xf32>
    %7 = tpu.matmul %4, %6, %cst {dimension_numbers = #tpu.dot_dimension_numbers<[1], [0], [0], [1], [0, 0, 1, 1], [], []>} : vector<16x128xbf16>, vector<128x128xbf16>, vector<16x128xf32> -> vector<16x128xf32>
    %c0_6 = arith.constant 0 : index
    %c0_7 = arith.constant 0 : index
    %c0_8 = arith.constant 0 : index
    %8 = vector.load %arg4[%c0_6, %c0_7, %c0_8] : memref<1x16x128xf32, #tpu.memory_space<vmem>>, vector<1x16x128xf32>
    %9 = vector.shape_cast %8 : vector<1x16x128xf32> to vector<16x128xf32>
    %10 = vector.shape_cast %7 : vector<16x128xf32> to vector<1x16x128xf32>
    tpu.vector_store %arg4[%c0_6, %c0_7, %c0_8], %10 {strides = array<i32>} : memref<1x16x128xf32, #tpu.memory_space<vmem>>, vector<1x16x128xf32>,
    %c0_9 = arith.constant 0 : index
    %c0_10 = arith.constant 0 : index
    %c0_11 = arith.constant 0 : index
    %11 = vector.load %arg4[%c0_9, %c0_10, %c0_11] : memref<1x16x128xf32, #tpu.memory_space<vmem>>, vector<1x16x128xf32>
    %12 = vector.shape_cast %11 : vector<1x16x128xf32> to vector<16x128xf32>
    %c0_12 = arith.constant 0 : index
    %c0_13 = arith.constant 0 : index
    %c0_14 = arith.constant 0 : index
    %13 = vector.load %arg5[%c0_12, %c0_13, %c0_14] : memref<1x1x128xf32, #tpu.memory_space<vmem>>, vector<1x1x128xf32>
    %14 = vector.shape_cast %13 : vector<1x1x128xf32> to vector<1x128xf32>
    %cst_15 = arith.constant dense<0.000000e+00> : vector<128xf32>
    %15 = vector.multi_reduction <add>, %12, %cst_15 [0] : vector<16x128xf32> to vector<128xf32>
    %16 = vector.shape_cast %15 : vector<128xf32> to vector<1x128xf32>
    %17 = arith.addf %14, %16 : vector<1x128xf32>
    %c0_16 = arith.constant 0 : index
    %c0_17 = arith.constant 0 : index
    %c0_18 = arith.constant 0 : index
    %18 = vector.load %arg5[%c0_16, %c0_17, %c0_18] : memref<1x1x128xf32, #tpu.memory_space<vmem>>, vector<1x1x128xf32>
    %19 = vector.shape_cast %18 : vector<1x1x128xf32> to vector<1x128xf32>
    %20 = vector.shape_cast %17 : vector<1x128xf32> to vector<1x1x128xf32>
    tpu.vector_store %arg5[%c0_16, %c0_17, %c0_18], %20 {strides = array<i32>} : memref<1x1x128xf32, #tpu.memory_space<vmem>>, vector<1x1x128xf32>,
    %c0_19 = arith.constant 0 : index
    %c0_20 = arith.constant 0 : index
    %c0_21 = arith.constant 0 : index
    %21 = vector.load %arg6[%c0_19, %c0_20, %c0_21] : memref<1x1x128xf32, #tpu.memory_space<vmem>>, vector<1x1x128xf32>
    %22 = vector.shape_cast %21 : vector<1x1x128xf32> to vector<1x128xf32>
    %23 = arith.mulf %12, %12 : vector<16x128xf32>
    %cst_22 = arith.constant dense<0.000000e+00> : vector<128xf32>
    %24 = vector.multi_reduction <add>, %23, %cst_22 [0] : vector<16x128xf32> to vector<128xf32>
    %25 = vector.shape_cast %24 : vector<128xf32> to vector<1x128xf32>
    %26 = arith.addf %22, %25 : vector<1x128xf32>
    %c0_23 = arith.constant 0 : index
    %c0_24 = arith.constant 0 : index
    %c0_25 = arith.constant 0 : index
    %27 = vector.load %arg6[%c0_23, %c0_24, %c0_25] : memref<1x1x128xf32, #tpu.memory_space<vmem>>, vector<1x1x128xf32>
    %28 = vector.shape_cast %27 : vector<1x1x128xf32> to vector<1x128xf32>
    %29 = vector.shape_cast %26 : vector<1x128xf32> to vector<1x1x128xf32>
    tpu.vector_store %arg6[%c0_23, %c0_24, %c0_25], %29 {strides = array<i32>} : memref<1x1x128xf32, #tpu.memory_space<vmem>>, vector<1x1x128xf32>,
    return
  }
  func.func @transform_0(%arg0: i32, %arg1: i32) -> (i32, i32, i32) {
    %c0_i32 = arith.constant 0 : i32
    %c0_i32_0 = arith.constant 0 : i32
    return %arg0, %arg1, %c0_i32 : i32, i32, i32
  }
  func.func @transform_1(%arg0: i32, %arg1: i32) -> (i32, i32, i32) {
    %c0_i32 = arith.constant 0 : i32
    %c0_i32_0 = arith.constant 0 : i32
    %c0_i32_1 = arith.constant 0 : i32
    %c0_i32_2 = arith.constant 0 : i32
    return %c0_i32, %c0_i32_0, %c0_i32_1 : i32, i32, i32
  }
  func.func @transform_2(%arg0: i32, %arg1: i32) -> (i32, i32, i32) {
    %c0_i32 = arith.constant 0 : i32
    %c0_i32_0 = arith.constant 0 : i32
    return %arg0, %arg1, %c0_i32 : i32, i32, i32
  }
  func.func @transform_3(%arg0: i32, %arg1: i32) -> (i32, i32, i32) {
    %c0_i32 = arith.constant 0 : i32
    %c0_i32_0 = arith.constant 0 : i32
    %c0_i32_1 = arith.constant 0 : i32
    return %arg0, %c0_i32, %c0_i32_0 : i32, i32, i32
  }
  func.func @transform_4(%arg0: i32, %arg1: i32) -> (i32, i32, i32) {
    %c0_i32 = arith.constant 0 : i32
    %c0_i32_0 = arith.constant 0 : i32
    %c0_i32_1 = arith.constant 0 : i32
    return %arg0, %c0_i32, %c0_i32_0 : i32, i32, i32
  }
}

module attributes {stable_mosaic.version = 11 : i64} {
  func.func @_bn_apply_kernel(%arg0: i32, %arg1: memref<32x128xf32, #tpu.memory_space<vmem>>, %arg2: memref<1x128xf32, #tpu.memory_space<vmem>>, %arg3: memref<1x128xf32, #tpu.memory_space<vmem>>, %arg4: memref<32x128xf32, #tpu.memory_space<vmem>>) attributes {dimension_semantics = [#tpu.dimension_semantics<parallel>], iteration_bounds = array<i64: 1>, scalar_prefetch = 0 : i64, scratch_operands = 0 : i64, tpu.core_type = #tpu.core_type<tc>, window_params = [{transform_indices = @transform_0, window_bounds = array<i64: 32, 128>}, {pipeline_mode = #tpu.pipeline_mode<synchronous>, transform_indices = @transform_1, window_bounds = array<i64: 1, 128>}, {pipeline_mode = #tpu.pipeline_mode<synchronous>, transform_indices = @transform_2, window_bounds = array<i64: 1, 128>}, {transform_indices = @transform_3, window_bounds = array<i64: 32, 128>}]} {
    %c0 = arith.constant 0 : index
    %c0_0 = arith.constant 0 : index
    %0 = vector.load %arg1[%c0, %c0_0] : memref<32x128xf32, #tpu.memory_space<vmem>>, vector<32x128xf32>
    %c0_1 = arith.constant 0 : index
    %c0_2 = arith.constant 0 : index
    %1 = vector.load %arg2[%c0_1, %c0_2] : memref<1x128xf32, #tpu.memory_space<vmem>>, vector<1x128xf32>
    %2 = vector.broadcast %1 : vector<1x128xf32> to vector<32x128xf32>
    %3 = arith.mulf %0, %2 : vector<32x128xf32>
    %c0_3 = arith.constant 0 : index
    %c0_4 = arith.constant 0 : index
    %4 = vector.load %arg3[%c0_3, %c0_4] : memref<1x128xf32, #tpu.memory_space<vmem>>, vector<1x128xf32>
    %5 = vector.broadcast %4 : vector<1x128xf32> to vector<32x128xf32>
    %6 = arith.addf %3, %5 : vector<32x128xf32>
    %c0_5 = arith.constant 0 : index
    %c0_6 = arith.constant 0 : index
    %7 = vector.load %arg4[%c0_5, %c0_6] : memref<32x128xf32, #tpu.memory_space<vmem>>, vector<32x128xf32>
    tpu.vector_store %arg4[%c0_5, %c0_6], %6 {strides = array<i32>} : memref<32x128xf32, #tpu.memory_space<vmem>>, vector<32x128xf32>,
    return
  }
  func.func @transform_0(%arg0: i32) -> (i32, i32) {
    %c0_i32 = arith.constant 0 : i32
    %c0_i32_0 = arith.constant 0 : i32
    return %arg0, %c0_i32 : i32, i32
  }
  func.func @transform_1(%arg0: i32) -> (i32, i32) {
    %c0_i32 = arith.constant 0 : i32
    %c0_i32_0 = arith.constant 0 : i32
    %c0_i32_1 = arith.constant 0 : i32
    return %c0_i32, %c0_i32_0 : i32, i32
  }
  func.func @transform_2(%arg0: i32) -> (i32, i32) {
    %c0_i32 = arith.constant 0 : i32
    %c0_i32_0 = arith.constant 0 : i32
    %c0_i32_1 = arith.constant 0 : i32
    return %c0_i32, %c0_i32_0 : i32, i32
  }
  func.func @transform_3(%arg0: i32) -> (i32, i32) {
    %c0_i32 = arith.constant 0 : i32
    %c0_i32_0 = arith.constant 0 : i32
    return %arg0, %c0_i32 : i32, i32
  }
}

module attributes {stable_mosaic.version = 11 : i64} {
  func.func @_bn_apply_res_kernel(%arg0: i32, %arg1: memref<32x128xf32, #tpu.memory_space<vmem>>, %arg2: memref<1x128xf32, #tpu.memory_space<vmem>>, %arg3: memref<1x128xf32, #tpu.memory_space<vmem>>, %arg4: memref<32x128xf32, #tpu.memory_space<vmem>>, %arg5: memref<32x128xf32, #tpu.memory_space<vmem>>) attributes {dimension_semantics = [#tpu.dimension_semantics<parallel>], iteration_bounds = array<i64: 1>, scalar_prefetch = 0 : i64, scratch_operands = 0 : i64, tpu.core_type = #tpu.core_type<tc>, window_params = [{transform_indices = @transform_0, window_bounds = array<i64: 32, 128>}, {pipeline_mode = #tpu.pipeline_mode<synchronous>, transform_indices = @transform_1, window_bounds = array<i64: 1, 128>}, {pipeline_mode = #tpu.pipeline_mode<synchronous>, transform_indices = @transform_2, window_bounds = array<i64: 1, 128>}, {transform_indices = @transform_3, window_bounds = array<i64: 32, 128>}, {transform_indices = @transform_4, window_bounds = array<i64: 32, 128>}]} {
    %c0 = arith.constant 0 : index
    %c0_0 = arith.constant 0 : index
    %0 = vector.load %arg1[%c0, %c0_0] : memref<32x128xf32, #tpu.memory_space<vmem>>, vector<32x128xf32>
    %c0_1 = arith.constant 0 : index
    %c0_2 = arith.constant 0 : index
    %1 = vector.load %arg2[%c0_1, %c0_2] : memref<1x128xf32, #tpu.memory_space<vmem>>, vector<1x128xf32>
    %2 = vector.broadcast %1 : vector<1x128xf32> to vector<32x128xf32>
    %3 = arith.mulf %0, %2 : vector<32x128xf32>
    %c0_3 = arith.constant 0 : index
    %c0_4 = arith.constant 0 : index
    %4 = vector.load %arg3[%c0_3, %c0_4] : memref<1x128xf32, #tpu.memory_space<vmem>>, vector<1x128xf32>
    %5 = vector.broadcast %4 : vector<1x128xf32> to vector<32x128xf32>
    %6 = arith.addf %3, %5 : vector<32x128xf32>
    %c0_5 = arith.constant 0 : index
    %c0_6 = arith.constant 0 : index
    %7 = vector.load %arg4[%c0_5, %c0_6] : memref<32x128xf32, #tpu.memory_space<vmem>>, vector<32x128xf32>
    %8 = arith.addf %6, %7 : vector<32x128xf32>
    %c0_7 = arith.constant 0 : index
    %c0_8 = arith.constant 0 : index
    %9 = vector.load %arg5[%c0_7, %c0_8] : memref<32x128xf32, #tpu.memory_space<vmem>>, vector<32x128xf32>
    tpu.vector_store %arg5[%c0_7, %c0_8], %8 {strides = array<i32>} : memref<32x128xf32, #tpu.memory_space<vmem>>, vector<32x128xf32>,
    return
  }
  func.func @transform_0(%arg0: i32) -> (i32, i32) {
    %c0_i32 = arith.constant 0 : i32
    %c0_i32_0 = arith.constant 0 : i32
    return %arg0, %c0_i32 : i32, i32
  }
  func.func @transform_1(%arg0: i32) -> (i32, i32) {
    %c0_i32 = arith.constant 0 : i32
    %c0_i32_0 = arith.constant 0 : i32
    %c0_i32_1 = arith.constant 0 : i32
    return %c0_i32, %c0_i32_0 : i32, i32
  }
  func.func @transform_2(%arg0: i32) -> (i32, i32) {
    %c0_i32 = arith.constant 0 : i32
    %c0_i32_0 = arith.constant 0 : i32
    %c0_i32_1 = arith.constant 0 : i32
    return %c0_i32, %c0_i32_0 : i32, i32
  }
  func.func @transform_3(%arg0: i32) -> (i32, i32) {
    %c0_i32 = arith.constant 0 : i32
    %c0_i32_0 = arith.constant 0 : i32
    return %arg0, %c0_i32 : i32, i32
  }
  func.func @transform_4(%arg0: i32) -> (i32, i32) {
    %c0_i32 = arith.constant 0 : i32
    %c0_i32_0 = arith.constant 0 : i32
    return %arg0, %c0_i32 : i32, i32
  }
}

module attributes {stable_mosaic.version = 11 : i64} {
  func.func @kernel(%arg0: i32, %arg1: i32, %arg2: memref<1x16x256xbf16, #tpu.memory_space<vmem>>, %arg3: memref<2x128x128xbf16, #tpu.memory_space<vmem>>, %arg4: memref<1x16x128xf32, #tpu.memory_space<vmem>>, %arg5: memref<1x1x128xf32, #tpu.memory_space<vmem>>, %arg6: memref<1x1x128xf32, #tpu.memory_space<vmem>>) attributes {dimension_semantics = [#tpu.dimension_semantics<parallel>, #tpu.dimension_semantics<arbitrary>], iteration_bounds = array<i64: 2, 1>, scalar_prefetch = 0 : i64, scratch_operands = 0 : i64, tpu.core_type = #tpu.core_type<tc>, window_params = [{transform_indices = @transform_0, window_bounds = array<i64: 1, 16, 256>}, {pipeline_mode = #tpu.pipeline_mode<synchronous>, transform_indices = @transform_1, window_bounds = array<i64: 2, 128, 128>}, {transform_indices = @transform_2, window_bounds = array<i64: 1, 16, 128>}, {transform_indices = @transform_3, window_bounds = array<i64: 1, 1, 128>}, {transform_indices = @transform_4, window_bounds = array<i64: 1, 1, 128>}]} {
    %c0_i32 = arith.constant 0 : i32
    %0 = arith.cmpi eq, %arg1, %c0_i32 : i32
    %1 = arith.extui %0 : i1 to i32
    %c0_i32_0 = arith.constant 0 : i32
    %2 = arith.cmpi ne, %1, %c0_i32_0 : i32
    scf.if %2 {
      %cst_37 = arith.constant 0.000000e+00 : f32
      %41 = vector.broadcast %cst_37 : f32 to vector<1x128xf32>
      %c0_38 = arith.constant 0 : index
      %c0_39 = arith.constant 0 : index
      %c0_40 = arith.constant 0 : index
      %42 = vector.load %arg5[%c0_38, %c0_39, %c0_40] : memref<1x1x128xf32, #tpu.memory_space<vmem>>, vector<1x1x128xf32>
      %43 = vector.shape_cast %42 : vector<1x1x128xf32> to vector<1x128xf32>
      %44 = vector.shape_cast %41 : vector<1x128xf32> to vector<1x1x128xf32>
      tpu.vector_store %arg5[%c0_38, %c0_39, %c0_40], %44 {strides = array<i32>} : memref<1x1x128xf32, #tpu.memory_space<vmem>>, vector<1x1x128xf32>,
      %cst_41 = arith.constant 0.000000e+00 : f32
      %45 = vector.broadcast %cst_41 : f32 to vector<1x128xf32>
      %c0_42 = arith.constant 0 : index
      %c0_43 = arith.constant 0 : index
      %c0_44 = arith.constant 0 : index
      %46 = vector.load %arg6[%c0_42, %c0_43, %c0_44] : memref<1x1x128xf32, #tpu.memory_space<vmem>>, vector<1x1x128xf32>
      %47 = vector.shape_cast %46 : vector<1x1x128xf32> to vector<1x128xf32>
      %48 = vector.shape_cast %45 : vector<1x128xf32> to vector<1x1x128xf32>
      tpu.vector_store %arg6[%c0_42, %c0_43, %c0_44], %48 {strides = array<i32>} : memref<1x1x128xf32, #tpu.memory_space<vmem>>, vector<1x1x128xf32>,
    } else {
    }
    %c0 = arith.constant 0 : index
    %c0_1 = arith.constant 0 : index
    %c0_2 = arith.constant 0 : index
    %3 = vector.load %arg2[%c0, %c0_1, %c0_2] : memref<1x16x256xbf16, #tpu.memory_space<vmem>>, vector<1x16x128xbf16>
    %4 = vector.shape_cast %3 : vector<1x16x128xbf16> to vector<16x128xbf16>
    %c0_3 = arith.constant 0 : index
    %c0_4 = arith.constant 0 : index
    %c0_5 = arith.constant 0 : index
    %5 = vector.load %arg3[%c0_3, %c0_4, %c0_5] : memref<2x128x128xbf16, #tpu.memory_space<vmem>>, vector<1x128x128xbf16>
    %6 = vector.shape_cast %5 : vector<1x128x128xbf16> to vector<128x128xbf16>
    %cst = arith.constant dense<0.000000e+00> : vector<16x128xf32>
    %7 = tpu.matmul %4, %6, %cst {dimension_numbers = #tpu.dot_dimension_numbers<[1], [0], [0], [1], [0, 0, 1, 1], [], []>} : vector<16x128xbf16>, vector<128x128xbf16>, vector<16x128xf32> -> vector<16x128xf32>
    %c0_6 = arith.constant 0 : index
    %c0_7 = arith.constant 0 : index
    %c0_8 = arith.constant 0 : index
    %8 = vector.load %arg4[%c0_6, %c0_7, %c0_8] : memref<1x16x128xf32, #tpu.memory_space<vmem>>, vector<1x16x128xf32>
    %9 = vector.shape_cast %8 : vector<1x16x128xf32> to vector<16x128xf32>
    %10 = vector.shape_cast %7 : vector<16x128xf32> to vector<1x16x128xf32>
    tpu.vector_store %arg4[%c0_6, %c0_7, %c0_8], %10 {strides = array<i32>} : memref<1x16x128xf32, #tpu.memory_space<vmem>>, vector<1x16x128xf32>,
    %c0_9 = arith.constant 0 : index
    %c0_10 = arith.constant 0 : index
    %c0_11 = arith.constant 0 : index
    %11 = vector.load %arg4[%c0_9, %c0_10, %c0_11] : memref<1x16x128xf32, #tpu.memory_space<vmem>>, vector<1x16x128xf32>
    %12 = vector.shape_cast %11 : vector<1x16x128xf32> to vector<16x128xf32>
    %c0_12 = arith.constant 0 : index
    %c0_13 = arith.constant 0 : index
    %c128 = arith.constant 128 : index
    %13 = vector.load %arg2[%c0_12, %c0_13, %c128] : memref<1x16x256xbf16, #tpu.memory_space<vmem>>, vector<1x16x128xbf16>
    %14 = vector.shape_cast %13 : vector<1x16x128xbf16> to vector<16x128xbf16>
    %c1 = arith.constant 1 : index
    %c0_14 = arith.constant 0 : index
    %c0_15 = arith.constant 0 : index
    %15 = vector.load %arg3[%c1, %c0_14, %c0_15] : memref<2x128x128xbf16, #tpu.memory_space<vmem>>, vector<1x128x128xbf16>
    %16 = vector.shape_cast %15 : vector<1x128x128xbf16> to vector<128x128xbf16>
    %cst_16 = arith.constant dense<0.000000e+00> : vector<16x128xf32>
    %17 = tpu.matmul %14, %16, %cst_16 {dimension_numbers = #tpu.dot_dimension_numbers<[1], [0], [0], [1], [0, 0, 1, 1], [], []>} : vector<16x128xbf16>, vector<128x128xbf16>, vector<16x128xf32> -> vector<16x128xf32>
    %18 = arith.addf %12, %17 : vector<16x128xf32>
    %c0_17 = arith.constant 0 : index
    %c0_18 = arith.constant 0 : index
    %c0_19 = arith.constant 0 : index
    %19 = vector.load %arg4[%c0_17, %c0_18, %c0_19] : memref<1x16x128xf32, #tpu.memory_space<vmem>>, vector<1x16x128xf32>
    %20 = vector.shape_cast %19 : vector<1x16x128xf32> to vector<16x128xf32>
    %21 = vector.shape_cast %18 : vector<16x128xf32> to vector<1x16x128xf32>
    tpu.vector_store %arg4[%c0_17, %c0_18, %c0_19], %21 {strides = array<i32>} : memref<1x16x128xf32, #tpu.memory_space<vmem>>, vector<1x16x128xf32>,
    %c0_20 = arith.constant 0 : index
    %c0_21 = arith.constant 0 : index
    %c0_22 = arith.constant 0 : index
    %22 = vector.load %arg4[%c0_20, %c0_21, %c0_22] : memref<1x16x128xf32, #tpu.memory_space<vmem>>, vector<1x16x128xf32>
    %23 = vector.shape_cast %22 : vector<1x16x128xf32> to vector<16x128xf32>
    %c0_23 = arith.constant 0 : index
    %c0_24 = arith.constant 0 : index
    %c0_25 = arith.constant 0 : index
    %24 = vector.load %arg5[%c0_23, %c0_24, %c0_25] : memref<1x1x128xf32, #tpu.memory_space<vmem>>, vector<1x1x128xf32>
    %25 = vector.shape_cast %24 : vector<1x1x128xf32> to vector<1x128xf32>
    %cst_26 = arith.constant dense<0.000000e+00> : vector<128xf32>
    %26 = vector.multi_reduction <add>, %23, %cst_26 [0] : vector<16x128xf32> to vector<128xf32>
    %27 = vector.shape_cast %26 : vector<128xf32> to vector<1x128xf32>
    %28 = arith.addf %25, %27 : vector<1x128xf32>
    %c0_27 = arith.constant 0 : index
    %c0_28 = arith.constant 0 : index
    %c0_29 = arith.constant 0 : index
    %29 = vector.load %arg5[%c0_27, %c0_28, %c0_29] : memref<1x1x128xf32, #tpu.memory_space<vmem>>, vector<1x1x128xf32>
    %30 = vector.shape_cast %29 : vector<1x1x128xf32> to vector<1x128xf32>
    %31 = vector.shape_cast %28 : vector<1x128xf32> to vector<1x1x128xf32>
    tpu.vector_store %arg5[%c0_27, %c0_28, %c0_29], %31 {strides = array<i32>} : memref<1x1x128xf32, #tpu.memory_space<vmem>>, vector<1x1x128xf32>,
    %c0_30 = arith.constant 0 : index
    %c0_31 = arith.constant 0 : index
    %c0_32 = arith.constant 0 : index
    %32 = vector.load %arg6[%c0_30, %c0_31, %c0_32] : memref<1x1x128xf32, #tpu.memory_space<vmem>>, vector<1x1x128xf32>
    %33 = vector.shape_cast %32 : vector<1x1x128xf32> to vector<1x128xf32>
    %34 = arith.mulf %23, %23 : vector<16x128xf32>
    %cst_33 = arith.constant dense<0.000000e+00> : vector<128xf32>
    %35 = vector.multi_reduction <add>, %34, %cst_33 [0] : vector<16x128xf32> to vector<128xf32>
    %36 = vector.shape_cast %35 : vector<128xf32> to vector<1x128xf32>
    %37 = arith.addf %33, %36 : vector<1x128xf32>
    %c0_34 = arith.constant 0 : index
    %c0_35 = arith.constant 0 : index
    %c0_36 = arith.constant 0 : index
    %38 = vector.load %arg6[%c0_34, %c0_35, %c0_36] : memref<1x1x128xf32, #tpu.memory_space<vmem>>, vector<1x1x128xf32>
    %39 = vector.shape_cast %38 : vector<1x1x128xf32> to vector<1x128xf32>
    %40 = vector.shape_cast %37 : vector<1x128xf32> to vector<1x1x128xf32>
    tpu.vector_store %arg6[%c0_34, %c0_35, %c0_36], %40 {strides = array<i32>} : memref<1x1x128xf32, #tpu.memory_space<vmem>>, vector<1x1x128xf32>,
    return
  }
  func.func @transform_0(%arg0: i32, %arg1: i32) -> (i32, i32, i32) {
    %c0_i32 = arith.constant 0 : i32
    %c0_i32_0 = arith.constant 0 : i32
    return %arg0, %arg1, %c0_i32 : i32, i32, i32
  }
  func.func @transform_1(%arg0: i32, %arg1: i32) -> (i32, i32, i32) {
    %c0_i32 = arith.constant 0 : i32
    %c0_i32_0 = arith.constant 0 : i32
    %c0_i32_1 = arith.constant 0 : i32
    %c0_i32_2 = arith.constant 0 : i32
    return %c0_i32, %c0_i32_0, %c0_i32_1 : i32, i32, i32
  }
  func.func @transform_2(%arg0: i32, %arg1: i32) -> (i32, i32, i32) {
    %c0_i32 = arith.constant 0 : i32
    %c0_i32_0 = arith.constant 0 : i32
    return %arg0, %arg1, %c0_i32 : i32, i32, i32
  }
  func.func @transform_3(%arg0: i32, %arg1: i32) -> (i32, i32, i32) {
    %c0_i32 = arith.constant 0 : i32
    %c0_i32_0 = arith.constant 0 : i32
    %c0_i32_1 = arith.constant 0 : i32
    return %arg0, %c0_i32, %c0_i32_0 : i32, i32, i32
  }
  func.func @transform_4(%arg0: i32, %arg1: i32) -> (i32, i32, i32) {
    %c0_i32 = arith.constant 0 : i32
    %c0_i32_0 = arith.constant 0 : i32
    %c0_i32_1 = arith.constant 0 : i32
    return %arg0, %c0_i32, %c0_i32_0 : i32, i32, i32
  }
}

</mosaic_0001>

<llo_original>
// kernel: birealnet_forward.13
$region0: #{birealnet_forward.13}
  #allocation0 [shape = 'u32[]', space=smem, size = 0x4, offset = 0x4, fixed_abs, tag = 'smem constant byte address 0x4 - core index']
  #allocation1 [shape = 'u32[72,128]{1,0:T(1,128)}', space=vmem, size = 0x9000, scoped, tag = 'internal scratch']
  %s0 = inlined_call_operand.vmem [shape: f32[512,128], index: 0, kind: input, shape index: {}]
  %s1 = inlined_call_operand.vmem [shape: f32[1,128], index: 1, kind: input, shape index: {}]
  %s2 = inlined_call_operand.vmem [shape: f32[1,128], index: 2, kind: input, shape index: {}]
  %s3 = inlined_call_operand.vmem [shape: f32[512,128], index: 3, kind: output, shape index: {}]
  %s4 = sld [smem:[#allocation0]]
  $region22: #{birealnet_forward.13} parent=0
    _
  %s6 = ssub.s32 1, %s4
  %s7 = scalar_select 0, %s6, %s4
  // Predicated region
  $region2: #{birealnet_forward.13} parent=0 // pred_check
    _
  $region3: #{birealnet_forward.13} parent=0 // pred_check_branch
    %9 = sbr.rel (0) target = $region5
  $region4: #{birealnet_forward.13} parent=0 // pred_region
    _
  $region5: #{birealnet_forward.13} parent=0 // pred_fallthru
    _
  // Predicated region
  $region6: #{birealnet_forward.13} parent=0 // pred_check
    _
  $region7: #{birealnet_forward.13} parent=0 // pred_check_branch
    %11 = sbr.rel (0) target = $region9
  $region8: #{birealnet_forward.13} parent=0 // pred_region
    _
  $region9: #{birealnet_forward.13} parent=0 // pred_fallthru
    _
  // Predicated region
  $region10: #{birealnet_forward.13} parent=0 // pred_check
    _
  $region11: #{birealnet_forward.13} parent=0 // pred_check_branch
    %13 = sbr.rel (0) target = $region13
  $region12: #{birealnet_forward.13} parent=0 // pred_region
    _
  $region13: #{birealnet_forward.13} parent=0 // pred_fallthru
    _
  %v14 = vld [vmem:[%s0] sm:$0xff]
  %v15 = vld [vmem:[%s0 + $0x8] sm:$0xff]
  %v16 = vld [vmem:[%s0 + $0x10] sm:$0xff]
  %v17 = vld [vmem:[%s0 + $0x18] sm:$0xff]
  %v18 = vld [vmem:[%s0 + $0x20] sm:$0xff]
  %v19 = vld [vmem:[%s0 + $0x28] sm:$0xff]
  %v20 = vld [vmem:[%s0 + $0x30] sm:$0xff]
  %v21 = vld [vmem:[%s0 + $0x38] sm:$0xff]
  %v22 = vld [vmem:[%s0 + $0x40] sm:$0xff]
  %v23 = vld [vmem:[%s0 + $0x48] sm:$0xff]
  %v24 = vld [vmem:[%s0 + $0x50] sm:$0xff]
  %v25 = vld [vmem:[%s0 + $0x58] sm:$0xff]
  %v26 = vld [vmem:[%s0 + $0x60] sm:$0xff]
  %v27 = vld [vmem:[%s0 + $0x68] sm:$0xff]
  %v28 = vld [vmem:[%s0 + $0x70] sm:$0xff]
  %v29 = vld [vmem:[%s0 + $0x78] sm:$0xff]
  %v30 = vld [vmem:[%s0 + $0x80] sm:$0xff]
  %v31 = vld [vmem:[%s0 + $0x88] sm:$0xff]
  %v32 = vld [vmem:[%s0 + $0x90] sm:$0xff]
  %v33 = vld [vmem:[%s0 + $0x98] sm:$0xff]
  %v34 = vld [vmem:[%s0 + $0xa0] sm:$0xff]
  %v35 = vld [vmem:[%s0 + $0xa8] sm:$0xff]
  %v36 = vld [vmem:[%s0 + $0xb0] sm:$0xff]
  %v37 = vld [vmem:[%s0 + $0xb8] sm:$0xff]
  %v38 = vld [vmem:[%s0 + $0xc0] sm:$0xff]
  %v39 = vld [vmem:[%s0 + $0xc8] sm:$0xff]
  %v40 = vld [vmem:[%s0 + $0xd0] sm:$0xff]
  %v41 = vld [vmem:[%s0 + $0xd8] sm:$0xff]
  %v42 = vld [vmem:[%s0 + $0xe0] sm:$0xff]
  %v43 = vld [vmem:[%s0 + $0xe8] sm:$0xff]
  %v44 = vld [vmem:[%s0 + $0xf0] sm:$0xff]
  %v45 = vld [vmem:[%s0 + $0xf8] sm:$0xff]
  %v46 = vld [vmem:[%s0 + $0x100] sm:$0xff]
  %v47 = vld [vmem:[%s0 + $0x108] sm:$0xff]
  %v48 = vld [vmem:[%s0 + $0x110] sm:$0xff]
  %v49 = vld [vmem:[%s0 + $0x118] sm:$0xff]
  %v50 = vld [vmem:[%s0 + $0x120] sm:$0xff]
  %v51 = vld [vmem:[%s0 + $0x128] sm:$0xff]
  %v52 = vld [vmem:[%s0 + $0x130] sm:$0xff]
  %v53 = vld [vmem:[%s0 + $0x138] sm:$0xff]
  %v54 = vld [vmem:[%s0 + $0x140] sm:$0xff]
  %v55 = vld [vmem:[%s0 + $0x148] sm:$0xff]
  %v56 = vld [vmem:[%s0 + $0x150] sm:$0xff]
  %v57 = vld [vmem:[%s0 + $0x158] sm:$0xff]
  %v58 = vld [vmem:[%s0 + $0x160] sm:$0xff]
  %v59 = vld [vmem:[%s0 + $0x168] sm:$0xff]
  %v60 = vld [vmem:[%s0 + $0x170] sm:$0xff]
  %v61 = vld [vmem:[%s0 + $0x178] sm:$0xff]
  %v62 = vld [vmem:[%s0 + $0x180] sm:$0xff]
  %v63 = vld [vmem:[%s0 + $0x188] sm:$0xff]
  %v64 = vld [vmem:[%s0 + $0x190] sm:$0xff]
  %v65 = vld [vmem:[%s0 + $0x198] sm:$0xff]
  %v66 = vld [vmem:[%s0 + $0x1a0] sm:$0xff]
  %v67 = vld [vmem:[%s0 + $0x1a8] sm:$0xff]
  %v68 = vld [vmem:[%s0 + $0x1b0] sm:$0xff]
  %v69 = vld [vmem:[%s0 + $0x1b8] sm:$0xff]
  %v70 = vld [vmem:[%s0 + $0x1c0] sm:$0xff]
  %v71 = vld [vmem:[%s0 + $0x1c8] sm:$0xff]
  %v72 = vld [vmem:[%s0 + $0x1d0] sm:$0xff]
  %v73 = vld [vmem:[%s0 + $0x1d8] sm:$0xff]
  %v74 = vld [vmem:[%s0 + $0x1e0] sm:$0xff]
  %v75 = vld [vmem:[%s0 + $0x1e8] sm:$0xff]
  %v76 = vld [vmem:[%s0 + $0x1f0] sm:$0xff]
  %v77 = vld [vmem:[%s0 + $0x1f8] sm:$0xff]
  %v78 = vld [vmem:[%s1] sm:$0x1]
  %v80 = vperm.slane %v78, 0
  %v82 = vmul.f32 %v14, %v80
  %v83 = vmul.f32 %v15, %v80
  %v84 = vmul.f32 %v16, %v80
  %v85 = vmul.f32 %v17, %v80
  %v86 = vmul.f32 %v18, %v80
  %v87 = vmul.f32 %v19, %v80
  %v88 = vmul.f32 %v20, %v80
  %v89 = vmul.f32 %v21, %v80
  %v90 = vmul.f32 %v22, %v80
  %v91 = vmul.f32 %v23, %v80
  %v92 = vmul.f32 %v24, %v80
  %v93 = vmul.f32 %v25, %v80
  %v94 = vmul.f32 %v26, %v80
  %v95 = vmul.f32 %v27, %v80
  %v96 = vmul.f32 %v28, %v80
  %v97 = vmul.f32 %v29, %v80
  %v98 = vmul.f32 %v30, %v80
  %v99 = vmul.f32 %v31, %v80
  %v100 = vmul.f32 %v32, %v80
  %v101 = vmul.f32 %v33, %v80
  %v102 = vmul.f32 %v34, %v80
  %v103 = vmul.f32 %v35, %v80
  %v104 = vmul.f32 %v36, %v80
  %v105 = vmul.f32 %v37, %v80
  %v106 = vmul.f32 %v38, %v80
  %v107 = vmul.f32 %v39, %v80
  %v108 = vmul.f32 %v40, %v80
  %v109 = vmul.f32 %v41, %v80
  %v110 = vmul.f32 %v42, %v80
  %v111 = vmul.f32 %v43, %v80
  %v112 = vmul.f32 %v44, %v80
  %v113 = vmul.f32 %v45, %v80
  %v114 = vmul.f32 %v46, %v80
  %v115 = vmul.f32 %v47, %v80
  %v116 = vmul.f32 %v48, %v80
  %v117 = vmul.f32 %v49, %v80
  %v118 = vmul.f32 %v50, %v80
  %v119 = vmul.f32 %v51, %v80
  %v120 = vmul.f32 %v52, %v80
  %v121 = vmul.f32 %v53, %v80
  %v122 = vmul.f32 %v54, %v80
  %v123 = vmul.f32 %v55, %v80
  %v124 = vmul.f32 %v56, %v80
  %v125 = vmul.f32 %v57, %v80
  %v126 = vmul.f32 %v58, %v80
  %v127 = vmul.f32 %v59, %v80
  %v128 = vmul.f32 %v60, %v80
  %v129 = vmul.f32 %v61, %v80
  %v130 = vmul.f32 %v62, %v80
  %v131 = vmul.f32 %v63, %v80
  %v132 = vmul.f32 %v64, %v80
  %v133 = vmul.f32 %v65, %v80
  %v134 = vmul.f32 %v66, %v80
  %v135 = vmul.f32 %v67, %v80
  %v136 = vmul.f32 %v68, %v80
  %v137 = vmul.f32 %v69, %v80
  %v138 = vmul.f32 %v70, %v80
  %v139 = vmul.f32 %v71, %v80
  %v140 = vmul.f32 %v72, %v80
  %v141 = vmul.f32 %v73, %v80
  %v142 = vmul.f32 %v74, %v80
  %v143 = vmul.f32 %v75, %v80
  %v144 = vmul.f32 %v76, %v80
  %v145 = vmul.f32 %v77, %v80
  %v146 = vld [vmem:[%s2] sm:$0x1]
  %v148 = vperm.slane %v146, 0
  %v150 = vadd.f32 %v82, %v148
  %v151 = vadd.f32 %v83, %v148
  %v152 = vadd.f32 %v84, %v148
  %v153 = vadd.f32 %v85, %v148
  %v154 = vadd.f32 %v86, %v148
  %v155 = vadd.f32 %v87, %v148
  %v156 = vadd.f32 %v88, %v148
  %v157 = vadd.f32 %v89, %v148
  %v158 = vadd.f32 %v90, %v148
  %v159 = vadd.f32 %v91, %v148
  %v160 = vadd.f32 %v92, %v148
  %v161 = vadd.f32 %v93, %v148
  %v162 = vadd.f32 %v94, %v148
  %v163 = vadd.f32 %v95, %v148
  %v164 = vadd.f32 %v96, %v148
  %v165 = vadd.f32 %v97, %v148
  %v166 = vadd.f32 %v98, %v148
  %v167 = vadd.f32 %v99, %v148
  %v168 = vadd.f32 %v100, %v148
  %v169 = vadd.f32 %v101, %v148
  %v170 = vadd.f32 %v102, %v148
  %v171 = vadd.f32 %v103, %v148
  %v172 = vadd.f32 %v104, %v148
  %v173 = vadd.f32 %v105, %v148
  %v174 = vadd.f32 %v106, %v148
  %v175 = vadd.f32 %v107, %v148
  %v176 = vadd.f32 %v108, %v148
  %v177 = vadd.f32 %v109, %v148
  %v178 = vadd.f32 %v110, %v148
  %v179 = vadd.f32 %v111, %v148
  %v180 = vadd.f32 %v112, %v148
  %v181 = vadd.f32 %v113, %v148
  %v182 = vadd.f32 %v114, %v148
  %v183 = vadd.f32 %v115, %v148
  %v184 = vadd.f32 %v116, %v148
  %v185 = vadd.f32 %v117, %v148
  %v186 = vadd.f32 %v118, %v148
  %v187 = vadd.f32 %v119, %v148
  %v188 = vadd.f32 %v120, %v148
  %v189 = vadd.f32 %v121, %v148
  %v190 = vadd.f32 %v122, %v148
  %v191 = vadd.f32 %v123, %v148
  %v192 = vadd.f32 %v124, %v148
  %v193 = vadd.f32 %v125, %v148
  %v194 = vadd.f32 %v126, %v148
  %v195 = vadd.f32 %v127, %v148
  %v196 = vadd.f32 %v128, %v148
  %v197 = vadd.f32 %v129, %v148
  %v198 = vadd.f32 %v130, %v148
  %v199 = vadd.f32 %v131, %v148
  %v200 = vadd.f32 %v132, %v148
  %v201 = vadd.f32 %v133, %v148
  %v202 = vadd.f32 %v134, %v148
  %v203 = vadd.f32 %v135, %v148
  %v204 = vadd.f32 %v136, %v148
  %v205 = vadd.f32 %v137, %v148
  %v206 = vadd.f32 %v138, %v148
  %v207 = vadd.f32 %v139, %v148
  %v208 = vadd.f32 %v140, %v148
  %v209 = vadd.f32 %v141, %v148
  %v210 = vadd.f32 %v142, %v148
  %v211 = vadd.f32 %v143, %v148
  %v212 = vadd.f32 %v144, %v148
  %v213 = vadd.f32 %v145, %v148
  %214 = vst [vmem:[%s3] sm:$0xff] %v150
  %215 = vst [vmem:[%s3 + $0x8] sm:$0xff] %v151
  %216 = vst [vmem:[%s3 + $0x10] sm:$0xff] %v152
  %217 = vst [vmem:[%s3 + $0x18] sm:$0xff] %v153
  %218 = vst [vmem:[%s3 + $0x20] sm:$0xff] %v154
  %219 = vst [vmem:[%s3 + $0x28] sm:$0xff] %v155
  %220 = vst [vmem:[%s3 + $0x30] sm:$0xff] %v156
  %221 = vst [vmem:[%s3 + $0x38] sm:$0xff] %v157
  %222 = vst [vmem:[%s3 + $0x40] sm:$0xff] %v158
  %223 = vst [vmem:[%s3 + $0x48] sm:$0xff] %v159
  %224 = vst [vmem:[%s3 + $0x50] sm:$0xff] %v160
  %225 = vst [vmem:[%s3 + $0x58] sm:$0xff] %v161
  %226 = vst [vmem:[%s3 + $0x60] sm:$0xff] %v162
  %227 = vst [vmem:[%s3 + $0x68] sm:$0xff] %v163
  %228 = vst [vmem:[%s3 + $0x70] sm:$0xff] %v164
  %229 = vst [vmem:[%s3 + $0x78] sm:$0xff] %v165
  %230 = vst [vmem:[%s3 + $0x80] sm:$0xff] %v166
  %231 = vst [vmem:[%s3 + $0x88] sm:$0xff] %v167
  %232 = vst [vmem:[%s3 + $0x90] sm:$0xff] %v168
  %233 = vst [vmem:[%s3 + $0x98] sm:$0xff] %v169
  %234 = vst [vmem:[%s3 + $0xa0] sm:$0xff] %v170
  %235 = vst [vmem:[%s3 + $0xa8] sm:$0xff] %v171
  %236 = vst [vmem:[%s3 + $0xb0] sm:$0xff] %v172
  %237 = vst [vmem:[%s3 + $0xb8] sm:$0xff] %v173
  %238 = vst [vmem:[%s3 + $0xc0] sm:$0xff] %v174
  %239 = vst [vmem:[%s3 + $0xc8] sm:$0xff] %v175
  %240 = vst [vmem:[%s3 + $0xd0] sm:$0xff] %v176
  %241 = vst [vmem:[%s3 + $0xd8] sm:$0xff] %v177
  %242 = vst [vmem:[%s3 + $0xe0] sm:$0xff] %v178
  %243 = vst [vmem:[%s3 + $0xe8] sm:$0xff] %v179
  %244 = vst [vmem:[%s3 + $0xf0] sm:$0xff] %v180
  %245 = vst [vmem:[%s3 + $0xf8] sm:$0xff] %v181
  %246 = vst [vmem:[%s3 + $0x100] sm:$0xff] %v182
  %247 = vst [vmem:[%s3 + $0x108] sm:$0xff] %v183
  %248 = vst [vmem:[%s3 + $0x110] sm:$0xff] %v184
  %249 = vst [vmem:[%s3 + $0x118] sm:$0xff] %v185
  %250 = vst [vmem:[%s3 + $0x120] sm:$0xff] %v186
  %251 = vst [vmem:[%s3 + $0x128] sm:$0xff] %v187
  %252 = vst [vmem:[%s3 + $0x130] sm:$0xff] %v188
  %253 = vst [vmem:[%s3 + $0x138] sm:$0xff] %v189
  %254 = vst [vmem:[%s3 + $0x140] sm:$0xff] %v190
  %255 = vst [vmem:[%s3 + $0x148] sm:$0xff] %v191
  %256 = vst [vmem:[%s3 + $0x150] sm:$0xff] %v192
  %257 = vst [vmem:[%s3 + $0x158] sm:$0xff] %v193
  %258 = vst [vmem:[%s3 + $0x160] sm:$0xff] %v194
  %259 = vst [vmem:[%s3 + $0x168] sm:$0xff] %v195
  %260 = vst [vmem:[%s3 + $0x170] sm:$0xff] %v196
  %261 = vst [vmem:[%s3 + $0x178] sm:$0xff] %v197
  %262 = vst [vmem:[%s3 + $0x180] sm:$0xff] %v198
  %263 = vst [vmem:[%s3 + $0x188] sm:$0xff] %v199
  %264 = vst [vmem:[%s3 + $0x190] sm:$0xff] %v200
  %265 = vst [vmem:[%s3 + $0x198] sm:$0xff] %v201
  %266 = vst [vmem:[%s3 + $0x1a0] sm:$0xff] %v202
  %267 = vst [vmem:[%s3 + $0x1a8] sm:$0xff] %v203
  %268 = vst [vmem:[%s3 + $0x1b0] sm:$0xff] %v204
  %269 = vst [vmem:[%s3 + $0x1b8] sm:$0xff] %v205
  %270 = vst [vmem:[%s3 + $0x1c0] sm:$0xff] %v206
  %271 = vst [vmem:[%s3 + $0x1c8] sm:$0xff] %v207
  %272 = vst [vmem:[%s3 + $0x1d0] sm:$0xff] %v208
  %273 = vst [vmem:[%s3 + $0x1d8] sm:$0xff] %v209
  %274 = vst [vmem:[%s3 + $0x1e0] sm:$0xff] %v210
  %275 = vst [vmem:[%s3 + $0x1e8] sm:$0xff] %v211
  %276 = vst [vmem:[%s3 + $0x1f0] sm:$0xff] %v212
  %277 = vst [vmem:[%s3 + $0x1f8] sm:$0xff] %v213
  // Predicated region
  $region14: #{birealnet_forward.13} parent=0 // pred_check
    _
  $region15: #{birealnet_forward.13} parent=0 // pred_check_branch
    %279 = sbr.rel (0) target = $region17
  $region16: #{birealnet_forward.13} parent=0 // pred_region
    _
  $region17: #{birealnet_forward.13} parent=0 // pred_fallthru
    _
  // Predicated region
  $region18: #{birealnet_forward.13} parent=0 // pred_check
    _
  $region19: #{birealnet_forward.13} parent=0 // pred_check_branch
    %281 = sbr.rel (0) target = $region21
  $region20: #{birealnet_forward.13} parent=0 // pred_region
    _
  $region21: #{birealnet_forward.13} parent=0 // pred_fallthru
    _

// kernel: birealnet_forward.12
$region0: #{birealnet_forward.12}
  #allocation0 [shape = 'u32[]', space=smem, size = 0x4, offset = 0x4, fixed_abs, tag = 'smem constant byte address 0x4 - core index']
  #allocation1 [shape = 'u32[72,128]{1,0:T(1,128)}', space=vmem, size = 0x9000, scoped, tag = 'internal scratch']
  %s0 = inlined_call_operand.vmem [shape: bf16[2,256,128], index: 0, kind: input, shape index: {}]
  %s1 = inlined_call_operand.vmem [shape: bf16[1,128,128], index: 1, kind: input, shape index: {}]
  %s2 = inlined_call_operand.vmem [shape: f32[2,256,128], index: 2, kind: output, shape index: {0}]
  %s3 = inlined_call_operand.vmem [shape: f32[2,1,128], index: 3, kind: output, shape index: {1}]
  %s4 = inlined_call_operand.vmem [shape: f32[2,1,128], index: 4, kind: output, shape index: {2}]
  %5 = xla_tuple %s2, %s3, %s4
  %s6 = sld [smem:[#allocation0]]
  $region61: #{birealnet_forward.12} parent=0
    _
  %s8 = ssub.s32 1, %s6
  %s9 = scalar_select 0, %s8, %s6
  loop: start=0, step=1, limit=4
  $region2: #{birealnet_forward.12} parent=0 // loop_pre_header
    _
  $region3: #{birealnet_forward.12} parent=0 // loop_header
    %s11 = sphi 0, %s15
    %p12 = scmp.ge.s32.totalorder %s11, 4
    %s18 = sphi 0, %s30
    %s19 = sphi 0, %s26
    %s20 = sphi 0, %s18
    %s21 = sphi 0, %s19
    %s22 = sphi 0, %s20
    %s23 = sphi 0, %s21
    %s35 = sphi 0, %s37
    %s38 = sphi 0, %s35
    %s39 = sphi 0, %s38
    %s55 = sphi 0, %s39
    %s59 = sphi 0, %s59
    %s61 = sphi 0, %s59
    %s62 = sphi 0, %s61
    %s76 = sphi 0, %s62
    %s84 = sphi 0, %s86
    %s87 = sphi 0, %s84
    %s88 = sphi 0, %s87
    %s104 = sphi 0, %s88
    %s110 = sphi 0, %s112
    %s113 = sphi 0, %s110
    %s114 = sphi 0, %s113
    %s130 = sphi 0, %s114
    %s136 = sphi 0, %s138
    %s139 = sphi 0, %s136
    %s140 = sphi 0, %s139
    %s156 = sphi 0, %s140
  $region4: #{birealnet_forward.12} parent=0 // loop_header_branch
    %14 = sbr.rel (%p12) target = $region8
  $region5: #{birealnet_forward.12} parent=0 // loop_body
    %s16 = ssub.s32 %s11, 1
    %s17 = ssub.s32 %s11, 2
    %s24 = sadd.s32 1, %s19
    %p25 = scmp.ge.s32.totalorder %s24, 1
    %s26 = scalar_select %p25, 0, %s24
    %s27 = sadd.s32 1, %s18
    %s28 = scalar_select %p25, %s27, %s18
    %p29 = scmp.ge.s32.totalorder %s28, 2
    %s30 = scalar_select %p29, 0, %s28
    %s31 = ssub.s32 %s18, %s30
    %s32 = ssub.s32 %s19, %s26
    %s33 = sor.u32 %s31, %s32
    %p34 = scmp.eq.s32.totalorder %s33, 0
    %s36 = sadd.s32 %s35, 1
    %s37 = scalar_select %p34, %s35, %s36
    %p40 = pneg %p34
    %p41 = scmp.eq.s32.totalorder %s11, 1
    %p42 = por %p40, %p41
    %p43 = scmp.ne.s32.totalorder %s35, %s38
    %p44 = scmp.eq.s32.totalorder %s11, 0
    %p45 = por %p43, %p44
    %p46 = scmp.ne.s32.totalorder %s35, %s38
    %p47 = scmp.eq.s32.totalorder %s16, 1
    %p48 = por %p46, %p47
    %p49 = scmp.ne.s32.totalorder %s38, %s39
    %p50 = scmp.eq.s32.totalorder %s16, 0
    %p51 = por %p49, %p50
    %p52 = scmp.ne.s32.totalorder %s38, %s39
    %p53 = scmp.eq.s32.totalorder %s17, 1
    %p54 = por %p52, %p53
    %p56 = scmp.ne.s32.totalorder %s39, %s55
    %p57 = scmp.eq.s32.totalorder %s17, 0
    %p58 = por %p56, %p57
    %s60 = sadd.s32 %s59, 1
    %p63 = scmp.eq.s32.totalorder %s11, 1
    %p64 = scmp.ne.s32.totalorder %s59, %s61
    %p65 = scmp.eq.s32.totalorder %s11, 0
    %p66 = por %p64, %p65
    %p67 = scmp.ne.s32.totalorder %s59, %s61
    %p68 = scmp.eq.s32.totalorder %s16, 1
    %p69 = por %p67, %p68
    %p70 = scmp.ne.s32.totalorder %s61, %s62
    %p71 = scmp.eq.s32.totalorder %s16, 0
    %p72 = por %p70, %p71
    %p73 = scmp.ne.s32.totalorder %s61, %s62
    %p74 = scmp.eq.s32.totalorder %s17, 1
    %p75 = por %p73, %p74
    %p77 = scmp.ne.s32.totalorder %s62, %s76
    %p78 = scmp.eq.s32.totalorder %s17, 0
    %p79 = por %p77, %p78
    %s80 = ssub.s32 %s18, %s30
    %s81 = ssub.s32 %s19, %s26
    %s82 = sor.u32 %s80, %s81
    %p83 = scmp.eq.s32.totalorder %s82, 0
    %s85 = sadd.s32 %s84, 1
    %s86 = scalar_select %p83, %s84, %s85
    %p89 = pneg %p83
    %p90 = scmp.eq.s32.totalorder %s11, 1
    %p91 = por %p89, %p90
    %p92 = scmp.ne.s32.totalorder %s84, %s87
    %p93 = scmp.eq.s32.totalorder %s11, 0
    %p94 = por %p92, %p93
    %p95 = scmp.ne.s32.totalorder %s84, %s87
    %p96 = scmp.eq.s32.totalorder %s16, 1
    %p97 = por %p95, %p96
    %p98 = scmp.ne.s32.totalorder %s87, %s88
    %p99 = scmp.eq.s32.totalorder %s16, 0
    %p100 = por %p98, %p99
    %p101 = scmp.ne.s32.totalorder %s87, %s88
    %p102 = scmp.eq.s32.totalorder %s17, 1
    %p103 = por %p101, %p102
    %p105 = scmp.ne.s32.totalorder %s88, %s104
    %p106 = scmp.eq.s32.totalorder %s17, 0
    %p107 = por %p105, %p106
    %s108 = ssub.s32 %s18, %s30
    %p109 = scmp.eq.s32.totalorder %s108, 0
    %s111 = sadd.s32 %s110, 1
    %s112 = scalar_select %p109, %s110, %s111
    %p115 = pneg %p109
    %p116 = scmp.eq.s32.totalorder %s11, 1
    %p117 = por %p115, %p116
    %p118 = scmp.ne.s32.totalorder %s110, %s113
    %p119 = scmp.eq.s32.totalorder %s11, 0
    %p120 = por %p118, %p119
    %p121 = scmp.ne.s32.totalorder %s110, %s113
    %p122 = scmp.eq.s32.totalorder %s16, 1
    %p123 = por %p121, %p122
    %p124 = scmp.ne.s32.totalorder %s113, %s114
    %p125 = scmp.eq.s32.totalorder %s16, 0
    %p126 = por %p124, %p125
    %p127 = scmp.ne.s32.totalorder %s113, %s114
    %p128 = scmp.eq.s32.totalorder %s17, 1
    %p129 = por %p127, %p128
    %p131 = scmp.ne.s32.totalorder %s114, %s130
    %p132 = scmp.eq.s32.totalorder %s17, 0
    %p133 = por %p131, %p132
    %s134 = ssub.s32 %s18, %s30
    %p135 = scmp.eq.s32.totalorder %s134, 0
    %s137 = sadd.s32 %s136, 1
    %s138 = scalar_select %p135, %s136, %s137
    %p141 = pneg %p135
    %p142 = scmp.eq.s32.totalorder %s11, 1
    %p143 = por %p141, %p142
    %p144 = scmp.ne.s32.totalorder %s136, %s139
    %p145 = scmp.eq.s32.totalorder %s11, 0
    %p146 = por %p144, %p145
    %p147 = scmp.ne.s32.totalorder %s136, %s139
    %p148 = scmp.eq.s32.totalorder %s16, 1
    %p149 = por %p147, %p148
    %p150 = scmp.ne.s32.totalorder %s139, %s140
    %p151 = scmp.eq.s32.totalorder %s16, 0
    %p152 = por %p150, %p151
    %p153 = scmp.ne.s32.totalorder %s139, %s140
    %p154 = scmp.eq.s32.totalorder %s17, 1
    %p155 = por %p153, %p154
    %p157 = scmp.ne.s32.totalorder %s140, %s156
    %p158 = scmp.eq.s32.totalorder %s17, 0
    %p159 = por %p157, %p158
    %p160 = scmp.le.s32.totalorder 1, %s11
    %p161 = scmp.lt.s32.totalorder %s11, 3
    %p162 = pnand %p160, %p161
    %p163 = pneg %p162
    // Predicated region
    $region9: #{birealnet_forward.12} parent=5 // pred_check
      _
    $region10: #{birealnet_forward.12} parent=5 // pred_check_branch
      %165 = sbr.rel (%p162) target = $region12
    $region11: #{birealnet_forward.12} parent=5 // pred_region
      %s166 = ssub.s32 %s11, 1
      // Predicated region
      $region13: #{birealnet_forward.12} parent=11 // pred_check
        %p167 = pneg %p72
      $region14: #{birealnet_forward.12} parent=11 // pred_check_branch
        %169 = sbr.rel (%p167) target = $region16
      $region15: #{birealnet_forward.12} parent=11 // pred_region
        _
      $region16: #{birealnet_forward.12} parent=11 // pred_fallthru
        _
    $region12: #{birealnet_forward.12} parent=5 // pred_fallthru
      _
    %p170 = scmp.lt.s32.totalorder %s11, 2
    // Predicated region
    $region17: #{birealnet_forward.12} parent=5 // pred_check
      %p171 = pneg %p170
    $region18: #{birealnet_forward.12} parent=5 // pred_check_branch
      %173 = sbr.rel (%p171) target = $region20
    $region19: #{birealnet_forward.12} parent=5 // pred_region
      // Predicated region
      $region21: #{birealnet_forward.12} parent=19 // pred_check
        %p174 = pneg %p45
      $region22: #{birealnet_forward.12} parent=19 // pred_check_branch
        %176 = sbr.rel (%p174) target = $region24
      $region23: #{birealnet_forward.12} parent=19 // pred_region
        %s177 = smul.u32 32, %s19
        %p178 = scmp.lt.s32.totalorder %s18, 1
        %s179 = scalar_select %p178, %s18, 1
        %p180 = scmp.lt.s32.totalorder %s177, 31
        %s181 = scalar_select %p180, %s177, 31
        %s182 = smul.addr %s179, 32
        %s183 = sadd.s32 %s181, %s182
        %s184 = smul.addr %s183, 4
        %s185 = scalar_lea.vmem %s0, %s184
        %s186 = smul.u32 32, %s19
      $region24: #{birealnet_forward.12} parent=19 // pred_fallthru
        _
    $region20: #{birealnet_forward.12} parent=5 // pred_fallthru
      _
    %p187 = scmp.le.s32.totalorder 1, %s11
    %p188 = scmp.lt.s32.totalorder %s11, 3
    %p189 = pnand %p187, %p188
    %p190 = pneg %p189
    // Predicated region
    $region25: #{birealnet_forward.12} parent=5 // pred_check
      _
    $region26: #{birealnet_forward.12} parent=5 // pred_check_branch
      %192 = sbr.rel (%p189) target = $region28
    $region27: #{birealnet_forward.12} parent=5 // pred_region
      %s193 = ssub.s32 %s11, 1
      %s194 = smul.u32 32, %s21
      %p195 = scmp.lt.s32.totalorder %s20, 1
      %s196 = scalar_select %p195, %s20, 1
      %p197 = scmp.lt.s32.totalorder %s194, 31
      %s198 = scalar_select %p197, %s194, 31
      %s199 = smul.addr %s196, 32
      %s200 = sadd.s32 %s198, %s199
      %s201 = smul.addr %s200, 4
      %s202 = scalar_lea.vmem %s0, %s201
      %p203 = pneg %p51
      %p204 = pneg %p48
      %p205 = pneg %p72
      %p206 = pneg %p69
      %p207 = pneg %p100
      %p208 = pneg %p97
      %s209 = smul.u32 32, %s21
      %p210 = scmp.lt.s32.totalorder %s20, 1
      %s211 = scalar_select %p210, %s20, 1
      %p212 = scmp.lt.s32.totalorder %s209, 31
      %s213 = scalar_select %p212, %s209, 31
      %s214 = smul.addr %s211, 32
      %s215 = sadd.s32 %s213, %s214
      %s216 = smul.addr %s215, 8
      %s217 = scalar_lea.vmem %s2, %s216
      %p218 = pneg %p126
      %p219 = pneg %p123
      %p220 = scmp.lt.s32.totalorder %s20, 1
      %s221 = scalar_select %p220, %s20, 1
      %s222 = scalar_lea.vmem %s3, %s221
      %p223 = pneg %p152
      %p224 = pneg %p149
      %p225 = scmp.lt.s32.totalorder %s20, 1
      %s226 = scalar_select %p225, %s20, 1
      %s227 = scalar_lea.vmem %s4, %s226
      %s228 = smul.u32 32, %s21
      %p229 = scmp.lt.s32.totalorder %s20, 1
      %s230 = scalar_select %p229, %s20, 1
      %p231 = scmp.lt.s32.totalorder %s228, 31
      %s232 = scalar_select %p231, %s228, 31
      %s233 = smul.addr %s230, 32
      %s234 = sadd.s32 %s232, %s233
      %s235 = smul.addr %s234, 4
      %s236 = scalar_lea.vmem %s0, %s235
      %s237 = smul.u32 32, %s21
      %s238 = smul.u32 32, %s21
      %p239 = scmp.lt.s32.totalorder %s20, 1
      %s240 = scalar_select %p239, %s20, 1
      %p241 = scmp.lt.s32.totalorder %s238, 31
      %s242 = scalar_select %p241, %s238, 31
      %s243 = smul.addr %s240, 32
      %s244 = sadd.s32 %s242, %s243
      %s245 = smul.addr %s244, 8
      %s246 = scalar_lea.vmem %s2, %s245
      %s247 = smul.u32 32, %s21
      %p248 = scmp.lt.s32.totalorder %s20, 1
      %s249 = scalar_select %p248, %s20, 1
      %s250 = scalar_lea.vmem %s3, %s249
      %p251 = scmp.lt.s32.totalorder %s20, 1
      %s252 = scalar_select %p251, %s20, 1
      %s253 = scalar_lea.vmem %s4, %s252
      %p254 = scmp.eq.s32.totalorder %s21, 0
      // Predicated region
      $region29: #{birealnet_forward.12} parent=27 // pred_check
        %p255 = pneg %p254
      $region30: #{birealnet_forward.12} parent=27 // pred_check_branch
        %257 = sbr.rel (%p255) target = $region32
      $region31: #{birealnet_forward.12} parent=27 // pred_region
        %258 = vst [vmem:[%s250] sm:$0x1] 0.0
        %259 = vst [vmem:[%s253] sm:$0x1] 0.0
      $region32: #{birealnet_forward.12} parent=27 // pred_fallthru
        _
      %v260 = vld [vmem:[%s236] sm:$0xf]
      %v261 = vld [vmem:[%s236 + $0x4] sm:$0xf]
      %v262 = vld [vmem:[%s236 + $0x8] sm:$0xf]
      %v263 = vld [vmem:[%s236 + $0xc] sm:$0xf]
      %v264 = vld [vmem:[%s236 + $0x10] sm:$0xf]
      %v265 = vld [vmem:[%s236 + $0x14] sm:$0xf]
      %v266 = vld [vmem:[%s236 + $0x18] sm:$0xf]
      %v267 = vld [vmem:[%s236 + $0x1c] sm:$0xf]
      %v268 = vld [vmem:[%s236 + $0x20] sm:$0xf]
      %v269 = vld [vmem:[%s236 + $0x24] sm:$0xf]
      %v270 = vld [vmem:[%s236 + $0x28] sm:$0xf]
      %v271 = vld [vmem:[%s236 + $0x2c] sm:$0xf]
      %v272 = vld [vmem:[%s236 + $0x30] sm:$0xf]
      %v273 = vld [vmem:[%s236 + $0x34] sm:$0xf]
      %v274 = vld [vmem:[%s236 + $0x38] sm:$0xf]
      %v275 = vld [vmem:[%s236 + $0x3c] sm:$0xf]
      %v276 = vld [vmem:[%s236 + $0x40] sm:$0xf]
      %v277 = vld [vmem:[%s236 + $0x44] sm:$0xf]
      %v278 = vld [vmem:[%s236 + $0x48] sm:$0xf]
      %v279 = vld [vmem:[%s236 + $0x4c] sm:$0xf]
      %v280 = vld [vmem:[%s236 + $0x50] sm:$0xf]
      %v281 = vld [vmem:[%s236 + $0x54] sm:$0xf]
      %v282 = vld [vmem:[%s236 + $0x58] sm:$0xf]
      %v283 = vld [vmem:[%s236 + $0x5c] sm:$0xf]
      %v284 = vld [vmem:[%s236 + $0x60] sm:$0xf]
      %v285 = vld [vmem:[%s236 + $0x64] sm:$0xf]
      %v286 = vld [vmem:[%s236 + $0x68] sm:$0xf]
      %v287 = vld [vmem:[%s236 + $0x6c] sm:$0xf]
      %v288 = vld [vmem:[%s236 + $0x70] sm:$0xf]
      %v289 = vld [vmem:[%s236 + $0x74] sm:$0xf]
      %v290 = vld [vmem:[%s236 + $0x78] sm:$0xf]
      %v291 = vld [vmem:[%s236 + $0x7c] sm:$0xf]
      %v292 = vld [vmem:[%s1] sm:$0xf]
      %v293 = vld [vmem:[%s1 + $0x4] sm:$0xf]
      %v294 = vld [vmem:[%s1 + $0x8] sm:$0xf]
      %v295 = vld [vmem:[%s1 + $0xc] sm:$0xf]
      %v296 = vld [vmem:[%s1 + $0x10] sm:$0xf]
      %v297 = vld [vmem:[%s1 + $0x14] sm:$0xf]
      %v298 = vld [vmem:[%s1 + $0x18] sm:$0xf]
      %v299 = vld [vmem:[%s1 + $0x1c] sm:$0xf]
      %v300 = vld [vmem:[%s1 + $0x20] sm:$0xf]
      %v301 = vld [vmem:[%s1 + $0x24] sm:$0xf]
      %v302 = vld [vmem:[%s1 + $0x28] sm:$0xf]
      %v303 = vld [vmem:[%s1 + $0x2c] sm:$0xf]
      %v304 = vld [vmem:[%s1 + $0x30] sm:$0xf]
      %v305 = vld [vmem:[%s1 + $0x34] sm:$0xf]
      %v306 = vld [vmem:[%s1 + $0x38] sm:$0xf]
      %v307 = vld [vmem:[%s1 + $0x3c] sm:$0xf]
      %v340 = vunpack.c.l.b16 %v260
      %v341 = vunpack.c.l.b16 %v261
      %v342 = vunpack.c.l.b16 %v262
      %v343 = vunpack.c.l.b16 %v263
      %v344 = vunpack.c.l.b16 %v264
      %v345 = vunpack.c.l.b16 %v265
      %v346 = vunpack.c.l.b16 %v266
      %v347 = vunpack.c.l.b16 %v267
      %v348 = vunpack.c.l.b16 %v268
      %v349 = vunpack.c.l.b16 %v269
      %v350 = vunpack.c.l.b16 %v270
      %v351 = vunpack.c.l.b16 %v271
      %v352 = vunpack.c.l.b16 %v272
      %v353 = vunpack.c.l.b16 %v273
      %v354 = vunpack.c.l.b16 %v274
      %v355 = vunpack.c.l.b16 %v275
      %v356 = vunpack.c.l.b16 %v276
      %v357 = vunpack.c.l.b16 %v277
      %v358 = vunpack.c.l.b16 %v278
      %v359 = vunpack.c.l.b16 %v279
      %v360 = vunpack.c.l.b16 %v280
      %v361 = vunpack.c.l.b16 %v281
      %v362 = vunpack.c.l.b16 %v282
      %v363 = vunpack.c.l.b16 %v283
      %v364 = vunpack.c.l.b16 %v284
      %v365 = vunpack.c.l.b16 %v285
      %v366 = vunpack.c.l.b16 %v286
      %v367 = vunpack.c.l.b16 %v287
      %v368 = vunpack.c.l.b16 %v288
      %v369 = vunpack.c.l.b16 %v289
      %v370 = vunpack.c.l.b16 %v290
      %v371 = vunpack.c.l.b16 %v291
      %v372 = vpack.c.b16 %v341, %v340
      %v373 = vpack.c.b16 %v343, %v342
      %v374 = vpack.c.b16 %v345, %v344
      %v375 = vpack.c.b16 %v347, %v346
      %v376 = vpack.c.b16 %v349, %v348
      %v377 = vpack.c.b16 %v351, %v350
      %v378 = vpack.c.b16 %v353, %v352
      %v379 = vpack.c.b16 %v355, %v354
      %v380 = vpack.c.b16 %v357, %v356
      %v381 = vpack.c.b16 %v359, %v358
      %v382 = vpack.c.b16 %v361, %v360
      %v383 = vpack.c.b16 %v363, %v362
      %v384 = vpack.c.b16 %v365, %v364
      %v385 = vpack.c.b16 %v367, %v366
      %v386 = vpack.c.b16 %v369, %v368
      %v387 = vpack.c.b16 %v371, %v370
      %v420 = vunpack.c.l.b16 %v292
      %v421 = vunpack.c.l.b16 %v293
      %v422 = vunpack.c.l.b16 %v294
      %v423 = vunpack.c.l.b16 %v295
      %v424 = vunpack.c.l.b16 %v296
      %v425 = vunpack.c.l.b16 %v297
      %v426 = vunpack.c.l.b16 %v298
      %v427 = vunpack.c.l.b16 %v299
      %v428 = vunpack.c.l.b16 %v300
      %v429 = vunpack.c.l.b16 %v301
      %v430 = vunpack.c.l.b16 %v302
      %v431 = vunpack.c.l.b16 %v303
      %v432 = vunpack.c.l.b16 %v304
      %v433 = vunpack.c.l.b16 %v305
      %v434 = vunpack.c.l.b16 %v306
      %v435 = vunpack.c.l.b16 %v307
      %v436 = vpack.c.b16 %v421, %v420
      %v437 = vpack.c.b16 %v423, %v422
      %v438 = vpack.c.b16 %v425, %v424
      %v439 = vpack.c.b16 %v427, %v426
      %v440 = vpack.c.b16 %v429, %v428
      %v441 = vpack.c.b16 %v431, %v430
      %v442 = vpack.c.b16 %v433, %v432
      %v443 = vpack.c.b16 %v435, %v434
      %452 = vmatpush.bf16.msra.mxu0 %v443
      %453 = vmatpush.bf16.msra.mxu0 %v442
      %454 = vmatpush.bf16.msra.mxu0 %v441
      %455 = vmatpush.bf16.msra.mxu0 %v440
      %456 = vmatpush.bf16.msra.mxu0 %v439
      %457 = vmatpush.bf16.msra.mxu0 %v438
      %458 = vmatpush.bf16.msra.mxu0 %v437
      %459 = vmatpush.bf16.msra.mxu0 %v436
      %460 = vmatmul.bf16.gmra.mxu0 %v372
      %v461 = vpop.f32.mrf.mxu0
      %v462 = vadd.f32 0.0, %v461
      %v463 = vpop.f32.mrf.mxu0
      %v464 = vadd.f32 0.0, %v463
      %465 = vmatmul.bf16.gmra.mxu0 %v373
      %v466 = vpop.f32.mrf.mxu0
      %v467 = vadd.f32 0.0, %v466
      %v468 = vpop.f32.mrf.mxu0
      %v469 = vadd.f32 0.0, %v468
      %470 = vmatmul.bf16.gmra.mxu0 %v374
      %v471 = vpop.f32.mrf.mxu0
      %v472 = vadd.f32 0.0, %v471
      %v473 = vpop.f32.mrf.mxu0
      %v474 = vadd.f32 0.0, %v473
      %475 = vmatmul.bf16.gmra.mxu0 %v375
      %v476 = vpop.f32.mrf.mxu0
      %v477 = vadd.f32 0.0, %v476
      %v478 = vpop.f32.mrf.mxu0
      %v479 = vadd.f32 0.0, %v478
      %480 = vmatmul.bf16.gmra.mxu0 %v376
      %v481 = vpop.f32.mrf.mxu0
      %v482 = vadd.f32 0.0, %v481
      %v483 = vpop.f32.mrf.mxu0
      %v484 = vadd.f32 0.0, %v483
      %485 = vmatmul.bf16.gmra.mxu0 %v377
      %v486 = vpop.f32.mrf.mxu0
      %v487 = vadd.f32 0.0, %v486
      %v488 = vpop.f32.mrf.mxu0
      %v489 = vadd.f32 0.0, %v488
      %490 = vmatmul.bf16.gmra.mxu0 %v378
      %v491 = vpop.f32.mrf.mxu0
      %v492 = vadd.f32 0.0, %v491
      %v493 = vpop.f32.mrf.mxu0
      %v494 = vadd.f32 0.0, %v493
      %495 = vmatmul.bf16.gmra.mxu0 %v379
      %v496 = vpop.f32.mrf.mxu0
      %v497 = vadd.f32 0.0, %v496
      %v498 = vpop.f32.mrf.mxu0
      %v499 = vadd.f32 0.0, %v498
      %500 = vmatmul.bf16.gmra.mxu0 %v380
      %v501 = vpop.f32.mrf.mxu0
      %v502 = vadd.f32 0.0, %v501
      %v503 = vpop.f32.mrf.mxu0
      %v504 = vadd.f32 0.0, %v503
      %505 = vmatmul.bf16.gmra.mxu0 %v381
      %v506 = vpop.f32.mrf.mxu0
      %v507 = vadd.f32 0.0, %v506
      %v508 = vpop.f32.mrf.mxu0
      %v509 = vadd.f32 0.0, %v508
      %510 = vmatmul.bf16.gmra.mxu0 %v382
      %v511 = vpop.f32.mrf.mxu0
      %v512 = vadd.f32 0.0, %v511
      %v513 = vpop.f32.mrf.mxu0
      %v514 = vadd.f32 0.0, %v513
      %515 = vmatmul.bf16.gmra.mxu0 %v383
      %v516 = vpop.f32.mrf.mxu0
      %v517 = vadd.f32 0.0, %v516
      %v518 = vpop.f32.mrf.mxu0
      %v519 = vadd.f32 0.0, %v518
      %520 = vmatmul.bf16.gmra.mxu0 %v384
      %v521 = vpop.f32.mrf.mxu0
      %v522 = vadd.f32 0.0, %v521
      %v523 = vpop.f32.mrf.mxu0
      %v524 = vadd.f32 0.0, %v523
      %525 = vmatmul.bf16.gmra.mxu0 %v385
      %v526 = vpop.f32.mrf.mxu0
      %v527 = vadd.f32 0.0, %v526
      %v528 = vpop.f32.mrf.mxu0
      %v529 = vadd.f32 0.0, %v528
      %530 = vmatmul.bf16.gmra.mxu0 %v386
      %v531 = vpop.f32.mrf.mxu0
      %v532 = vadd.f32 0.0, %v531
      %v533 = vpop.f32.mrf.mxu0
      %v534 = vadd.f32 0.0, %v533
      %535 = vmatmul.bf16.gmra.mxu0 %v387
      %v536 = vpop.f32.mrf.mxu0
      %v537 = vadd.f32 0.0, %v536
      %v538 = vpop.f32.mrf.mxu0
      %v539 = vadd.f32 0.0, %v538
      %540 = vdwg.mxu0
      %541 = vst [vmem:[%s246] sm:$0xff] %v462
      %542 = vst [vmem:[%s246 + $0x8] sm:$0xff] %v464
      %543 = vst [vmem:[%s246 + $0x10] sm:$0xff] %v467
      %544 = vst [vmem:[%s246 + $0x18] sm:$0xff] %v469
      %545 = vst [vmem:[%s246 + $0x20] sm:$0xff] %v472
      %546 = vst [vmem:[%s246 + $0x28] sm:$0xff] %v474
      %547 = vst [vmem:[%s246 + $0x30] sm:$0xff] %v477
      %548 = vst [vmem:[%s246 + $0x38] sm:$0xff] %v479
      %549 = vst [vmem:[%s246 + $0x40] sm:$0xff] %v482
      %550 = vst [vmem:[%s246 + $0x48] sm:$0xff] %v484
      %551 = vst [vmem:[%s246 + $0x50] sm:$0xff] %v487
      %552 = vst [vmem:[%s246 + $0x58] sm:$0xff] %v489
      %553 = vst [vmem:[%s246 + $0x60] sm:$0xff] %v492
      %554 = vst [vmem:[%s246 + $0x68] sm:$0xff] %v494
      %555 = vst [vmem:[%s246 + $0x70] sm:$0xff] %v497
      %556 = vst [vmem:[%s246 + $0x78] sm:$0xff] %v499
      %557 = vst [vmem:[%s246 + $0x80] sm:$0xff] %v502
      %558 = vst [vmem:[%s246 + $0x88] sm:$0xff] %v504
      %559 = vst [vmem:[%s246 + $0x90] sm:$0xff] %v507
      %560 = vst [vmem:[%s246 + $0x98] sm:$0xff] %v509
      %561 = vst [vmem:[%s246 + $0xa0] sm:$0xff] %v512
      %562 = vst [vmem:[%s246 + $0xa8] sm:$0xff] %v514
      %563 = vst [vmem:[%s246 + $0xb0] sm:$0xff] %v517
      %564 = vst [vmem:[%s246 + $0xb8] sm:$0xff] %v519
      %565 = vst [vmem:[%s246 + $0xc0] sm:$0xff] %v522
      %566 = vst [vmem:[%s246 + $0xc8] sm:$0xff] %v524
      %567 = vst [vmem:[%s246 + $0xd0] sm:$0xff] %v527
      %568 = vst [vmem:[%s246 + $0xd8] sm:$0xff] %v529
      %569 = vst [vmem:[%s246 + $0xe0] sm:$0xff] %v532
      %570 = vst [vmem:[%s246 + $0xe8] sm:$0xff] %v534
      %571 = vst [vmem:[%s246 + $0xf0] sm:$0xff] %v537
      %572 = vst [vmem:[%s246 + $0xf8] sm:$0xff] %v539
      %v573 = vld [vmem:[%s246] sm:$0xff]
      %v574 = vld [vmem:[%s246 + $0x8] sm:$0xff]
      %v575 = vld [vmem:[%s246 + $0x10] sm:$0xff]
      %v576 = vld [vmem:[%s246 + $0x18] sm:$0xff]
      %v577 = vld [vmem:[%s246 + $0x20] sm:$0xff]
      %v578 = vld [vmem:[%s246 + $0x28] sm:$0xff]
      %v579 = vld [vmem:[%s246 + $0x30] sm:$0xff]
      %v580 = vld [vmem:[%s246 + $0x38] sm:$0xff]
      %v581 = vld [vmem:[%s246 + $0x40] sm:$0xff]
      %v582 = vld [vmem:[%s246 + $0x48] sm:$0xff]
      %v583 = vld [vmem:[%s246 + $0x50] sm:$0xff]
      %v584 = vld [vmem:[%s246 + $0x58] sm:$0xff]
      %v585 = vld [vmem:[%s246 + $0x60] sm:$0xff]
      %v586 = vld [vmem:[%s246 + $0x68] sm:$0xff]
      %v587 = vld [vmem:[%s246 + $0x70] sm:$0xff]
      %v588 = vld [vmem:[%s246 + $0x78] sm:$0xff]
      %v589 = vld [vmem:[%s246 + $0x80] sm:$0xff]
      %v590 = vld [vmem:[%s246 + $0x88] sm:$0xff]
      %v591 = vld [vmem:[%s246 + $0x90] sm:$0xff]
      %v592 = vld [vmem:[%s246 + $0x98] sm:$0xff]
      %v593 = vld [vmem:[%s246 + $0xa0] sm:$0xff]
      %v594 = vld [vmem:[%s246 + $0xa8] sm:$0xff]
      %v595 = vld [vmem:[%s246 + $0xb0] sm:$0xff]
      %v596 = vld [vmem:[%s246 + $0xb8] sm:$0xff]
      %v597 = vld [vmem:[%s246 + $0xc0] sm:$0xff]
      %v598 = vld [vmem:[%s246 + $0xc8] sm:$0xff]
      %v599 = vld [vmem:[%s246 + $0xd0] sm:$0xff]
      %v600 = vld [vmem:[%s246 + $0xd8] sm:$0xff]
      %v601 = vld [vmem:[%s246 + $0xe0] sm:$0xff]
      %v602 = vld [vmem:[%s246 + $0xe8] sm:$0xff]
      %v603 = vld [vmem:[%s246 + $0xf0] sm:$0xff]
      %v604 = vld [vmem:[%s246 + $0xf8] sm:$0xff]
      %v605 = vld [vmem:[%s250] sm:$0x1]
      %v606 = vadd.f32 %v573, %v574
      %v607 = vadd.f32 %v606, %v575
      %v608 = vadd.f32 %v607, %v576
      %v609 = vadd.f32 %v608, %v577
      %v610 = vadd.f32 %v609, %v578
      %v611 = vadd.f32 %v610, %v579
      %v612 = vadd.f32 %v611, %v580
      %v613 = vadd.f32 %v612, %v581
      %v614 = vadd.f32 %v613, %v582
      %v615 = vadd.f32 %v614, %v583
      %v616 = vadd.f32 %v615, %v584
      %v617 = vadd.f32 %v616, %v585
      %v618 = vadd.f32 %v617, %v586
      %v619 = vadd.f32 %v618, %v587
      %v620 = vadd.f32 %v619, %v588
      %v621 = vadd.f32 %v620, %v589
      %v622 = vadd.f32 %v621, %v590
      %v623 = vadd.f32 %v622, %v591
      %v624 = vadd.f32 %v623, %v592
      %v625 = vadd.f32 %v624, %v593
      %v626 = vadd.f32 %v625, %v594
      %v627 = vadd.f32 %v626, %v595
      %v628 = vadd.f32 %v627, %v596
      %v629 = vadd.f32 %v628, %v597
      %v630 = vadd.f32 %v629, %v598
      %v631 = vadd.f32 %v630, %v599
      %v632 = vadd.f32 %v631, %v600
      %v633 = vadd.f32 %v632, %v601
      %v634 = vadd.f32 %v633, %v602
      %v635 = vadd.f32 %v634, %v603
      %v636 = vadd.f32 %v635, %v604
      %v637 = vrot.slane %v636, 4
      %v638 = vadd.f32 %v636, %v637
      %v639 = vrot.slane %v638, 2
      %v640 = vadd.f32 %v638, %v639
      %v641 = vrot.slane %v640, 1
      %v642 = vadd.f32 %v640, %v641
      %v643 = vadd.f32 %v605, %v642
      %644 = vst [vmem:[%s250] sm:$0x1] %v643
      %v645 = vld [vmem:[%s253] sm:$0x1]
      %v646 = vmul.f32 %v573, %v573
      %v647 = vmul.f32 %v574, %v574
      %v648 = vmul.f32 %v575, %v575
      %v649 = vmul.f32 %v576, %v576
      %v650 = vmul.f32 %v577, %v577
      %v651 = vmul.f32 %v578, %v578
      %v652 = vmul.f32 %v579, %v579
      %v653 = vmul.f32 %v580, %v580
      %v654 = vmul.f32 %v581, %v581
      %v655 = vmul.f32 %v582, %v582
      %v656 = vmul.f32 %v583, %v583
      %v657 = vmul.f32 %v584, %v584
      %v658 = vmul.f32 %v585, %v585
      %v659 = vmul.f32 %v586, %v586
      %v660 = vmul.f32 %v587, %v587
      %v661 = vmul.f32 %v588, %v588
      %v662 = vmul.f32 %v589, %v589
      %v663 = vmul.f32 %v590, %v590
      %v664 = vmul.f32 %v591, %v591
      %v665 = vmul.f32 %v592, %v592
      %v666 = vmul.f32 %v593, %v593
      %v667 = vmul.f32 %v594, %v594
      %v668 = vmul.f32 %v595, %v595
      %v669 = vmul.f32 %v596, %v596
      %v670 = vmul.f32 %v597, %v597
      %v671 = vmul.f32 %v598, %v598
      %v672 = vmul.f32 %v599, %v599
      %v673 = vmul.f32 %v600, %v600
      %v674 = vmul.f32 %v601, %v601
      %v675 = vmul.f32 %v602, %v602
      %v676 = vmul.f32 %v603, %v603
      %v677 = vmul.f32 %v604, %v604
      %v678 = vadd.f32 %v646, %v647
      %v679 = vadd.f32 %v678, %v648
      %v680 = vadd.f32 %v679, %v649
      %v681 = vadd.f32 %v680, %v650
      %v682 = vadd.f32 %v681, %v651
      %v683 = vadd.f32 %v682, %v652
      %v684 = vadd.f32 %v683, %v653
      %v685 = vadd.f32 %v684, %v654
      %v686 = vadd.f32 %v685, %v655
      %v687 = vadd.f32 %v686, %v656
      %v688 = vadd.f32 %v687, %v657
      %v689 = vadd.f32 %v688, %v658
      %v690 = vadd.f32 %v689, %v659
      %v691 = vadd.f32 %v690, %v660
      %v692 = vadd.f32 %v691, %v661
      %v693 = vadd.f32 %v692, %v662
      %v694 = vadd.f32 %v693, %v663
      %v695 = vadd.f32 %v694, %v664
      %v696 = vadd.f32 %v695, %v665
      %v697 = vadd.f32 %v696, %v666
      %v698 = vadd.f32 %v697, %v667
      %v699 = vadd.f32 %v698, %v668
      %v700 = vadd.f32 %v699, %v669
      %v701 = vadd.f32 %v700, %v670
      %v702 = vadd.f32 %v701, %v671
      %v703 = vadd.f32 %v702, %v672
      %v704 = vadd.f32 %v703, %v673
      %v705 = vadd.f32 %v704, %v674
      %v706 = vadd.f32 %v705, %v675
      %v707 = vadd.f32 %v706, %v676
      %v708 = vadd.f32 %v707, %v677
      %v709 = vrot.slane %v708, 4
      %v710 = vadd.f32 %v708, %v709
      %v711 = vrot.slane %v710, 2
      %v712 = vadd.f32 %v710, %v711
      %v713 = vrot.slane %v712, 1
      %v714 = vadd.f32 %v712, %v713
      %v715 = vadd.f32 %v645, %v714
      %716 = vst [vmem:[%s253] sm:$0x1] %v715
      %s717 = smul.u32 32, %s21
      %p718 = scmp.lt.s32.totalorder %s20, 1
      %s719 = scalar_select %p718, %s20, 1
      %p720 = scmp.lt.s32.totalorder %s717, 31
      %s721 = scalar_select %p720, %s717, 31
      %s722 = smul.addr %s719, 32
      %s723 = sadd.s32 %s721, %s722
      %s724 = smul.addr %s723, 8
      %s725 = scalar_lea.vmem %s2, %s724
      %p726 = scmp.lt.s32.totalorder %s20, 1
      %s727 = scalar_select %p726, %s20, 1
      %s728 = scalar_lea.vmem %s3, %s727
      %p729 = scmp.lt.s32.totalorder %s20, 1
      %s730 = scalar_select %p729, %s20, 1
      %s731 = scalar_lea.vmem %s4, %s730
      // Predicated region
      $region33: #{birealnet_forward.12} parent=27 // pred_check
        %p732 = pneg %p97
      $region34: #{birealnet_forward.12} parent=27 // pred_check_branch
        %734 = sbr.rel (%p732) target = $region36
      $region35: #{birealnet_forward.12} parent=27 // pred_region
        %s735 = smul.u32 32, %s21
      $region36: #{birealnet_forward.12} parent=27 // pred_fallthru
        _
      // Predicated region
      $region37: #{birealnet_forward.12} parent=27 // pred_check
        %p736 = pneg %p123
      $region38: #{birealnet_forward.12} parent=27 // pred_check_branch
        %738 = sbr.rel (%p736) target = $region40
      $region39: #{birealnet_forward.12} parent=27 // pred_region
        _
      $region40: #{birealnet_forward.12} parent=27 // pred_fallthru
        _
      // Predicated region
      $region41: #{birealnet_forward.12} parent=27 // pred_check
        %p739 = pneg %p149
      $region42: #{birealnet_forward.12} parent=27 // pred_check_branch
        %741 = sbr.rel (%p739) target = $region44
      $region43: #{birealnet_forward.12} parent=27 // pred_region
        _
      $region44: #{birealnet_forward.12} parent=27 // pred_fallthru
        _
    $region28: #{birealnet_forward.12} parent=5 // pred_fallthru
      _
    %p742 = scmp.le.s32.totalorder 2, %s11
    // Predicated region
    $region45: #{birealnet_forward.12} parent=5 // pred_check
      %p743 = pneg %p742
    $region46: #{birealnet_forward.12} parent=5 // pred_check_branch
      %745 = sbr.rel (%p743) target = $region48
    $region47: #{birealnet_forward.12} parent=5 // pred_region
      %s746 = ssub.s32 %s11, 2
      // Predicated region
      $region49: #{birealnet_forward.12} parent=47 // pred_check
        %p747 = pneg %p103
      $region50: #{birealnet_forward.12} parent=47 // pred_check_branch
        %749 = sbr.rel (%p747) target = $region52
      $region51: #{birealnet_forward.12} parent=47 // pred_region
        %s750 = smul.u32 32, %s23
        %p751 = scmp.lt.s32.totalorder %s22, 1
        %s752 = scalar_select %p751, %s22, 1
        %p753 = scmp.lt.s32.totalorder %s750, 31
        %s754 = scalar_select %p753, %s750, 31
        %s755 = smul.addr %s752, 32
        %s756 = sadd.s32 %s754, %s755
        %s757 = smul.addr %s756, 8
        %s758 = scalar_lea.vmem %s2, %s757
      $region52: #{birealnet_forward.12} parent=47 // pred_fallthru
        _
      // Predicated region
      $region53: #{birealnet_forward.12} parent=47 // pred_check
        %p759 = pneg %p129
      $region54: #{birealnet_forward.12} parent=47 // pred_check_branch
        %761 = sbr.rel (%p759) target = $region56
      $region55: #{birealnet_forward.12} parent=47 // pred_region
        %p762 = scmp.lt.s32.totalorder %s22, 1
        %s763 = scalar_select %p762, %s22, 1
        %s764 = scalar_lea.vmem %s3, %s763
      $region56: #{birealnet_forward.12} parent=47 // pred_fallthru
        _
      // Predicated region
      $region57: #{birealnet_forward.12} parent=47 // pred_check
        %p765 = pneg %p155
      $region58: #{birealnet_forward.12} parent=47 // pred_check_branch
        %767 = sbr.rel (%p765) target = $region60
      $region59: #{birealnet_forward.12} parent=47 // pred_region
        %p768 = scmp.lt.s32.totalorder %s22, 1
        %s769 = scalar_select %p768, %s22, 1
        %s770 = scalar_lea.vmem %s4, %s769
      $region60: #{birealnet_forward.12} parent=47 // pred_fallthru
        _
    $region48: #{birealnet_forward.12} parent=5 // pred_fallthru
      _
  $region6: #{birealnet_forward.12} parent=0 // loop_footer
    %s15 = sadd.s32 1, %s11
  $region7: #{birealnet_forward.12} parent=0 // loop_footer_branch
    %10 = sbr.rel target = $region3
  $region8: #{birealnet_forward.12} parent=0 // loop_exit
    _

// kernel: birealnet_forward.15
$region0: #{birealnet_forward.15}
  #allocation0 [shape = 'u32[]', space=smem, size = 0x4, offset = 0x4, fixed_abs, tag = 'smem constant byte address 0x4 - core index']
  #allocation1 [shape = 'u32[72,128]{1,0:T(1,128)}', space=vmem, size = 0x9000, scoped, tag = 'internal scratch']
  %s0 = inlined_call_operand.vmem [shape: f32[512,128], index: 0, kind: input, shape index: {}]
  %s1 = inlined_call_operand.vmem [shape: f32[1,128], index: 1, kind: input, shape index: {}]
  %s2 = inlined_call_operand.vmem [shape: f32[1,128], index: 2, kind: input, shape index: {}]
  %s3 = inlined_call_operand.vmem [shape: f32[512,128], index: 3, kind: input, shape index: {}]
  %s4 = inlined_call_operand.vmem [shape: f32[512,128], index: 4, kind: output, shape index: {}]
  %s5 = sld [smem:[#allocation0]]
  $region26: #{birealnet_forward.15} parent=0
    _
  %s7 = ssub.s32 1, %s5
  %s8 = scalar_select 0, %s7, %s5
  // Predicated region
  $region2: #{birealnet_forward.15} parent=0 // pred_check
    _
  $region3: #{birealnet_forward.15} parent=0 // pred_check_branch
    %10 = sbr.rel (0) target = $region5
  $region4: #{birealnet_forward.15} parent=0 // pred_region
    _
  $region5: #{birealnet_forward.15} parent=0 // pred_fallthru
    _
  // Predicated region
  $region6: #{birealnet_forward.15} parent=0 // pred_check
    _
  $region7: #{birealnet_forward.15} parent=0 // pred_check_branch
    %12 = sbr.rel (0) target = $region9
  $region8: #{birealnet_forward.15} parent=0 // pred_region
    _
  $region9: #{birealnet_forward.15} parent=0 // pred_fallthru
    _
  // Predicated region
  $region10: #{birealnet_forward.15} parent=0 // pred_check
    _
  $region11: #{birealnet_forward.15} parent=0 // pred_check_branch
    %14 = sbr.rel (0) target = $region13
  $region12: #{birealnet_forward.15} parent=0 // pred_region
    _
  $region13: #{birealnet_forward.15} parent=0 // pred_fallthru
    _
  // Predicated region
  $region14: #{birealnet_forward.15} parent=0 // pred_check
    _
  $region15: #{birealnet_forward.15} parent=0 // pred_check_branch
    %16 = sbr.rel (0) target = $region17
  $region16: #{birealnet_forward.15} parent=0 // pred_region
    _
  $region17: #{birealnet_forward.15} parent=0 // pred_fallthru
    _
  %v17 = vld [vmem:[%s0] sm:$0xff]
  %v18 = vld [vmem:[%s0 + $0x8] sm:$0xff]
  %v19 = vld [vmem:[%s0 + $0x10] sm:$0xff]
  %v20 = vld [vmem:[%s0 + $0x18] sm:$0xff]
  %v21 = vld [vmem:[%s0 + $0x20] sm:$0xff]
  %v22 = vld [vmem:[%s0 + $0x28] sm:$0xff]
  %v23 = vld [vmem:[%s0 + $0x30] sm:$0xff]
  %v24 = vld [vmem:[%s0 + $0x38] sm:$0xff]
  %v25 = vld [vmem:[%s0 + $0x40] sm:$0xff]
  %v26 = vld [vmem:[%s0 + $0x48] sm:$0xff]
  %v27 = vld [vmem:[%s0 + $0x50] sm:$0xff]
  %v28 = vld [vmem:[%s0 + $0x58] sm:$0xff]
  %v29 = vld [vmem:[%s0 + $0x60] sm:$0xff]
  %v30 = vld [vmem:[%s0 + $0x68] sm:$0xff]
  %v31 = vld [vmem:[%s0 + $0x70] sm:$0xff]
  %v32 = vld [vmem:[%s0 + $0x78] sm:$0xff]
  %v33 = vld [vmem:[%s0 + $0x80] sm:$0xff]
  %v34 = vld [vmem:[%s0 + $0x88] sm:$0xff]
  %v35 = vld [vmem:[%s0 + $0x90] sm:$0xff]
  %v36 = vld [vmem:[%s0 + $0x98] sm:$0xff]
  %v37 = vld [vmem:[%s0 + $0xa0] sm:$0xff]
  %v38 = vld [vmem:[%s0 + $0xa8] sm:$0xff]
  %v39 = vld [vmem:[%s0 + $0xb0] sm:$0xff]
  %v40 = vld [vmem:[%s0 + $0xb8] sm:$0xff]
  %v41 = vld [vmem:[%s0 + $0xc0] sm:$0xff]
  %v42 = vld [vmem:[%s0 + $0xc8] sm:$0xff]
  %v43 = vld [vmem:[%s0 + $0xd0] sm:$0xff]
  %v44 = vld [vmem:[%s0 + $0xd8] sm:$0xff]
  %v45 = vld [vmem:[%s0 + $0xe0] sm:$0xff]
  %v46 = vld [vmem:[%s0 + $0xe8] sm:$0xff]
  %v47 = vld [vmem:[%s0 + $0xf0] sm:$0xff]
  %v48 = vld [vmem:[%s0 + $0xf8] sm:$0xff]
  %v49 = vld [vmem:[%s0 + $0x100] sm:$0xff]
  %v50 = vld [vmem:[%s0 + $0x108] sm:$0xff]
  %v51 = vld [vmem:[%s0 + $0x110] sm:$0xff]
  %v52 = vld [vmem:[%s0 + $0x118] sm:$0xff]
  %v53 = vld [vmem:[%s0 + $0x120] sm:$0xff]
  %v54 = vld [vmem:[%s0 + $0x128] sm:$0xff]
  %v55 = vld [vmem:[%s0 + $0x130] sm:$0xff]
  %v56 = vld [vmem:[%s0 + $0x138] sm:$0xff]
  %v57 = vld [vmem:[%s0 + $0x140] sm:$0xff]
  %v58 = vld [vmem:[%s0 + $0x148] sm:$0xff]
  %v59 = vld [vmem:[%s0 + $0x150] sm:$0xff]
  %v60 = vld [vmem:[%s0 + $0x158] sm:$0xff]
  %v61 = vld [vmem:[%s0 + $0x160] sm:$0xff]
  %v62 = vld [vmem:[%s0 + $0x168] sm:$0xff]
  %v63 = vld [vmem:[%s0 + $0x170] sm:$0xff]
  %v64 = vld [vmem:[%s0 + $0x178] sm:$0xff]
  %v65 = vld [vmem:[%s0 + $0x180] sm:$0xff]
  %v66 = vld [vmem:[%s0 + $0x188] sm:$0xff]
  %v67 = vld [vmem:[%s0 + $0x190] sm:$0xff]
  %v68 = vld [vmem:[%s0 + $0x198] sm:$0xff]
  %v69 = vld [vmem:[%s0 + $0x1a0] sm:$0xff]
  %v70 = vld [vmem:[%s0 + $0x1a8] sm:$0xff]
  %v71 = vld [vmem:[%s0 + $0x1b0] sm:$0xff]
  %v72 = vld [vmem:[%s0 + $0x1b8] sm:$0xff]
  %v73 = vld [vmem:[%s0 + $0x1c0] sm:$0xff]
  %v74 = vld [vmem:[%s0 + $0x1c8] sm:$0xff]
  %v75 = vld [vmem:[%s0 + $0x1d0] sm:$0xff]
  %v76 = vld [vmem:[%s0 + $0x1d8] sm:$0xff]
  %v77 = vld [vmem:[%s0 + $0x1e0] sm:$0xff]
  %v78 = vld [vmem:[%s0 + $0x1e8] sm:$0xff]
  %v79 = vld [vmem:[%s0 + $0x1f0] sm:$0xff]
  %v80 = vld [vmem:[%s0 + $0x1f8] sm:$0xff]
  %v81 = vld [vmem:[%s1] sm:$0x1]
  %v83 = vperm.slane %v81, 0
  %v85 = vmul.f32 %v17, %v83
  %v86 = vmul.f32 %v18, %v83
  %v87 = vmul.f32 %v19, %v83
  %v88 = vmul.f32 %v20, %v83
  %v89 = vmul.f32 %v21, %v83
  %v90 = vmul.f32 %v22, %v83
  %v91 = vmul.f32 %v23, %v83
  %v92 = vmul.f32 %v24, %v83
  %v93 = vmul.f32 %v25, %v83
  %v94 = vmul.f32 %v26, %v83
  %v95 = vmul.f32 %v27, %v83
  %v96 = vmul.f32 %v28, %v83
  %v97 = vmul.f32 %v29, %v83
  %v98 = vmul.f32 %v30, %v83
  %v99 = vmul.f32 %v31, %v83
  %v100 = vmul.f32 %v32, %v83
  %v101 = vmul.f32 %v33, %v83
  %v102 = vmul.f32 %v34, %v83
  %v103 = vmul.f32 %v35, %v83
  %v104 = vmul.f32 %v36, %v83
  %v105 = vmul.f32 %v37, %v83
  %v106 = vmul.f32 %v38, %v83
  %v107 = vmul.f32 %v39, %v83
  %v108 = vmul.f32 %v40, %v83
  %v109 = vmul.f32 %v41, %v83
  %v110 = vmul.f32 %v42, %v83
  %v111 = vmul.f32 %v43, %v83
  %v112 = vmul.f32 %v44, %v83
  %v113 = vmul.f32 %v45, %v83
  %v114 = vmul.f32 %v46, %v83
  %v115 = vmul.f32 %v47, %v83
  %v116 = vmul.f32 %v48, %v83
  %v117 = vmul.f32 %v49, %v83
  %v118 = vmul.f32 %v50, %v83
  %v119 = vmul.f32 %v51, %v83
  %v120 = vmul.f32 %v52, %v83
  %v121 = vmul.f32 %v53, %v83
  %v122 = vmul.f32 %v54, %v83
  %v123 = vmul.f32 %v55, %v83
  %v124 = vmul.f32 %v56, %v83
  %v125 = vmul.f32 %v57, %v83
  %v126 = vmul.f32 %v58, %v83
  %v127 = vmul.f32 %v59, %v83
  %v128 = vmul.f32 %v60, %v83
  %v129 = vmul.f32 %v61, %v83
  %v130 = vmul.f32 %v62, %v83
  %v131 = vmul.f32 %v63, %v83
  %v132 = vmul.f32 %v64, %v83
  %v133 = vmul.f32 %v65, %v83
  %v134 = vmul.f32 %v66, %v83
  %v135 = vmul.f32 %v67, %v83
  %v136 = vmul.f32 %v68, %v83
  %v137 = vmul.f32 %v69, %v83
  %v138 = vmul.f32 %v70, %v83
  %v139 = vmul.f32 %v71, %v83
  %v140 = vmul.f32 %v72, %v83
  %v141 = vmul.f32 %v73, %v83
  %v142 = vmul.f32 %v74, %v83
  %v143 = vmul.f32 %v75, %v83
  %v144 = vmul.f32 %v76, %v83
  %v145 = vmul.f32 %v77, %v83
  %v146 = vmul.f32 %v78, %v83
  %v147 = vmul.f32 %v79, %v83
  %v148 = vmul.f32 %v80, %v83
  %v149 = vld [vmem:[%s2] sm:$0x1]
  %v151 = vperm.slane %v149, 0
  %v153 = vadd.f32 %v85, %v151
  %v154 = vadd.f32 %v86, %v151
  %v155 = vadd.f32 %v87, %v151
  %v156 = vadd.f32 %v88, %v151
  %v157 = vadd.f32 %v89, %v151
  %v158 = vadd.f32 %v90, %v151
  %v159 = vadd.f32 %v91, %v151
  %v160 = vadd.f32 %v92, %v151
  %v161 = vadd.f32 %v93, %v151
  %v162 = vadd.f32 %v94, %v151
  %v163 = vadd.f32 %v95, %v151
  %v164 = vadd.f32 %v96, %v151
  %v165 = vadd.f32 %v97, %v151
  %v166 = vadd.f32 %v98, %v151
  %v167 = vadd.f32 %v99, %v151
  %v168 = vadd.f32 %v100, %v151
  %v169 = vadd.f32 %v101, %v151
  %v170 = vadd.f32 %v102, %v151
  %v171 = vadd.f32 %v103, %v151
  %v172 = vadd.f32 %v104, %v151
  %v173 = vadd.f32 %v105, %v151
  %v174 = vadd.f32 %v106, %v151
  %v175 = vadd.f32 %v107, %v151
  %v176 = vadd.f32 %v108, %v151
  %v177 = vadd.f32 %v109, %v151
  %v178 = vadd.f32 %v110, %v151
  %v179 = vadd.f32 %v111, %v151
  %v180 = vadd.f32 %v112, %v151
  %v181 = vadd.f32 %v113, %v151
  %v182 = vadd.f32 %v114, %v151
  %v183 = vadd.f32 %v115, %v151
  %v184 = vadd.f32 %v116, %v151
  %v185 = vadd.f32 %v117, %v151
  %v186 = vadd.f32 %v118, %v151
  %v187 = vadd.f32 %v119, %v151
  %v188 = vadd.f32 %v120, %v151
  %v189 = vadd.f32 %v121, %v151
  %v190 = vadd.f32 %v122, %v151
  %v191 = vadd.f32 %v123, %v151
  %v192 = vadd.f32 %v124, %v151
  %v193 = vadd.f32 %v125, %v151
  %v194 = vadd.f32 %v126, %v151
  %v195 = vadd.f32 %v127, %v151
  %v196 = vadd.f32 %v128, %v151
  %v197 = vadd.f32 %v129, %v151
  %v198 = vadd.f32 %v130, %v151
  %v199 = vadd.f32 %v131, %v151
  %v200 = vadd.f32 %v132, %v151
  %v201 = vadd.f32 %v133, %v151
  %v202 = vadd.f32 %v134, %v151
  %v203 = vadd.f32 %v135, %v151
  %v204 = vadd.f32 %v136, %v151
  %v205 = vadd.f32 %v137, %v151
  %v206 = vadd.f32 %v138, %v151
  %v207 = vadd.f32 %v139, %v151
  %v208 = vadd.f32 %v140, %v151
  %v209 = vadd.f32 %v141, %v151
  %v210 = vadd.f32 %v142, %v151
  %v211 = vadd.f32 %v143, %v151
  %v212 = vadd.f32 %v144, %v151
  %v213 = vadd.f32 %v145, %v151
  %v214 = vadd.f32 %v146, %v151
  %v215 = vadd.f32 %v147, %v151
  %v216 = vadd.f32 %v148, %v151
  %v217 = vld [vmem:[%s3] sm:$0xff]
  %v218 = vld [vmem:[%s3 + $0x8] sm:$0xff]
  %v219 = vld [vmem:[%s3 + $0x10] sm:$0xff]
  %v220 = vld [vmem:[%s3 + $0x18] sm:$0xff]
  %v221 = vld [vmem:[%s3 + $0x20] sm:$0xff]
  %v222 = vld [vmem:[%s3 + $0x28] sm:$0xff]
  %v223 = vld [vmem:[%s3 + $0x30] sm:$0xff]
  %v224 = vld [vmem:[%s3 + $0x38] sm:$0xff]
  %v225 = vld [vmem:[%s3 + $0x40] sm:$0xff]
  %v226 = vld [vmem:[%s3 + $0x48] sm:$0xff]
  %v227 = vld [vmem:[%s3 + $0x50] sm:$0xff]
  %v228 = vld [vmem:[%s3 + $0x58] sm:$0xff]
  %v229 = vld [vmem:[%s3 + $0x60] sm:$0xff]
  %v230 = vld [vmem:[%s3 + $0x68] sm:$0xff]
  %v231 = vld [vmem:[%s3 + $0x70] sm:$0xff]
  %v232 = vld [vmem:[%s3 + $0x78] sm:$0xff]
  %v233 = vld [vmem:[%s3 + $0x80] sm:$0xff]
  %v234 = vld [vmem:[%s3 + $0x88] sm:$0xff]
  %v235 = vld [vmem:[%s3 + $0x90] sm:$0xff]
  %v236 = vld [vmem:[%s3 + $0x98] sm:$0xff]
  %v237 = vld [vmem:[%s3 + $0xa0] sm:$0xff]
  %v238 = vld [vmem:[%s3 + $0xa8] sm:$0xff]
  %v239 = vld [vmem:[%s3 + $0xb0] sm:$0xff]
  %v240 = vld [vmem:[%s3 + $0xb8] sm:$0xff]
  %v241 = vld [vmem:[%s3 + $0xc0] sm:$0xff]
  %v242 = vld [vmem:[%s3 + $0xc8] sm:$0xff]
  %v243 = vld [vmem:[%s3 + $0xd0] sm:$0xff]
  %v244 = vld [vmem:[%s3 + $0xd8] sm:$0xff]
  %v245 = vld [vmem:[%s3 + $0xe0] sm:$0xff]
  %v246 = vld [vmem:[%s3 + $0xe8] sm:$0xff]
  %v247 = vld [vmem:[%s3 + $0xf0] sm:$0xff]
  %v248 = vld [vmem:[%s3 + $0xf8] sm:$0xff]
  %v249 = vld [vmem:[%s3 + $0x100] sm:$0xff]
  %v250 = vld [vmem:[%s3 + $0x108] sm:$0xff]
  %v251 = vld [vmem:[%s3 + $0x110] sm:$0xff]
  %v252 = vld [vmem:[%s3 + $0x118] sm:$0xff]
  %v253 = vld [vmem:[%s3 + $0x120] sm:$0xff]
  %v254 = vld [vmem:[%s3 + $0x128] sm:$0xff]
  %v255 = vld [vmem:[%s3 + $0x130] sm:$0xff]
  %v256 = vld [vmem:[%s3 + $0x138] sm:$0xff]
  %v257 = vld [vmem:[%s3 + $0x140] sm:$0xff]
  %v258 = vld [vmem:[%s3 + $0x148] sm:$0xff]
  %v259 = vld [vmem:[%s3 + $0x150] sm:$0xff]
  %v260 = vld [vmem:[%s3 + $0x158] sm:$0xff]
  %v261 = vld [vmem:[%s3 + $0x160] sm:$0xff]
  %v262 = vld [vmem:[%s3 + $0x168] sm:$0xff]
  %v263 = vld [vmem:[%s3 + $0x170] sm:$0xff]
  %v264 = vld [vmem:[%s3 + $0x178] sm:$0xff]
  %v265 = vld [vmem:[%s3 + $0x180] sm:$0xff]
  %v266 = vld [vmem:[%s3 + $0x188] sm:$0xff]
  %v267 = vld [vmem:[%s3 + $0x190] sm:$0xff]
  %v268 = vld [vmem:[%s3 + $0x198] sm:$0xff]
  %v269 = vld [vmem:[%s3 + $0x1a0] sm:$0xff]
  %v270 = vld [vmem:[%s3 + $0x1a8] sm:$0xff]
  %v271 = vld [vmem:[%s3 + $0x1b0] sm:$0xff]
  %v272 = vld [vmem:[%s3 + $0x1b8] sm:$0xff]
  %v273 = vld [vmem:[%s3 + $0x1c0] sm:$0xff]
  %v274 = vld [vmem:[%s3 + $0x1c8] sm:$0xff]
  %v275 = vld [vmem:[%s3 + $0x1d0] sm:$0xff]
  %v276 = vld [vmem:[%s3 + $0x1d8] sm:$0xff]
  %v277 = vld [vmem:[%s3 + $0x1e0] sm:$0xff]
  %v278 = vld [vmem:[%s3 + $0x1e8] sm:$0xff]
  %v279 = vld [vmem:[%s3 + $0x1f0] sm:$0xff]
  %v280 = vld [vmem:[%s3 + $0x1f8] sm:$0xff]
  %v281 = vadd.f32 %v153, %v217
  %v282 = vadd.f32 %v154, %v218
  %v283 = vadd.f32 %v155, %v219
  %v284 = vadd.f32 %v156, %v220
  %v285 = vadd.f32 %v157, %v221
  %v286 = vadd.f32 %v158, %v222
  %v287 = vadd.f32 %v159, %v223
  %v288 = vadd.f32 %v160, %v224
  %v289 = vadd.f32 %v161, %v225
  %v290 = vadd.f32 %v162, %v226
  %v291 = vadd.f32 %v163, %v227
  %v292 = vadd.f32 %v164, %v228
  %v293 = vadd.f32 %v165, %v229
  %v294 = vadd.f32 %v166, %v230
  %v295 = vadd.f32 %v167, %v231
  %v296 = vadd.f32 %v168, %v232
  %v297 = vadd.f32 %v169, %v233
  %v298 = vadd.f32 %v170, %v234
  %v299 = vadd.f32 %v171, %v235
  %v300 = vadd.f32 %v172, %v236
  %v301 = vadd.f32 %v173, %v237
  %v302 = vadd.f32 %v174, %v238
  %v303 = vadd.f32 %v175, %v239
  %v304 = vadd.f32 %v176, %v240
  %v305 = vadd.f32 %v177, %v241
  %v306 = vadd.f32 %v178, %v242
  %v307 = vadd.f32 %v179, %v243
  %v308 = vadd.f32 %v180, %v244
  %v309 = vadd.f32 %v181, %v245
  %v310 = vadd.f32 %v182, %v246
  %v311 = vadd.f32 %v183, %v247
  %v312 = vadd.f32 %v184, %v248
  %v313 = vadd.f32 %v185, %v249
  %v314 = vadd.f32 %v186, %v250
  %v315 = vadd.f32 %v187, %v251
  %v316 = vadd.f32 %v188, %v252
  %v317 = vadd.f32 %v189, %v253
  %v318 = vadd.f32 %v190, %v254
  %v319 = vadd.f32 %v191, %v255
  %v320 = vadd.f32 %v192, %v256
  %v321 = vadd.f32 %v193, %v257
  %v322 = vadd.f32 %v194, %v258
  %v323 = vadd.f32 %v195, %v259
  %v324 = vadd.f32 %v196, %v260
  %v325 = vadd.f32 %v197, %v261
  %v326 = vadd.f32 %v198, %v262
  %v327 = vadd.f32 %v199, %v263
  %v328 = vadd.f32 %v200, %v264
  %v329 = vadd.f32 %v201, %v265
  %v330 = vadd.f32 %v202, %v266
  %v331 = vadd.f32 %v203, %v267
  %v332 = vadd.f32 %v204, %v268
  %v333 = vadd.f32 %v205, %v269
  %v334 = vadd.f32 %v206, %v270
  %v335 = vadd.f32 %v207, %v271
  %v336 = vadd.f32 %v208, %v272
  %v337 = vadd.f32 %v209, %v273
  %v338 = vadd.f32 %v210, %v274
  %v339 = vadd.f32 %v211, %v275
  %v340 = vadd.f32 %v212, %v276
  %v341 = vadd.f32 %v213, %v277
  %v342 = vadd.f32 %v214, %v278
  %v343 = vadd.f32 %v215, %v279
  %v344 = vadd.f32 %v216, %v280
  %345 = vst [vmem:[%s4] sm:$0xff] %v281
  %346 = vst [vmem:[%s4 + $0x8] sm:$0xff] %v282
  %347 = vst [vmem:[%s4 + $0x10] sm:$0xff] %v283
  %348 = vst [vmem:[%s4 + $0x18] sm:$0xff] %v284
  %349 = vst [vmem:[%s4 + $0x20] sm:$0xff] %v285
  %350 = vst [vmem:[%s4 + $0x28] sm:$0xff] %v286
  %351 = vst [vmem:[%s4 + $0x30] sm:$0xff] %v287
  %352 = vst [vmem:[%s4 + $0x38] sm:$0xff] %v288
  %353 = vst [vmem:[%s4 + $0x40] sm:$0xff] %v289
  %354 = vst [vmem:[%s4 + $0x48] sm:$0xff] %v290
  %355 = vst [vmem:[%s4 + $0x50] sm:$0xff] %v291
  %356 = vst [vmem:[%s4 + $0x58] sm:$0xff] %v292
  %357 = vst [vmem:[%s4 + $0x60] sm:$0xff] %v293
  %358 = vst [vmem:[%s4 + $0x68] sm:$0xff] %v294
  %359 = vst [vmem:[%s4 + $0x70] sm:$0xff] %v295
  %360 = vst [vmem:[%s4 + $0x78] sm:$0xff] %v296
  %361 = vst [vmem:[%s4 + $0x80] sm:$0xff] %v297
  %362 = vst [vmem:[%s4 + $0x88] sm:$0xff] %v298
  %363 = vst [vmem:[%s4 + $0x90] sm:$0xff] %v299
  %364 = vst [vmem:[%s4 + $0x98] sm:$0xff] %v300
  %365 = vst [vmem:[%s4 + $0xa0] sm:$0xff] %v301
  %366 = vst [vmem:[%s4 + $0xa8] sm:$0xff] %v302
  %367 = vst [vmem:[%s4 + $0xb0] sm:$0xff] %v303
  %368 = vst [vmem:[%s4 + $0xb8] sm:$0xff] %v304
  %369 = vst [vmem:[%s4 + $0xc0] sm:$0xff] %v305
  %370 = vst [vmem:[%s4 + $0xc8] sm:$0xff] %v306
  %371 = vst [vmem:[%s4 + $0xd0] sm:$0xff] %v307
  %372 = vst [vmem:[%s4 + $0xd8] sm:$0xff] %v308
  %373 = vst [vmem:[%s4 + $0xe0] sm:$0xff] %v309
  %374 = vst [vmem:[%s4 + $0xe8] sm:$0xff] %v310
  %375 = vst [vmem:[%s4 + $0xf0] sm:$0xff] %v311
  %376 = vst [vmem:[%s4 + $0xf8] sm:$0xff] %v312
  %377 = vst [vmem:[%s4 + $0x100] sm:$0xff] %v313
  %378 = vst [vmem:[%s4 + $0x108] sm:$0xff] %v314
  %379 = vst [vmem:[%s4 + $0x110] sm:$0xff] %v315
  %380 = vst [vmem:[%s4 + $0x118] sm:$0xff] %v316
  %381 = vst [vmem:[%s4 + $0x120] sm:$0xff] %v317
  %382 = vst [vmem:[%s4 + $0x128] sm:$0xff] %v318
  %383 = vst [vmem:[%s4 + $0x130] sm:$0xff] %v319
  %384 = vst [vmem:[%s4 + $0x138] sm:$0xff] %v320
  %385 = vst [vmem:[%s4 + $0x140] sm:$0xff] %v321
  %386 = vst [vmem:[%s4 + $0x148] sm:$0xff] %v322
  %387 = vst [vmem:[%s4 + $0x150] sm:$0xff] %v323
  %388 = vst [vmem:[%s4 + $0x158] sm:$0xff] %v324
  %389 = vst [vmem:[%s4 + $0x160] sm:$0xff] %v325
  %390 = vst [vmem:[%s4 + $0x168] sm:$0xff] %v326
  %391 = vst [vmem:[%s4 + $0x170] sm:$0xff] %v327
  %392 = vst [vmem:[%s4 + $0x178] sm:$0xff] %v328
  %393 = vst [vmem:[%s4 + $0x180] sm:$0xff] %v329
  %394 = vst [vmem:[%s4 + $0x188] sm:$0xff] %v330
  %395 = vst [vmem:[%s4 + $0x190] sm:$0xff] %v331
  %396 = vst [vmem:[%s4 + $0x198] sm:$0xff] %v332
  %397 = vst [vmem:[%s4 + $0x1a0] sm:$0xff] %v333
  %398 = vst [vmem:[%s4 + $0x1a8] sm:$0xff] %v334
  %399 = vst [vmem:[%s4 + $0x1b0] sm:$0xff] %v335
  %400 = vst [vmem:[%s4 + $0x1b8] sm:$0xff] %v336
  %401 = vst [vmem:[%s4 + $0x1c0] sm:$0xff] %v337
  %402 = vst [vmem:[%s4 + $0x1c8] sm:$0xff] %v338
  %403 = vst [vmem:[%s4 + $0x1d0] sm:$0xff] %v339
  %404 = vst [vmem:[%s4 + $0x1d8] sm:$0xff] %v340
  %405 = vst [vmem:[%s4 + $0x1e0] sm:$0xff] %v341
  %406 = vst [vmem:[%s4 + $0x1e8] sm:$0xff] %v342
  %407 = vst [vmem:[%s4 + $0x1f0] sm:$0xff] %v343
  %408 = vst [vmem:[%s4 + $0x1f8] sm:$0xff] %v344
  // Predicated region
  $region18: #{birealnet_forward.15} parent=0 // pred_check
    _
  $region19: #{birealnet_forward.15} parent=0 // pred_check_branch
    %410 = sbr.rel (0) target = $region21
  $region20: #{birealnet_forward.15} parent=0 // pred_region
    _
  $region21: #{birealnet_forward.15} parent=0 // pred_fallthru
    _
  // Predicated region
  $region22: #{birealnet_forward.15} parent=0 // pred_check
    _
  $region23: #{birealnet_forward.15} parent=0 // pred_check_branch
    %412 = sbr.rel (0) target = $region25
  $region24: #{birealnet_forward.15} parent=0 // pred_region
    _
  $region25: #{birealnet_forward.15} parent=0 // pred_fallthru
    _

// kernel: birealnet_forward.18
$region0: #{birealnet_forward.18}
  #allocation0 [shape = 'u32[]', space=smem, size = 0x4, offset = 0x4, fixed_abs, tag = 'smem constant byte address 0x4 - core index']
  #allocation1 [shape = 'u32[72,128]{1,0:T(1,128)}', space=vmem, size = 0x9000, scoped, tag = 'internal scratch']
  %s0 = inlined_call_operand.vmem [shape: f32[128,128], index: 0, kind: input, shape index: {}]
  %s1 = inlined_call_operand.vmem [shape: f32[1,128], index: 1, kind: input, shape index: {}]
  %s2 = inlined_call_operand.vmem [shape: f32[1,128], index: 2, kind: input, shape index: {}]
  %s3 = inlined_call_operand.vmem [shape: f32[128,128], index: 3, kind: output, shape index: {}]
  %s4 = sld [smem:[#allocation0]]
  $region22: #{birealnet_forward.18} parent=0
    _
  %s6 = ssub.s32 1, %s4
  %s7 = scalar_select 0, %s6, %s4
  // Predicated region
  $region2: #{birealnet_forward.18} parent=0 // pred_check
    _
  $region3: #{birealnet_forward.18} parent=0 // pred_check_branch
    %9 = sbr.rel (0) target = $region5
  $region4: #{birealnet_forward.18} parent=0 // pred_region
    _
  $region5: #{birealnet_forward.18} parent=0 // pred_fallthru
    _
  // Predicated region
  $region6: #{birealnet_forward.18} parent=0 // pred_check
    _
  $region7: #{birealnet_forward.18} parent=0 // pred_check_branch
    %11 = sbr.rel (0) target = $region9
  $region8: #{birealnet_forward.18} parent=0 // pred_region
    _
  $region9: #{birealnet_forward.18} parent=0 // pred_fallthru
    _
  // Predicated region
  $region10: #{birealnet_forward.18} parent=0 // pred_check
    _
  $region11: #{birealnet_forward.18} parent=0 // pred_check_branch
    %13 = sbr.rel (0) target = $region13
  $region12: #{birealnet_forward.18} parent=0 // pred_region
    _
  $region13: #{birealnet_forward.18} parent=0 // pred_fallthru
    _
  %v14 = vld [vmem:[%s0] sm:$0xff]
  %v15 = vld [vmem:[%s0 + $0x8] sm:$0xff]
  %v16 = vld [vmem:[%s0 + $0x10] sm:$0xff]
  %v17 = vld [vmem:[%s0 + $0x18] sm:$0xff]
  %v18 = vld [vmem:[%s0 + $0x20] sm:$0xff]
  %v19 = vld [vmem:[%s0 + $0x28] sm:$0xff]
  %v20 = vld [vmem:[%s0 + $0x30] sm:$0xff]
  %v21 = vld [vmem:[%s0 + $0x38] sm:$0xff]
  %v22 = vld [vmem:[%s0 + $0x40] sm:$0xff]
  %v23 = vld [vmem:[%s0 + $0x48] sm:$0xff]
  %v24 = vld [vmem:[%s0 + $0x50] sm:$0xff]
  %v25 = vld [vmem:[%s0 + $0x58] sm:$0xff]
  %v26 = vld [vmem:[%s0 + $0x60] sm:$0xff]
  %v27 = vld [vmem:[%s0 + $0x68] sm:$0xff]
  %v28 = vld [vmem:[%s0 + $0x70] sm:$0xff]
  %v29 = vld [vmem:[%s0 + $0x78] sm:$0xff]
  %v30 = vld [vmem:[%s1] sm:$0x1]
  %v32 = vperm.slane %v30, 0
  %v34 = vmul.f32 %v14, %v32
  %v35 = vmul.f32 %v15, %v32
  %v36 = vmul.f32 %v16, %v32
  %v37 = vmul.f32 %v17, %v32
  %v38 = vmul.f32 %v18, %v32
  %v39 = vmul.f32 %v19, %v32
  %v40 = vmul.f32 %v20, %v32
  %v41 = vmul.f32 %v21, %v32
  %v42 = vmul.f32 %v22, %v32
  %v43 = vmul.f32 %v23, %v32
  %v44 = vmul.f32 %v24, %v32
  %v45 = vmul.f32 %v25, %v32
  %v46 = vmul.f32 %v26, %v32
  %v47 = vmul.f32 %v27, %v32
  %v48 = vmul.f32 %v28, %v32
  %v49 = vmul.f32 %v29, %v32
  %v50 = vld [vmem:[%s2] sm:$0x1]
  %v52 = vperm.slane %v50, 0
  %v54 = vadd.f32 %v34, %v52
  %v55 = vadd.f32 %v35, %v52
  %v56 = vadd.f32 %v36, %v52
  %v57 = vadd.f32 %v37, %v52
  %v58 = vadd.f32 %v38, %v52
  %v59 = vadd.f32 %v39, %v52
  %v60 = vadd.f32 %v40, %v52
  %v61 = vadd.f32 %v41, %v52
  %v62 = vadd.f32 %v42, %v52
  %v63 = vadd.f32 %v43, %v52
  %v64 = vadd.f32 %v44, %v52
  %v65 = vadd.f32 %v45, %v52
  %v66 = vadd.f32 %v46, %v52
  %v67 = vadd.f32 %v47, %v52
  %v68 = vadd.f32 %v48, %v52
  %v69 = vadd.f32 %v49, %v52
  %70 = vst [vmem:[%s3] sm:$0xff] %v54
  %71 = vst [vmem:[%s3 + $0x8] sm:$0xff] %v55
  %72 = vst [vmem:[%s3 + $0x10] sm:$0xff] %v56
  %73 = vst [vmem:[%s3 + $0x18] sm:$0xff] %v57
  %74 = vst [vmem:[%s3 + $0x20] sm:$0xff] %v58
  %75 = vst [vmem:[%s3 + $0x28] sm:$0xff] %v59
  %76 = vst [vmem:[%s3 + $0x30] sm:$0xff] %v60
  %77 = vst [vmem:[%s3 + $0x38] sm:$0xff] %v61
  %78 = vst [vmem:[%s3 + $0x40] sm:$0xff] %v62
  %79 = vst [vmem:[%s3 + $0x48] sm:$0xff] %v63
  %80 = vst [vmem:[%s3 + $0x50] sm:$0xff] %v64
  %81 = vst [vmem:[%s3 + $0x58] sm:$0xff] %v65
  %82 = vst [vmem:[%s3 + $0x60] sm:$0xff] %v66
  %83 = vst [vmem:[%s3 + $0x68] sm:$0xff] %v67
  %84 = vst [vmem:[%s3 + $0x70] sm:$0xff] %v68
  %85 = vst [vmem:[%s3 + $0x78] sm:$0xff] %v69
  // Predicated region
  $region14: #{birealnet_forward.18} parent=0 // pred_check
    _
  $region15: #{birealnet_forward.18} parent=0 // pred_check_branch
    %87 = sbr.rel (0) target = $region17
  $region16: #{birealnet_forward.18} parent=0 // pred_region
    _
  $region17: #{birealnet_forward.18} parent=0 // pred_fallthru
    _
  // Predicated region
  $region18: #{birealnet_forward.18} parent=0 // pred_check
    _
  $region19: #{birealnet_forward.18} parent=0 // pred_check_branch
    %89 = sbr.rel (0) target = $region21
  $region20: #{birealnet_forward.18} parent=0 // pred_region
    _
  $region21: #{birealnet_forward.18} parent=0 // pred_fallthru
    _

// kernel: birealnet_forward.17
$region0: #{birealnet_forward.17}
  #allocation0 [shape = 'u32[]', space=smem, size = 0x4, offset = 0x4, fixed_abs, tag = 'smem constant byte address 0x4 - core index']
  #allocation1 [shape = 'u32[72,128]{1,0:T(1,128)}', space=vmem, size = 0x9000, scoped, tag = 'internal scratch']
  %s0 = inlined_call_operand.vmem [shape: bf16[2,64,128], index: 0, kind: input, shape index: {}]
  %s1 = inlined_call_operand.vmem [shape: bf16[1,128,128], index: 1, kind: input, shape index: {}]
  %s2 = inlined_call_operand.vmem [shape: f32[2,64,128], index: 2, kind: output, shape index: {0}]
  %s3 = inlined_call_operand.vmem [shape: f32[2,1,128], index: 3, kind: output, shape index: {1}]
  %s4 = inlined_call_operand.vmem [shape: f32[2,1,128], index: 4, kind: output, shape index: {2}]
  %5 = xla_tuple %s2, %s3, %s4
  %s6 = sld [smem:[#allocation0]]
  $region61: #{birealnet_forward.17} parent=0
    _
  %s8 = ssub.s32 1, %s6
  %s9 = scalar_select 0, %s8, %s6
  loop: start=0, step=1, limit=4
  $region2: #{birealnet_forward.17} parent=0 // loop_pre_header
    _
  $region3: #{birealnet_forward.17} parent=0 // loop_header
    %s11 = sphi 0, %s15
    %p12 = scmp.ge.s32.totalorder %s11, 4
    %s18 = sphi 0, %s30
    %s19 = sphi 0, %s26
    %s20 = sphi 0, %s18
    %s21 = sphi 0, %s19
    %s22 = sphi 0, %s20
    %s23 = sphi 0, %s21
    %s35 = sphi 0, %s37
    %s38 = sphi 0, %s35
    %s39 = sphi 0, %s38
    %s55 = sphi 0, %s39
    %s59 = sphi 0, %s59
    %s61 = sphi 0, %s59
    %s62 = sphi 0, %s61
    %s76 = sphi 0, %s62
    %s84 = sphi 0, %s86
    %s87 = sphi 0, %s84
    %s88 = sphi 0, %s87
    %s104 = sphi 0, %s88
    %s110 = sphi 0, %s112
    %s113 = sphi 0, %s110
    %s114 = sphi 0, %s113
    %s130 = sphi 0, %s114
    %s136 = sphi 0, %s138
    %s139 = sphi 0, %s136
    %s140 = sphi 0, %s139
    %s156 = sphi 0, %s140
  $region4: #{birealnet_forward.17} parent=0 // loop_header_branch
    %14 = sbr.rel (%p12) target = $region8
  $region5: #{birealnet_forward.17} parent=0 // loop_body
    %s16 = ssub.s32 %s11, 1
    %s17 = ssub.s32 %s11, 2
    %s24 = sadd.s32 1, %s19
    %p25 = scmp.ge.s32.totalorder %s24, 1
    %s26 = scalar_select %p25, 0, %s24
    %s27 = sadd.s32 1, %s18
    %s28 = scalar_select %p25, %s27, %s18
    %p29 = scmp.ge.s32.totalorder %s28, 2
    %s30 = scalar_select %p29, 0, %s28
    %s31 = ssub.s32 %s18, %s30
    %s32 = ssub.s32 %s19, %s26
    %s33 = sor.u32 %s31, %s32
    %p34 = scmp.eq.s32.totalorder %s33, 0
    %s36 = sadd.s32 %s35, 1
    %s37 = scalar_select %p34, %s35, %s36
    %p40 = pneg %p34
    %p41 = scmp.eq.s32.totalorder %s11, 1
    %p42 = por %p40, %p41
    %p43 = scmp.ne.s32.totalorder %s35, %s38
    %p44 = scmp.eq.s32.totalorder %s11, 0
    %p45 = por %p43, %p44
    %p46 = scmp.ne.s32.totalorder %s35, %s38
    %p47 = scmp.eq.s32.totalorder %s16, 1
    %p48 = por %p46, %p47
    %p49 = scmp.ne.s32.totalorder %s38, %s39
    %p50 = scmp.eq.s32.totalorder %s16, 0
    %p51 = por %p49, %p50
    %p52 = scmp.ne.s32.totalorder %s38, %s39
    %p53 = scmp.eq.s32.totalorder %s17, 1
    %p54 = por %p52, %p53
    %p56 = scmp.ne.s32.totalorder %s39, %s55
    %p57 = scmp.eq.s32.totalorder %s17, 0
    %p58 = por %p56, %p57
    %s60 = sadd.s32 %s59, 1
    %p63 = scmp.eq.s32.totalorder %s11, 1
    %p64 = scmp.ne.s32.totalorder %s59, %s61
    %p65 = scmp.eq.s32.totalorder %s11, 0
    %p66 = por %p64, %p65
    %p67 = scmp.ne.s32.totalorder %s59, %s61
    %p68 = scmp.eq.s32.totalorder %s16, 1
    %p69 = por %p67, %p68
    %p70 = scmp.ne.s32.totalorder %s61, %s62
    %p71 = scmp.eq.s32.totalorder %s16, 0
    %p72 = por %p70, %p71
    %p73 = scmp.ne.s32.totalorder %s61, %s62
    %p74 = scmp.eq.s32.totalorder %s17, 1
    %p75 = por %p73, %p74
    %p77 = scmp.ne.s32.totalorder %s62, %s76
    %p78 = scmp.eq.s32.totalorder %s17, 0
    %p79 = por %p77, %p78
    %s80 = ssub.s32 %s18, %s30
    %s81 = ssub.s32 %s19, %s26
    %s82 = sor.u32 %s80, %s81
    %p83 = scmp.eq.s32.totalorder %s82, 0
    %s85 = sadd.s32 %s84, 1
    %s86 = scalar_select %p83, %s84, %s85
    %p89 = pneg %p83
    %p90 = scmp.eq.s32.totalorder %s11, 1
    %p91 = por %p89, %p90
    %p92 = scmp.ne.s32.totalorder %s84, %s87
    %p93 = scmp.eq.s32.totalorder %s11, 0
    %p94 = por %p92, %p93
    %p95 = scmp.ne.s32.totalorder %s84, %s87
    %p96 = scmp.eq.s32.totalorder %s16, 1
    %p97 = por %p95, %p96
    %p98 = scmp.ne.s32.totalorder %s87, %s88
    %p99 = scmp.eq.s32.totalorder %s16, 0
    %p100 = por %p98, %p99
    %p101 = scmp.ne.s32.totalorder %s87, %s88
    %p102 = scmp.eq.s32.totalorder %s17, 1
    %p103 = por %p101, %p102
    %p105 = scmp.ne.s32.totalorder %s88, %s104
    %p106 = scmp.eq.s32.totalorder %s17, 0
    %p107 = por %p105, %p106
    %s108 = ssub.s32 %s18, %s30
    %p109 = scmp.eq.s32.totalorder %s108, 0
    %s111 = sadd.s32 %s110, 1
    %s112 = scalar_select %p109, %s110, %s111
    %p115 = pneg %p109
    %p116 = scmp.eq.s32.totalorder %s11, 1
    %p117 = por %p115, %p116
    %p118 = scmp.ne.s32.totalorder %s110, %s113
    %p119 = scmp.eq.s32.totalorder %s11, 0
    %p120 = por %p118, %p119
    %p121 = scmp.ne.s32.totalorder %s110, %s113
    %p122 = scmp.eq.s32.totalorder %s16, 1
    %p123 = por %p121, %p122
    %p124 = scmp.ne.s32.totalorder %s113, %s114
    %p125 = scmp.eq.s32.totalorder %s16, 0
    %p126 = por %p124, %p125
    %p127 = scmp.ne.s32.totalorder %s113, %s114
    %p128 = scmp.eq.s32.totalorder %s17, 1
    %p129 = por %p127, %p128
    %p131 = scmp.ne.s32.totalorder %s114, %s130
    %p132 = scmp.eq.s32.totalorder %s17, 0
    %p133 = por %p131, %p132
    %s134 = ssub.s32 %s18, %s30
    %p135 = scmp.eq.s32.totalorder %s134, 0
    %s137 = sadd.s32 %s136, 1
    %s138 = scalar_select %p135, %s136, %s137
    %p141 = pneg %p135
    %p142 = scmp.eq.s32.totalorder %s11, 1
    %p143 = por %p141, %p142
    %p144 = scmp.ne.s32.totalorder %s136, %s139
    %p145 = scmp.eq.s32.totalorder %s11, 0
    %p146 = por %p144, %p145
    %p147 = scmp.ne.s32.totalorder %s136, %s139
    %p148 = scmp.eq.s32.totalorder %s16, 1
    %p149 = por %p147, %p148
    %p150 = scmp.ne.s32.totalorder %s139, %s140
    %p151 = scmp.eq.s32.totalorder %s16, 0
    %p152 = por %p150, %p151
    %p153 = scmp.ne.s32.totalorder %s139, %s140
    %p154 = scmp.eq.s32.totalorder %s17, 1
    %p155 = por %p153, %p154
    %p157 = scmp.ne.s32.totalorder %s140, %s156
    %p158 = scmp.eq.s32.totalorder %s17, 0
    %p159 = por %p157, %p158
    %p160 = scmp.le.s32.totalorder 1, %s11
    %p161 = scmp.lt.s32.totalorder %s11, 3
    %p162 = pnand %p160, %p161
    %p163 = pneg %p162
    // Predicated region
    $region9: #{birealnet_forward.17} parent=5 // pred_check
      _
    $region10: #{birealnet_forward.17} parent=5 // pred_check_branch
      %165 = sbr.rel (%p162) target = $region12
    $region11: #{birealnet_forward.17} parent=5 // pred_region
      %s166 = ssub.s32 %s11, 1
      // Predicated region
      $region13: #{birealnet_forward.17} parent=11 // pred_check
        %p167 = pneg %p72
      $region14: #{birealnet_forward.17} parent=11 // pred_check_branch
        %169 = sbr.rel (%p167) target = $region16
      $region15: #{birealnet_forward.17} parent=11 // pred_region
        _
      $region16: #{birealnet_forward.17} parent=11 // pred_fallthru
        _
    $region12: #{birealnet_forward.17} parent=5 // pred_fallthru
      _
    %p170 = scmp.lt.s32.totalorder %s11, 2
    // Predicated region
    $region17: #{birealnet_forward.17} parent=5 // pred_check
      %p171 = pneg %p170
    $region18: #{birealnet_forward.17} parent=5 // pred_check_branch
      %173 = sbr.rel (%p171) target = $region20
    $region19: #{birealnet_forward.17} parent=5 // pred_region
      // Predicated region
      $region21: #{birealnet_forward.17} parent=19 // pred_check
        %p174 = pneg %p45
      $region22: #{birealnet_forward.17} parent=19 // pred_check_branch
        %176 = sbr.rel (%p174) target = $region24
      $region23: #{birealnet_forward.17} parent=19 // pred_region
        %s177 = smul.u32 8, %s19
        %p178 = scmp.lt.s32.totalorder %s18, 1
        %s179 = scalar_select %p178, %s18, 1
        %p180 = scmp.lt.s32.totalorder %s177, 7
        %s181 = scalar_select %p180, %s177, 7
        %s182 = smul.addr %s179, 8
        %s183 = sadd.s32 %s181, %s182
        %s184 = smul.addr %s183, 4
        %s185 = scalar_lea.vmem %s0, %s184
        %s186 = smul.u32 8, %s19
      $region24: #{birealnet_forward.17} parent=19 // pred_fallthru
        _
    $region20: #{birealnet_forward.17} parent=5 // pred_fallthru
      _
    %p187 = scmp.le.s32.totalorder 1, %s11
    %p188 = scmp.lt.s32.totalorder %s11, 3
    %p189 = pnand %p187, %p188
    %p190 = pneg %p189
    // Predicated region
    $region25: #{birealnet_forward.17} parent=5 // pred_check
      _
    $region26: #{birealnet_forward.17} parent=5 // pred_check_branch
      %192 = sbr.rel (%p189) target = $region28
    $region27: #{birealnet_forward.17} parent=5 // pred_region
      %s193 = ssub.s32 %s11, 1
      %s194 = smul.u32 8, %s21
      %p195 = scmp.lt.s32.totalorder %s20, 1
      %s196 = scalar_select %p195, %s20, 1
      %p197 = scmp.lt.s32.totalorder %s194, 7
      %s198 = scalar_select %p197, %s194, 7
      %s199 = smul.addr %s196, 8
      %s200 = sadd.s32 %s198, %s199
      %s201 = smul.addr %s200, 4
      %s202 = scalar_lea.vmem %s0, %s201
      %p203 = pneg %p51
      %p204 = pneg %p48
      %p205 = pneg %p72
      %p206 = pneg %p69
      %p207 = pneg %p100
      %p208 = pneg %p97
      %s209 = smul.u32 8, %s21
      %p210 = scmp.lt.s32.totalorder %s20, 1
      %s211 = scalar_select %p210, %s20, 1
      %p212 = scmp.lt.s32.totalorder %s209, 7
      %s213 = scalar_select %p212, %s209, 7
      %s214 = smul.addr %s211, 8
      %s215 = sadd.s32 %s213, %s214
      %s216 = smul.addr %s215, 8
      %s217 = scalar_lea.vmem %s2, %s216
      %p218 = pneg %p126
      %p219 = pneg %p123
      %p220 = scmp.lt.s32.totalorder %s20, 1
      %s221 = scalar_select %p220, %s20, 1
      %s222 = scalar_lea.vmem %s3, %s221
      %p223 = pneg %p152
      %p224 = pneg %p149
      %p225 = scmp.lt.s32.totalorder %s20, 1
      %s226 = scalar_select %p225, %s20, 1
      %s227 = scalar_lea.vmem %s4, %s226
      %s228 = smul.u32 8, %s21
      %p229 = scmp.lt.s32.totalorder %s20, 1
      %s230 = scalar_select %p229, %s20, 1
      %p231 = scmp.lt.s32.totalorder %s228, 7
      %s232 = scalar_select %p231, %s228, 7
      %s233 = smul.addr %s230, 8
      %s234 = sadd.s32 %s232, %s233
      %s235 = smul.addr %s234, 4
      %s236 = scalar_lea.vmem %s0, %s235
      %s237 = smul.u32 8, %s21
      %s238 = smul.u32 8, %s21
      %p239 = scmp.lt.s32.totalorder %s20, 1
      %s240 = scalar_select %p239, %s20, 1
      %p241 = scmp.lt.s32.totalorder %s238, 7
      %s242 = scalar_select %p241, %s238, 7
      %s243 = smul.addr %s240, 8
      %s244 = sadd.s32 %s242, %s243
      %s245 = smul.addr %s244, 8
      %s246 = scalar_lea.vmem %s2, %s245
      %s247 = smul.u32 8, %s21
      %p248 = scmp.lt.s32.totalorder %s20, 1
      %s249 = scalar_select %p248, %s20, 1
      %s250 = scalar_lea.vmem %s3, %s249
      %p251 = scmp.lt.s32.totalorder %s20, 1
      %s252 = scalar_select %p251, %s20, 1
      %s253 = scalar_lea.vmem %s4, %s252
      %p254 = scmp.eq.s32.totalorder %s21, 0
      // Predicated region
      $region29: #{birealnet_forward.17} parent=27 // pred_check
        %p255 = pneg %p254
      $region30: #{birealnet_forward.17} parent=27 // pred_check_branch
        %257 = sbr.rel (%p255) target = $region32
      $region31: #{birealnet_forward.17} parent=27 // pred_region
        %258 = vst [vmem:[%s250] sm:$0x1] 0.0
        %259 = vst [vmem:[%s253] sm:$0x1] 0.0
      $region32: #{birealnet_forward.17} parent=27 // pred_fallthru
        _
      %v260 = vld [vmem:[%s236] sm:$0xf]
      %v261 = vld [vmem:[%s236 + $0x4] sm:$0xf]
      %v262 = vld [vmem:[%s236 + $0x8] sm:$0xf]
      %v263 = vld [vmem:[%s236 + $0xc] sm:$0xf]
      %v264 = vld [vmem:[%s236 + $0x10] sm:$0xf]
      %v265 = vld [vmem:[%s236 + $0x14] sm:$0xf]
      %v266 = vld [vmem:[%s236 + $0x18] sm:$0xf]
      %v267 = vld [vmem:[%s236 + $0x1c] sm:$0xf]
      %v268 = vld [vmem:[%s1] sm:$0xf]
      %v269 = vld [vmem:[%s1 + $0x4] sm:$0xf]
      %v270 = vld [vmem:[%s1 + $0x8] sm:$0xf]
      %v271 = vld [vmem:[%s1 + $0xc] sm:$0xf]
      %v272 = vld [vmem:[%s1 + $0x10] sm:$0xf]
      %v273 = vld [vmem:[%s1 + $0x14] sm:$0xf]
      %v274 = vld [vmem:[%s1 + $0x18] sm:$0xf]
      %v275 = vld [vmem:[%s1 + $0x1c] sm:$0xf]
      %v276 = vld [vmem:[%s1 + $0x20] sm:$0xf]
      %v277 = vld [vmem:[%s1 + $0x24] sm:$0xf]
      %v278 = vld [vmem:[%s1 + $0x28] sm:$0xf]
      %v279 = vld [vmem:[%s1 + $0x2c] sm:$0xf]
      %v280 = vld [vmem:[%s1 + $0x30] sm:$0xf]
      %v281 = vld [vmem:[%s1 + $0x34] sm:$0xf]
      %v282 = vld [vmem:[%s1 + $0x38] sm:$0xf]
      %v283 = vld [vmem:[%s1 + $0x3c] sm:$0xf]
      %v292 = vunpack.c.l.b16 %v260
      %v293 = vunpack.c.l.b16 %v261
      %v294 = vunpack.c.l.b16 %v262
      %v295 = vunpack.c.l.b16 %v263
      %v296 = vunpack.c.l.b16 %v264
      %v297 = vunpack.c.l.b16 %v265
      %v298 = vunpack.c.l.b16 %v266
      %v299 = vunpack.c.l.b16 %v267
      %v300 = vpack.c.b16 %v293, %v292
      %v301 = vpack.c.b16 %v295, %v294
      %v302 = vpack.c.b16 %v297, %v296
      %v303 = vpack.c.b16 %v299, %v298
      %v324 = vunpack.c.l.b16 %v268
      %v325 = vunpack.c.l.b16 %v269
      %v326 = vunpack.c.l.b16 %v270
      %v327 = vunpack.c.l.b16 %v271
      %v328 = vunpack.c.l.b16 %v272
      %v329 = vunpack.c.l.b16 %v273
      %v330 = vunpack.c.l.b16 %v274
      %v331 = vunpack.c.l.b16 %v275
      %v332 = vunpack.c.l.b16 %v276
      %v333 = vunpack.c.l.b16 %v277
      %v334 = vunpack.c.l.b16 %v278
      %v335 = vunpack.c.l.b16 %v279
      %v336 = vunpack.c.l.b16 %v280
      %v337 = vunpack.c.l.b16 %v281
      %v338 = vunpack.c.l.b16 %v282
      %v339 = vunpack.c.l.b16 %v283
      %v340 = vpack.c.b16 %v325, %v324
      %v341 = vpack.c.b16 %v327, %v326
      %v342 = vpack.c.b16 %v329, %v328
      %v343 = vpack.c.b16 %v331, %v330
      %v344 = vpack.c.b16 %v333, %v332
      %v345 = vpack.c.b16 %v335, %v334
      %v346 = vpack.c.b16 %v337, %v336
      %v347 = vpack.c.b16 %v339, %v338
      %356 = vmatpush.bf16.msra.mxu0 %v347
      %357 = vmatpush.bf16.msra.mxu0 %v346
      %358 = vmatpush.bf16.msra.mxu0 %v345
      %359 = vmatpush.bf16.msra.mxu0 %v344
      %360 = vmatpush.bf16.msra.mxu0 %v343
      %361 = vmatpush.bf16.msra.mxu0 %v342
      %362 = vmatpush.bf16.msra.mxu0 %v341
      %363 = vmatpush.bf16.msra.mxu0 %v340
      %364 = vmatmul.bf16.gmra.mxu0 %v300
      %v365 = vpop.f32.mrf.mxu0
      %v366 = vadd.f32 0.0, %v365
      %v367 = vpop.f32.mrf.mxu0
      %v368 = vadd.f32 0.0, %v367
      %369 = vmatmul.bf16.gmra.mxu0 %v301
      %v370 = vpop.f32.mrf.mxu0
      %v371 = vadd.f32 0.0, %v370
      %v372 = vpop.f32.mrf.mxu0
      %v373 = vadd.f32 0.0, %v372
      %374 = vmatmul.bf16.gmra.mxu0 %v302
      %v375 = vpop.f32.mrf.mxu0
      %v376 = vadd.f32 0.0, %v375
      %v377 = vpop.f32.mrf.mxu0
      %v378 = vadd.f32 0.0, %v377
      %379 = vmatmul.bf16.gmra.mxu0 %v303
      %v380 = vpop.f32.mrf.mxu0
      %v381 = vadd.f32 0.0, %v380
      %v382 = vpop.f32.mrf.mxu0
      %v383 = vadd.f32 0.0, %v382
      %384 = vdwg.mxu0
      %385 = vst [vmem:[%s246] sm:$0xff] %v366
      %386 = vst [vmem:[%s246 + $0x8] sm:$0xff] %v368
      %387 = vst [vmem:[%s246 + $0x10] sm:$0xff] %v371
      %388 = vst [vmem:[%s246 + $0x18] sm:$0xff] %v373
      %389 = vst [vmem:[%s246 + $0x20] sm:$0xff] %v376
      %390 = vst [vmem:[%s246 + $0x28] sm:$0xff] %v378
      %391 = vst [vmem:[%s246 + $0x30] sm:$0xff] %v381
      %392 = vst [vmem:[%s246 + $0x38] sm:$0xff] %v383
      %v393 = vld [vmem:[%s246] sm:$0xff]
      %v394 = vld [vmem:[%s246 + $0x8] sm:$0xff]
      %v395 = vld [vmem:[%s246 + $0x10] sm:$0xff]
      %v396 = vld [vmem:[%s246 + $0x18] sm:$0xff]
      %v397 = vld [vmem:[%s246 + $0x20] sm:$0xff]
      %v398 = vld [vmem:[%s246 + $0x28] sm:$0xff]
      %v399 = vld [vmem:[%s246 + $0x30] sm:$0xff]
      %v400 = vld [vmem:[%s246 + $0x38] sm:$0xff]
      %v401 = vld [vmem:[%s250] sm:$0x1]
      %v402 = vadd.f32 %v393, %v394
      %v403 = vadd.f32 %v402, %v395
      %v404 = vadd.f32 %v403, %v396
      %v405 = vadd.f32 %v404, %v397
      %v406 = vadd.f32 %v405, %v398
      %v407 = vadd.f32 %v406, %v399
      %v408 = vadd.f32 %v407, %v400
      %v409 = vrot.slane %v408, 4
      %v410 = vadd.f32 %v408, %v409
      %v411 = vrot.slane %v410, 2
      %v412 = vadd.f32 %v410, %v411
      %v413 = vrot.slane %v412, 1
      %v414 = vadd.f32 %v412, %v413
      %v415 = vadd.f32 %v401, %v414
      %416 = vst [vmem:[%s250] sm:$0x1] %v415
      %v417 = vld [vmem:[%s253] sm:$0x1]
      %v418 = vmul.f32 %v393, %v393
      %v419 = vmul.f32 %v394, %v394
      %v420 = vmul.f32 %v395, %v395
      %v421 = vmul.f32 %v396, %v396
      %v422 = vmul.f32 %v397, %v397
      %v423 = vmul.f32 %v398, %v398
      %v424 = vmul.f32 %v399, %v399
      %v425 = vmul.f32 %v400, %v400
      %v426 = vadd.f32 %v418, %v419
      %v427 = vadd.f32 %v426, %v420
      %v428 = vadd.f32 %v427, %v421
      %v429 = vadd.f32 %v428, %v422
      %v430 = vadd.f32 %v429, %v423
      %v431 = vadd.f32 %v430, %v424
      %v432 = vadd.f32 %v431, %v425
      %v433 = vrot.slane %v432, 4
      %v434 = vadd.f32 %v432, %v433
      %v435 = vrot.slane %v434, 2
      %v436 = vadd.f32 %v434, %v435
      %v437 = vrot.slane %v436, 1
      %v438 = vadd.f32 %v436, %v437
      %v439 = vadd.f32 %v417, %v438
      %440 = vst [vmem:[%s253] sm:$0x1] %v439
      %s441 = smul.u32 8, %s21
      %p442 = scmp.lt.s32.totalorder %s20, 1
      %s443 = scalar_select %p442, %s20, 1
      %p444 = scmp.lt.s32.totalorder %s441, 7
      %s445 = scalar_select %p444, %s441, 7
      %s446 = smul.addr %s443, 8
      %s447 = sadd.s32 %s445, %s446
      %s448 = smul.addr %s447, 8
      %s449 = scalar_lea.vmem %s2, %s448
      %p450 = scmp.lt.s32.totalorder %s20, 1
      %s451 = scalar_select %p450, %s20, 1
      %s452 = scalar_lea.vmem %s3, %s451
      %p453 = scmp.lt.s32.totalorder %s20, 1
      %s454 = scalar_select %p453, %s20, 1
      %s455 = scalar_lea.vmem %s4, %s454
      // Predicated region
      $region33: #{birealnet_forward.17} parent=27 // pred_check
        %p456 = pneg %p97
      $region34: #{birealnet_forward.17} parent=27 // pred_check_branch
        %458 = sbr.rel (%p456) target = $region36
      $region35: #{birealnet_forward.17} parent=27 // pred_region
        %s459 = smul.u32 8, %s21
      $region36: #{birealnet_forward.17} parent=27 // pred_fallthru
        _
      // Predicated region
      $region37: #{birealnet_forward.17} parent=27 // pred_check
        %p460 = pneg %p123
      $region38: #{birealnet_forward.17} parent=27 // pred_check_branch
        %462 = sbr.rel (%p460) target = $region40
      $region39: #{birealnet_forward.17} parent=27 // pred_region
        _
      $region40: #{birealnet_forward.17} parent=27 // pred_fallthru
        _
      // Predicated region
      $region41: #{birealnet_forward.17} parent=27 // pred_check
        %p463 = pneg %p149
      $region42: #{birealnet_forward.17} parent=27 // pred_check_branch
        %465 = sbr.rel (%p463) target = $region44
      $region43: #{birealnet_forward.17} parent=27 // pred_region
        _
      $region44: #{birealnet_forward.17} parent=27 // pred_fallthru
        _
    $region28: #{birealnet_forward.17} parent=5 // pred_fallthru
      _
    %p466 = scmp.le.s32.totalorder 2, %s11
    // Predicated region
    $region45: #{birealnet_forward.17} parent=5 // pred_check
      %p467 = pneg %p466
    $region46: #{birealnet_forward.17} parent=5 // pred_check_branch
      %469 = sbr.rel (%p467) target = $region48
    $region47: #{birealnet_forward.17} parent=5 // pred_region
      %s470 = ssub.s32 %s11, 2
      // Predicated region
      $region49: #{birealnet_forward.17} parent=47 // pred_check
        %p471 = pneg %p103
      $region50: #{birealnet_forward.17} parent=47 // pred_check_branch
        %473 = sbr.rel (%p471) target = $region52
      $region51: #{birealnet_forward.17} parent=47 // pred_region
        %s474 = smul.u32 8, %s23
        %p475 = scmp.lt.s32.totalorder %s22, 1
        %s476 = scalar_select %p475, %s22, 1
        %p477 = scmp.lt.s32.totalorder %s474, 7
        %s478 = scalar_select %p477, %s474, 7
        %s479 = smul.addr %s476, 8
        %s480 = sadd.s32 %s478, %s479
        %s481 = smul.addr %s480, 8
        %s482 = scalar_lea.vmem %s2, %s481
      $region52: #{birealnet_forward.17} parent=47 // pred_fallthru
        _
      // Predicated region
      $region53: #{birealnet_forward.17} parent=47 // pred_check
        %p483 = pneg %p129
      $region54: #{birealnet_forward.17} parent=47 // pred_check_branch
        %485 = sbr.rel (%p483) target = $region56
      $region55: #{birealnet_forward.17} parent=47 // pred_region
        %p486 = scmp.lt.s32.totalorder %s22, 1
        %s487 = scalar_select %p486, %s22, 1
        %s488 = scalar_lea.vmem %s3, %s487
      $region56: #{birealnet_forward.17} parent=47 // pred_fallthru
        _
      // Predicated region
      $region57: #{birealnet_forward.17} parent=47 // pred_check
        %p489 = pneg %p155
      $region58: #{birealnet_forward.17} parent=47 // pred_check_branch
        %491 = sbr.rel (%p489) target = $region60
      $region59: #{birealnet_forward.17} parent=47 // pred_region
        %p492 = scmp.lt.s32.totalorder %s22, 1
        %s493 = scalar_select %p492, %s22, 1
        %s494 = scalar_lea.vmem %s4, %s493
      $region60: #{birealnet_forward.17} parent=47 // pred_fallthru
        _
    $region48: #{birealnet_forward.17} parent=5 // pred_fallthru
      _
  $region6: #{birealnet_forward.17} parent=0 // loop_footer
    %s15 = sadd.s32 1, %s11
  $region7: #{birealnet_forward.17} parent=0 // loop_footer_branch
    %10 = sbr.rel target = $region3
  $region8: #{birealnet_forward.17} parent=0 // loop_exit
    _

// kernel: birealnet_forward.19
$region0: #{birealnet_forward.19}
  #allocation0 [shape = 'u32[]', space=smem, size = 0x4, offset = 0x4, fixed_abs, tag = 'smem constant byte address 0x4 - core index']
  #allocation1 [shape = 'u32[72,128]{1,0:T(1,128)}', space=vmem, size = 0x9000, scoped, tag = 'internal scratch']
  %s0 = inlined_call_operand.vmem [shape: f32[128,128], index: 0, kind: input, shape index: {}]
  %s1 = inlined_call_operand.vmem [shape: f32[1,128], index: 1, kind: input, shape index: {}]
  %s2 = inlined_call_operand.vmem [shape: f32[1,128], index: 2, kind: input, shape index: {}]
  %s3 = inlined_call_operand.vmem [shape: f32[128,128], index: 3, kind: input, shape index: {}]
  %s4 = inlined_call_operand.vmem [shape: f32[128,128], index: 4, kind: output, shape index: {}]
  %s5 = sld [smem:[#allocation0]]
  $region26: #{birealnet_forward.19} parent=0
    _
  %s7 = ssub.s32 1, %s5
  %s8 = scalar_select 0, %s7, %s5
  // Predicated region
  $region2: #{birealnet_forward.19} parent=0 // pred_check
    _
  $region3: #{birealnet_forward.19} parent=0 // pred_check_branch
    %10 = sbr.rel (0) target = $region5
  $region4: #{birealnet_forward.19} parent=0 // pred_region
    _
  $region5: #{birealnet_forward.19} parent=0 // pred_fallthru
    _
  // Predicated region
  $region6: #{birealnet_forward.19} parent=0 // pred_check
    _
  $region7: #{birealnet_forward.19} parent=0 // pred_check_branch
    %12 = sbr.rel (0) target = $region9
  $region8: #{birealnet_forward.19} parent=0 // pred_region
    _
  $region9: #{birealnet_forward.19} parent=0 // pred_fallthru
    _
  // Predicated region
  $region10: #{birealnet_forward.19} parent=0 // pred_check
    _
  $region11: #{birealnet_forward.19} parent=0 // pred_check_branch
    %14 = sbr.rel (0) target = $region13
  $region12: #{birealnet_forward.19} parent=0 // pred_region
    _
  $region13: #{birealnet_forward.19} parent=0 // pred_fallthru
    _
  // Predicated region
  $region14: #{birealnet_forward.19} parent=0 // pred_check
    _
  $region15: #{birealnet_forward.19} parent=0 // pred_check_branch
    %16 = sbr.rel (0) target = $region17
  $region16: #{birealnet_forward.19} parent=0 // pred_region
    _
  $region17: #{birealnet_forward.19} parent=0 // pred_fallthru
    _
  %v17 = vld [vmem:[%s0] sm:$0xff]
  %v18 = vld [vmem:[%s0 + $0x8] sm:$0xff]
  %v19 = vld [vmem:[%s0 + $0x10] sm:$0xff]
  %v20 = vld [vmem:[%s0 + $0x18] sm:$0xff]
  %v21 = vld [vmem:[%s0 + $0x20] sm:$0xff]
  %v22 = vld [vmem:[%s0 + $0x28] sm:$0xff]
  %v23 = vld [vmem:[%s0 + $0x30] sm:$0xff]
  %v24 = vld [vmem:[%s0 + $0x38] sm:$0xff]
  %v25 = vld [vmem:[%s0 + $0x40] sm:$0xff]
  %v26 = vld [vmem:[%s0 + $0x48] sm:$0xff]
  %v27 = vld [vmem:[%s0 + $0x50] sm:$0xff]
  %v28 = vld [vmem:[%s0 + $0x58] sm:$0xff]
  %v29 = vld [vmem:[%s0 + $0x60] sm:$0xff]
  %v30 = vld [vmem:[%s0 + $0x68] sm:$0xff]
  %v31 = vld [vmem:[%s0 + $0x70] sm:$0xff]
  %v32 = vld [vmem:[%s0 + $0x78] sm:$0xff]
  %v33 = vld [vmem:[%s1] sm:$0x1]
  %v35 = vperm.slane %v33, 0
  %v37 = vmul.f32 %v17, %v35
  %v38 = vmul.f32 %v18, %v35
  %v39 = vmul.f32 %v19, %v35
  %v40 = vmul.f32 %v20, %v35
  %v41 = vmul.f32 %v21, %v35
  %v42 = vmul.f32 %v22, %v35
  %v43 = vmul.f32 %v23, %v35
  %v44 = vmul.f32 %v24, %v35
  %v45 = vmul.f32 %v25, %v35
  %v46 = vmul.f32 %v26, %v35
  %v47 = vmul.f32 %v27, %v35
  %v48 = vmul.f32 %v28, %v35
  %v49 = vmul.f32 %v29, %v35
  %v50 = vmul.f32 %v30, %v35
  %v51 = vmul.f32 %v31, %v35
  %v52 = vmul.f32 %v32, %v35
  %v53 = vld [vmem:[%s2] sm:$0x1]
  %v55 = vperm.slane %v53, 0
  %v57 = vadd.f32 %v37, %v55
  %v58 = vadd.f32 %v38, %v55
  %v59 = vadd.f32 %v39, %v55
  %v60 = vadd.f32 %v40, %v55
  %v61 = vadd.f32 %v41, %v55
  %v62 = vadd.f32 %v42, %v55
  %v63 = vadd.f32 %v43, %v55
  %v64 = vadd.f32 %v44, %v55
  %v65 = vadd.f32 %v45, %v55
  %v66 = vadd.f32 %v46, %v55
  %v67 = vadd.f32 %v47, %v55
  %v68 = vadd.f32 %v48, %v55
  %v69 = vadd.f32 %v49, %v55
  %v70 = vadd.f32 %v50, %v55
  %v71 = vadd.f32 %v51, %v55
  %v72 = vadd.f32 %v52, %v55
  %v73 = vld [vmem:[%s3] sm:$0xff]
  %v74 = vld [vmem:[%s3 + $0x8] sm:$0xff]
  %v75 = vld [vmem:[%s3 + $0x10] sm:$0xff]
  %v76 = vld [vmem:[%s3 + $0x18] sm:$0xff]
  %v77 = vld [vmem:[%s3 + $0x20] sm:$0xff]
  %v78 = vld [vmem:[%s3 + $0x28] sm:$0xff]
  %v79 = vld [vmem:[%s3 + $0x30] sm:$0xff]
  %v80 = vld [vmem:[%s3 + $0x38] sm:$0xff]
  %v81 = vld [vmem:[%s3 + $0x40] sm:$0xff]
  %v82 = vld [vmem:[%s3 + $0x48] sm:$0xff]
  %v83 = vld [vmem:[%s3 + $0x50] sm:$0xff]
  %v84 = vld [vmem:[%s3 + $0x58] sm:$0xff]
  %v85 = vld [vmem:[%s3 + $0x60] sm:$0xff]
  %v86 = vld [vmem:[%s3 + $0x68] sm:$0xff]
  %v87 = vld [vmem:[%s3 + $0x70] sm:$0xff]
  %v88 = vld [vmem:[%s3 + $0x78] sm:$0xff]
  %v89 = vadd.f32 %v57, %v73
  %v90 = vadd.f32 %v58, %v74
  %v91 = vadd.f32 %v59, %v75
  %v92 = vadd.f32 %v60, %v76
  %v93 = vadd.f32 %v61, %v77
  %v94 = vadd.f32 %v62, %v78
  %v95 = vadd.f32 %v63, %v79
  %v96 = vadd.f32 %v64, %v80
  %v97 = vadd.f32 %v65, %v81
  %v98 = vadd.f32 %v66, %v82
  %v99 = vadd.f32 %v67, %v83
  %v100 = vadd.f32 %v68, %v84
  %v101 = vadd.f32 %v69, %v85
  %v102 = vadd.f32 %v70, %v86
  %v103 = vadd.f32 %v71, %v87
  %v104 = vadd.f32 %v72, %v88
  %105 = vst [vmem:[%s4] sm:$0xff] %v89
  %106 = vst [vmem:[%s4 + $0x8] sm:$0xff] %v90
  %107 = vst [vmem:[%s4 + $0x10] sm:$0xff] %v91
  %108 = vst [vmem:[%s4 + $0x18] sm:$0xff] %v92
  %109 = vst [vmem:[%s4 + $0x20] sm:$0xff] %v93
  %110 = vst [vmem:[%s4 + $0x28] sm:$0xff] %v94
  %111 = vst [vmem:[%s4 + $0x30] sm:$0xff] %v95
  %112 = vst [vmem:[%s4 + $0x38] sm:$0xff] %v96
  %113 = vst [vmem:[%s4 + $0x40] sm:$0xff] %v97
  %114 = vst [vmem:[%s4 + $0x48] sm:$0xff] %v98
  %115 = vst [vmem:[%s4 + $0x50] sm:$0xff] %v99
  %116 = vst [vmem:[%s4 + $0x58] sm:$0xff] %v100
  %117 = vst [vmem:[%s4 + $0x60] sm:$0xff] %v101
  %118 = vst [vmem:[%s4 + $0x68] sm:$0xff] %v102
  %119 = vst [vmem:[%s4 + $0x70] sm:$0xff] %v103
  %120 = vst [vmem:[%s4 + $0x78] sm:$0xff] %v104
  // Predicated region
  $region18: #{birealnet_forward.19} parent=0 // pred_check
    _
  $region19: #{birealnet_forward.19} parent=0 // pred_check_branch
    %122 = sbr.rel (0) target = $region21
  $region20: #{birealnet_forward.19} parent=0 // pred_region
    _
  $region21: #{birealnet_forward.19} parent=0 // pred_fallthru
    _
  // Predicated region
  $region22: #{birealnet_forward.19} parent=0 // pred_check
    _
  $region23: #{birealnet_forward.19} parent=0 // pred_check_branch
    %124 = sbr.rel (0) target = $region25
  $region24: #{birealnet_forward.19} parent=0 // pred_region
    _
  $region25: #{birealnet_forward.19} parent=0 // pred_fallthru
    _

// kernel: birealnet_forward.22
$region0: #{birealnet_forward.22}
  #allocation0 [shape = 'u32[]', space=smem, size = 0x4, offset = 0x4, fixed_abs, tag = 'smem constant byte address 0x4 - core index']
  #allocation1 [shape = 'u32[72,128]{1,0:T(1,128)}', space=vmem, size = 0x9000, scoped, tag = 'internal scratch']
  %s0 = inlined_call_operand.vmem [shape: f32[32,128], index: 0, kind: input, shape index: {}]
  %s1 = inlined_call_operand.vmem [shape: f32[1,128], index: 1, kind: input, shape index: {}]
  %s2 = inlined_call_operand.vmem [shape: f32[1,128], index: 2, kind: input, shape index: {}]
  %s3 = inlined_call_operand.vmem [shape: f32[32,128], index: 3, kind: output, shape index: {}]
  %s4 = sld [smem:[#allocation0]]
  $region22: #{birealnet_forward.22} parent=0
    _
  %s6 = ssub.s32 1, %s4
  %s7 = scalar_select 0, %s6, %s4
  // Predicated region
  $region2: #{birealnet_forward.22} parent=0 // pred_check
    _
  $region3: #{birealnet_forward.22} parent=0 // pred_check_branch
    %9 = sbr.rel (0) target = $region5
  $region4: #{birealnet_forward.22} parent=0 // pred_region
    _
  $region5: #{birealnet_forward.22} parent=0 // pred_fallthru
    _
  // Predicated region
  $region6: #{birealnet_forward.22} parent=0 // pred_check
    _
  $region7: #{birealnet_forward.22} parent=0 // pred_check_branch
    %11 = sbr.rel (0) target = $region9
  $region8: #{birealnet_forward.22} parent=0 // pred_region
    _
  $region9: #{birealnet_forward.22} parent=0 // pred_fallthru
    _
  // Predicated region
  $region10: #{birealnet_forward.22} parent=0 // pred_check
    _
  $region11: #{birealnet_forward.22} parent=0 // pred_check_branch
    %13 = sbr.rel (0) target = $region13
  $region12: #{birealnet_forward.22} parent=0 // pred_region
    _
  $region13: #{birealnet_forward.22} parent=0 // pred_fallthru
    _
  %v14 = vld [vmem:[%s0] sm:$0xff]
  %v15 = vld [vmem:[%s0 + $0x8] sm:$0xff]
  %v16 = vld [vmem:[%s0 + $0x10] sm:$0xff]
  %v17 = vld [vmem:[%s0 + $0x18] sm:$0xff]
  %v18 = vld [vmem:[%s1] sm:$0x1]
  %v20 = vperm.slane %v18, 0
  %v22 = vmul.f32 %v14, %v20
  %v23 = vmul.f32 %v15, %v20
  %v24 = vmul.f32 %v16, %v20
  %v25 = vmul.f32 %v17, %v20
  %v26 = vld [vmem:[%s2] sm:$0x1]
  %v28 = vperm.slane %v26, 0
  %v30 = vadd.f32 %v22, %v28
  %v31 = vadd.f32 %v23, %v28
  %v32 = vadd.f32 %v24, %v28
  %v33 = vadd.f32 %v25, %v28
  %34 = vst [vmem:[%s3] sm:$0xff] %v30
  %35 = vst [vmem:[%s3 + $0x8] sm:$0xff] %v31
  %36 = vst [vmem:[%s3 + $0x10] sm:$0xff] %v32
  %37 = vst [vmem:[%s3 + $0x18] sm:$0xff] %v33
  // Predicated region
  $region14: #{birealnet_forward.22} parent=0 // pred_check
    _
  $region15: #{birealnet_forward.22} parent=0 // pred_check_branch
    %39 = sbr.rel (0) target = $region17
  $region16: #{birealnet_forward.22} parent=0 // pred_region
    _
  $region17: #{birealnet_forward.22} parent=0 // pred_fallthru
    _
  // Predicated region
  $region18: #{birealnet_forward.22} parent=0 // pred_check
    _
  $region19: #{birealnet_forward.22} parent=0 // pred_check_branch
    %41 = sbr.rel (0) target = $region21
  $region20: #{birealnet_forward.22} parent=0 // pred_region
    _
  $region21: #{birealnet_forward.22} parent=0 // pred_fallthru
    _

// kernel: birealnet_forward.21
$region0: #{birealnet_forward.21}
  #allocation0 [shape = 'u32[]', space=smem, size = 0x4, offset = 0x4, fixed_abs, tag = 'smem constant byte address 0x4 - core index']
  #allocation1 [shape = 'u32[72,128]{1,0:T(1,128)}', space=vmem, size = 0x9000, scoped, tag = 'internal scratch']
  %s0 = inlined_call_operand.vmem [shape: bf16[2,16,128], index: 0, kind: input, shape index: {}]
  %s1 = inlined_call_operand.vmem [shape: bf16[1,128,128], index: 1, kind: input, shape index: {}]
  %s2 = inlined_call_operand.vmem [shape: f32[2,16,128], index: 2, kind: output, shape index: {0}]
  %s3 = inlined_call_operand.vmem [shape: f32[2,1,128], index: 3, kind: output, shape index: {1}]
  %s4 = inlined_call_operand.vmem [shape: f32[2,1,128], index: 4, kind: output, shape index: {2}]
  %5 = xla_tuple %s2, %s3, %s4
  %s6 = sld [smem:[#allocation0]]
  $region61: #{birealnet_forward.21} parent=0
    _
  %s8 = ssub.s32 1, %s6
  %s9 = scalar_select 0, %s8, %s6
  loop: start=0, step=1, limit=4
  $region2: #{birealnet_forward.21} parent=0 // loop_pre_header
    _
  $region3: #{birealnet_forward.21} parent=0 // loop_header
    %s11 = sphi 0, %s15
    %p12 = scmp.ge.s32.totalorder %s11, 4
    %s18 = sphi 0, %s30
    %s19 = sphi 0, %s26
    %s20 = sphi 0, %s18
    %s21 = sphi 0, %s19
    %s22 = sphi 0, %s20
    %s23 = sphi 0, %s21
    %s35 = sphi 0, %s37
    %s38 = sphi 0, %s35
    %s39 = sphi 0, %s38
    %s55 = sphi 0, %s39
    %s59 = sphi 0, %s59
    %s61 = sphi 0, %s59
    %s62 = sphi 0, %s61
    %s76 = sphi 0, %s62
    %s84 = sphi 0, %s86
    %s87 = sphi 0, %s84
    %s88 = sphi 0, %s87
    %s104 = sphi 0, %s88
    %s110 = sphi 0, %s112
    %s113 = sphi 0, %s110
    %s114 = sphi 0, %s113
    %s130 = sphi 0, %s114
    %s136 = sphi 0, %s138
    %s139 = sphi 0, %s136
    %s140 = sphi 0, %s139
    %s156 = sphi 0, %s140
  $region4: #{birealnet_forward.21} parent=0 // loop_header_branch
    %14 = sbr.rel (%p12) target = $region8
  $region5: #{birealnet_forward.21} parent=0 // loop_body
    %s16 = ssub.s32 %s11, 1
    %s17 = ssub.s32 %s11, 2
    %s24 = sadd.s32 1, %s19
    %p25 = scmp.ge.s32.totalorder %s24, 1
    %s26 = scalar_select %p25, 0, %s24
    %s27 = sadd.s32 1, %s18
    %s28 = scalar_select %p25, %s27, %s18
    %p29 = scmp.ge.s32.totalorder %s28, 2
    %s30 = scalar_select %p29, 0, %s28
    %s31 = ssub.s32 %s18, %s30
    %s32 = ssub.s32 %s19, %s26
    %s33 = sor.u32 %s31, %s32
    %p34 = scmp.eq.s32.totalorder %s33, 0
    %s36 = sadd.s32 %s35, 1
    %s37 = scalar_select %p34, %s35, %s36
    %p40 = pneg %p34
    %p41 = scmp.eq.s32.totalorder %s11, 1
    %p42 = por %p40, %p41
    %p43 = scmp.ne.s32.totalorder %s35, %s38
    %p44 = scmp.eq.s32.totalorder %s11, 0
    %p45 = por %p43, %p44
    %p46 = scmp.ne.s32.totalorder %s35, %s38
    %p47 = scmp.eq.s32.totalorder %s16, 1
    %p48 = por %p46, %p47
    %p49 = scmp.ne.s32.totalorder %s38, %s39
    %p50 = scmp.eq.s32.totalorder %s16, 0
    %p51 = por %p49, %p50
    %p52 = scmp.ne.s32.totalorder %s38, %s39
    %p53 = scmp.eq.s32.totalorder %s17, 1
    %p54 = por %p52, %p53
    %p56 = scmp.ne.s32.totalorder %s39, %s55
    %p57 = scmp.eq.s32.totalorder %s17, 0
    %p58 = por %p56, %p57
    %s60 = sadd.s32 %s59, 1
    %p63 = scmp.eq.s32.totalorder %s11, 1
    %p64 = scmp.ne.s32.totalorder %s59, %s61
    %p65 = scmp.eq.s32.totalorder %s11, 0
    %p66 = por %p64, %p65
    %p67 = scmp.ne.s32.totalorder %s59, %s61
    %p68 = scmp.eq.s32.totalorder %s16, 1
    %p69 = por %p67, %p68
    %p70 = scmp.ne.s32.totalorder %s61, %s62
    %p71 = scmp.eq.s32.totalorder %s16, 0
    %p72 = por %p70, %p71
    %p73 = scmp.ne.s32.totalorder %s61, %s62
    %p74 = scmp.eq.s32.totalorder %s17, 1
    %p75 = por %p73, %p74
    %p77 = scmp.ne.s32.totalorder %s62, %s76
    %p78 = scmp.eq.s32.totalorder %s17, 0
    %p79 = por %p77, %p78
    %s80 = ssub.s32 %s18, %s30
    %s81 = ssub.s32 %s19, %s26
    %s82 = sor.u32 %s80, %s81
    %p83 = scmp.eq.s32.totalorder %s82, 0
    %s85 = sadd.s32 %s84, 1
    %s86 = scalar_select %p83, %s84, %s85
    %p89 = pneg %p83
    %p90 = scmp.eq.s32.totalorder %s11, 1
    %p91 = por %p89, %p90
    %p92 = scmp.ne.s32.totalorder %s84, %s87
    %p93 = scmp.eq.s32.totalorder %s11, 0
    %p94 = por %p92, %p93
    %p95 = scmp.ne.s32.totalorder %s84, %s87
    %p96 = scmp.eq.s32.totalorder %s16, 1
    %p97 = por %p95, %p96
    %p98 = scmp.ne.s32.totalorder %s87, %s88
    %p99 = scmp.eq.s32.totalorder %s16, 0
    %p100 = por %p98, %p99
    %p101 = scmp.ne.s32.totalorder %s87, %s88
    %p102 = scmp.eq.s32.totalorder %s17, 1
    %p103 = por %p101, %p102
    %p105 = scmp.ne.s32.totalorder %s88, %s104
    %p106 = scmp.eq.s32.totalorder %s17, 0
    %p107 = por %p105, %p106
    %s108 = ssub.s32 %s18, %s30
    %p109 = scmp.eq.s32.totalorder %s108, 0
    %s111 = sadd.s32 %s110, 1
    %s112 = scalar_select %p109, %s110, %s111
    %p115 = pneg %p109
    %p116 = scmp.eq.s32.totalorder %s11, 1
    %p117 = por %p115, %p116
    %p118 = scmp.ne.s32.totalorder %s110, %s113
    %p119 = scmp.eq.s32.totalorder %s11, 0
    %p120 = por %p118, %p119
    %p121 = scmp.ne.s32.totalorder %s110, %s113
    %p122 = scmp.eq.s32.totalorder %s16, 1
    %p123 = por %p121, %p122
    %p124 = scmp.ne.s32.totalorder %s113, %s114
    %p125 = scmp.eq.s32.totalorder %s16, 0
    %p126 = por %p124, %p125
    %p127 = scmp.ne.s32.totalorder %s113, %s114
    %p128 = scmp.eq.s32.totalorder %s17, 1
    %p129 = por %p127, %p128
    %p131 = scmp.ne.s32.totalorder %s114, %s130
    %p132 = scmp.eq.s32.totalorder %s17, 0
    %p133 = por %p131, %p132
    %s134 = ssub.s32 %s18, %s30
    %p135 = scmp.eq.s32.totalorder %s134, 0
    %s137 = sadd.s32 %s136, 1
    %s138 = scalar_select %p135, %s136, %s137
    %p141 = pneg %p135
    %p142 = scmp.eq.s32.totalorder %s11, 1
    %p143 = por %p141, %p142
    %p144 = scmp.ne.s32.totalorder %s136, %s139
    %p145 = scmp.eq.s32.totalorder %s11, 0
    %p146 = por %p144, %p145
    %p147 = scmp.ne.s32.totalorder %s136, %s139
    %p148 = scmp.eq.s32.totalorder %s16, 1
    %p149 = por %p147, %p148
    %p150 = scmp.ne.s32.totalorder %s139, %s140
    %p151 = scmp.eq.s32.totalorder %s16, 0
    %p152 = por %p150, %p151
    %p153 = scmp.ne.s32.totalorder %s139, %s140
    %p154 = scmp.eq.s32.totalorder %s17, 1
    %p155 = por %p153, %p154
    %p157 = scmp.ne.s32.totalorder %s140, %s156
    %p158 = scmp.eq.s32.totalorder %s17, 0
    %p159 = por %p157, %p158
    %p160 = scmp.le.s32.totalorder 1, %s11
    %p161 = scmp.lt.s32.totalorder %s11, 3
    %p162 = pnand %p160, %p161
    %p163 = pneg %p162
    // Predicated region
    $region9: #{birealnet_forward.21} parent=5 // pred_check
      _
    $region10: #{birealnet_forward.21} parent=5 // pred_check_branch
      %165 = sbr.rel (%p162) target = $region12
    $region11: #{birealnet_forward.21} parent=5 // pred_region
      %s166 = ssub.s32 %s11, 1
      // Predicated region
      $region13: #{birealnet_forward.21} parent=11 // pred_check
        %p167 = pneg %p72
      $region14: #{birealnet_forward.21} parent=11 // pred_check_branch
        %169 = sbr.rel (%p167) target = $region16
      $region15: #{birealnet_forward.21} parent=11 // pred_region
        _
      $region16: #{birealnet_forward.21} parent=11 // pred_fallthru
        _
    $region12: #{birealnet_forward.21} parent=5 // pred_fallthru
      _
    %p170 = scmp.lt.s32.totalorder %s11, 2
    // Predicated region
    $region17: #{birealnet_forward.21} parent=5 // pred_check
      %p171 = pneg %p170
    $region18: #{birealnet_forward.21} parent=5 // pred_check_branch
      %173 = sbr.rel (%p171) target = $region20
    $region19: #{birealnet_forward.21} parent=5 // pred_region
      // Predicated region
      $region21: #{birealnet_forward.21} parent=19 // pred_check
        %p174 = pneg %p45
      $region22: #{birealnet_forward.21} parent=19 // pred_check_branch
        %176 = sbr.rel (%p174) target = $region24
      $region23: #{birealnet_forward.21} parent=19 // pred_region
        %s177 = smul.u32 2, %s19
        %p178 = scmp.lt.s32.totalorder %s18, 1
        %s179 = scalar_select %p178, %s18, 1
        %p180 = scmp.lt.s32.totalorder %s177, 1
        %s181 = scalar_select %p180, %s177, 1
        %s182 = smul.addr %s179, 2
        %s183 = sadd.s32 %s181, %s182
        %s184 = smul.addr %s183, 4
        %s185 = scalar_lea.vmem %s0, %s184
        %s186 = smul.u32 2, %s19
      $region24: #{birealnet_forward.21} parent=19 // pred_fallthru
        _
    $region20: #{birealnet_forward.21} parent=5 // pred_fallthru
      _
    %p187 = scmp.le.s32.totalorder 1, %s11
    %p188 = scmp.lt.s32.totalorder %s11, 3
    %p189 = pnand %p187, %p188
    %p190 = pneg %p189
    // Predicated region
    $region25: #{birealnet_forward.21} parent=5 // pred_check
      _
    $region26: #{birealnet_forward.21} parent=5 // pred_check_branch
      %192 = sbr.rel (%p189) target = $region28
    $region27: #{birealnet_forward.21} parent=5 // pred_region
      %s193 = ssub.s32 %s11, 1
      %s194 = smul.u32 2, %s21
      %p195 = scmp.lt.s32.totalorder %s20, 1
      %s196 = scalar_select %p195, %s20, 1
      %p197 = scmp.lt.s32.totalorder %s194, 1
      %s198 = scalar_select %p197, %s194, 1
      %s199 = smul.addr %s196, 2
      %s200 = sadd.s32 %s198, %s199
      %s201 = smul.addr %s200, 4
      %s202 = scalar_lea.vmem %s0, %s201
      %p203 = pneg %p51
      %p204 = pneg %p48
      %p205 = pneg %p72
      %p206 = pneg %p69
      %p207 = pneg %p100
      %p208 = pneg %p97
      %s209 = smul.u32 2, %s21
      %p210 = scmp.lt.s32.totalorder %s20, 1
      %s211 = scalar_select %p210, %s20, 1
      %p212 = scmp.lt.s32.totalorder %s209, 1
      %s213 = scalar_select %p212, %s209, 1
      %s214 = smul.addr %s211, 2
      %s215 = sadd.s32 %s213, %s214
      %s216 = smul.addr %s215, 8
      %s217 = scalar_lea.vmem %s2, %s216
      %p218 = pneg %p126
      %p219 = pneg %p123
      %p220 = scmp.lt.s32.totalorder %s20, 1
      %s221 = scalar_select %p220, %s20, 1
      %s222 = scalar_lea.vmem %s3, %s221
      %p223 = pneg %p152
      %p224 = pneg %p149
      %p225 = scmp.lt.s32.totalorder %s20, 1
      %s226 = scalar_select %p225, %s20, 1
      %s227 = scalar_lea.vmem %s4, %s226
      %s228 = smul.u32 2, %s21
      %p229 = scmp.lt.s32.totalorder %s20, 1
      %s230 = scalar_select %p229, %s20, 1
      %p231 = scmp.lt.s32.totalorder %s228, 1
      %s232 = scalar_select %p231, %s228, 1
      %s233 = smul.addr %s230, 2
      %s234 = sadd.s32 %s232, %s233
      %s235 = smul.addr %s234, 4
      %s236 = scalar_lea.vmem %s0, %s235
      %s237 = smul.u32 2, %s21
      %s238 = smul.u32 2, %s21
      %p239 = scmp.lt.s32.totalorder %s20, 1
      %s240 = scalar_select %p239, %s20, 1
      %p241 = scmp.lt.s32.totalorder %s238, 1
      %s242 = scalar_select %p241, %s238, 1
      %s243 = smul.addr %s240, 2
      %s244 = sadd.s32 %s242, %s243
      %s245 = smul.addr %s244, 8
      %s246 = scalar_lea.vmem %s2, %s245
      %s247 = smul.u32 2, %s21
      %p248 = scmp.lt.s32.totalorder %s20, 1
      %s249 = scalar_select %p248, %s20, 1
      %s250 = scalar_lea.vmem %s3, %s249
      %p251 = scmp.lt.s32.totalorder %s20, 1
      %s252 = scalar_select %p251, %s20, 1
      %s253 = scalar_lea.vmem %s4, %s252
      %p254 = scmp.eq.s32.totalorder %s21, 0
      // Predicated region
      $region29: #{birealnet_forward.21} parent=27 // pred_check
        %p255 = pneg %p254
      $region30: #{birealnet_forward.21} parent=27 // pred_check_branch
        %257 = sbr.rel (%p255) target = $region32
      $region31: #{birealnet_forward.21} parent=27 // pred_region
        %258 = vst [vmem:[%s250] sm:$0x1] 0.0
        %259 = vst [vmem:[%s253] sm:$0x1] 0.0
      $region32: #{birealnet_forward.21} parent=27 // pred_fallthru
        _
      %v260 = vld [vmem:[%s236] sm:$0xf]
      %v261 = vld [vmem:[%s236 + $0x4] sm:$0xf]
      %v262 = vld [vmem:[%s1] sm:$0xf]
      %v263 = vld [vmem:[%s1 + $0x4] sm:$0xf]
      %v264 = vld [vmem:[%s1 + $0x8] sm:$0xf]
      %v265 = vld [vmem:[%s1 + $0xc] sm:$0xf]
      %v266 = vld [vmem:[%s1 + $0x10] sm:$0xf]
      %v267 = vld [vmem:[%s1 + $0x14] sm:$0xf]
      %v268 = vld [vmem:[%s1 + $0x18] sm:$0xf]
      %v269 = vld [vmem:[%s1 + $0x1c] sm:$0xf]
      %v270 = vld [vmem:[%s1 + $0x20] sm:$0xf]
      %v271 = vld [vmem:[%s1 + $0x24] sm:$0xf]
      %v272 = vld [vmem:[%s1 + $0x28] sm:$0xf]
      %v273 = vld [vmem:[%s1 + $0x2c] sm:$0xf]
      %v274 = vld [vmem:[%s1 + $0x30] sm:$0xf]
      %v275 = vld [vmem:[%s1 + $0x34] sm:$0xf]
      %v276 = vld [vmem:[%s1 + $0x38] sm:$0xf]
      %v277 = vld [vmem:[%s1 + $0x3c] sm:$0xf]
      %v280 = vunpack.c.l.b16 %v260
      %v281 = vunpack.c.l.b16 %v261
      %v282 = vpack.c.b16 %v281, %v280
      %v300 = vunpack.c.l.b16 %v262
      %v301 = vunpack.c.l.b16 %v263
      %v302 = vunpack.c.l.b16 %v264
      %v303 = vunpack.c.l.b16 %v265
      %v304 = vunpack.c.l.b16 %v266
      %v305 = vunpack.c.l.b16 %v267
      %v306 = vunpack.c.l.b16 %v268
      %v307 = vunpack.c.l.b16 %v269
      %v308 = vunpack.c.l.b16 %v270
      %v309 = vunpack.c.l.b16 %v271
      %v310 = vunpack.c.l.b16 %v272
      %v311 = vunpack.c.l.b16 %v273
      %v312 = vunpack.c.l.b16 %v274
      %v313 = vunpack.c.l.b16 %v275
      %v314 = vunpack.c.l.b16 %v276
      %v315 = vunpack.c.l.b16 %v277
      %v316 = vpack.c.b16 %v301, %v300
      %v317 = vpack.c.b16 %v303, %v302
      %v318 = vpack.c.b16 %v305, %v304
      %v319 = vpack.c.b16 %v307, %v306
      %v320 = vpack.c.b16 %v309, %v308
      %v321 = vpack.c.b16 %v311, %v310
      %v322 = vpack.c.b16 %v313, %v312
      %v323 = vpack.c.b16 %v315, %v314
      %332 = vmatpush.bf16.msra.mxu0 %v323
      %333 = vmatpush.bf16.msra.mxu0 %v322
      %334 = vmatpush.bf16.msra.mxu0 %v321
      %335 = vmatpush.bf16.msra.mxu0 %v320
      %336 = vmatpush.bf16.msra.mxu0 %v319
      %337 = vmatpush.bf16.msra.mxu0 %v318
      %338 = vmatpush.bf16.msra.mxu0 %v317
      %339 = vmatpush.bf16.msra.mxu0 %v316
      %340 = vmatmul.bf16.gmra.mxu0 %v282
      %v341 = vpop.f32.mrf.mxu0
      %v342 = vadd.f32 0.0, %v341
      %v343 = vpop.f32.mrf.mxu0
      %v344 = vadd.f32 0.0, %v343
      %345 = vdwg.mxu0
      %346 = vst [vmem:[%s246] sm:$0xff] %v342
      %347 = vst [vmem:[%s246 + $0x8] sm:$0xff] %v344
      %v348 = vld [vmem:[%s246] sm:$0xff]
      %v349 = vld [vmem:[%s246 + $0x8] sm:$0xff]
      %v350 = vld [vmem:[%s250] sm:$0x1]
      %v351 = vadd.f32 %v348, %v349
      %v352 = vrot.slane %v351, 4
      %v353 = vadd.f32 %v351, %v352
      %v354 = vrot.slane %v353, 2
      %v355 = vadd.f32 %v353, %v354
      %v356 = vrot.slane %v355, 1
      %v357 = vadd.f32 %v355, %v356
      %v358 = vadd.f32 %v350, %v357
      %359 = vst [vmem:[%s250] sm:$0x1] %v358
      %v360 = vld [vmem:[%s253] sm:$0x1]
      %v361 = vmul.f32 %v348, %v348
      %v362 = vmul.f32 %v349, %v349
      %v363 = vadd.f32 %v361, %v362
      %v364 = vrot.slane %v363, 4
      %v365 = vadd.f32 %v363, %v364
      %v366 = vrot.slane %v365, 2
      %v367 = vadd.f32 %v365, %v366
      %v368 = vrot.slane %v367, 1
      %v369 = vadd.f32 %v367, %v368
      %v370 = vadd.f32 %v360, %v369
      %371 = vst [vmem:[%s253] sm:$0x1] %v370
      %s372 = smul.u32 2, %s21
      %p373 = scmp.lt.s32.totalorder %s20, 1
      %s374 = scalar_select %p373, %s20, 1
      %p375 = scmp.lt.s32.totalorder %s372, 1
      %s376 = scalar_select %p375, %s372, 1
      %s377 = smul.addr %s374, 2
      %s378 = sadd.s32 %s376, %s377
      %s379 = smul.addr %s378, 8
      %s380 = scalar_lea.vmem %s2, %s379
      %p381 = scmp.lt.s32.totalorder %s20, 1
      %s382 = scalar_select %p381, %s20, 1
      %s383 = scalar_lea.vmem %s3, %s382
      %p384 = scmp.lt.s32.totalorder %s20, 1
      %s385 = scalar_select %p384, %s20, 1
      %s386 = scalar_lea.vmem %s4, %s385
      // Predicated region
      $region33: #{birealnet_forward.21} parent=27 // pred_check
        %p387 = pneg %p97
      $region34: #{birealnet_forward.21} parent=27 // pred_check_branch
        %389 = sbr.rel (%p387) target = $region36
      $region35: #{birealnet_forward.21} parent=27 // pred_region
        %s390 = smul.u32 2, %s21
      $region36: #{birealnet_forward.21} parent=27 // pred_fallthru
        _
      // Predicated region
      $region37: #{birealnet_forward.21} parent=27 // pred_check
        %p391 = pneg %p123
      $region38: #{birealnet_forward.21} parent=27 // pred_check_branch
        %393 = sbr.rel (%p391) target = $region40
      $region39: #{birealnet_forward.21} parent=27 // pred_region
        _
      $region40: #{birealnet_forward.21} parent=27 // pred_fallthru
        _
      // Predicated region
      $region41: #{birealnet_forward.21} parent=27 // pred_check
        %p394 = pneg %p149
      $region42: #{birealnet_forward.21} parent=27 // pred_check_branch
        %396 = sbr.rel (%p394) target = $region44
      $region43: #{birealnet_forward.21} parent=27 // pred_region
        _
      $region44: #{birealnet_forward.21} parent=27 // pred_fallthru
        _
    $region28: #{birealnet_forward.21} parent=5 // pred_fallthru
      _
    %p397 = scmp.le.s32.totalorder 2, %s11
    // Predicated region
    $region45: #{birealnet_forward.21} parent=5 // pred_check
      %p398 = pneg %p397
    $region46: #{birealnet_forward.21} parent=5 // pred_check_branch
      %400 = sbr.rel (%p398) target = $region48
    $region47: #{birealnet_forward.21} parent=5 // pred_region
      %s401 = ssub.s32 %s11, 2
      // Predicated region
      $region49: #{birealnet_forward.21} parent=47 // pred_check
        %p402 = pneg %p103
      $region50: #{birealnet_forward.21} parent=47 // pred_check_branch
        %404 = sbr.rel (%p402) target = $region52
      $region51: #{birealnet_forward.21} parent=47 // pred_region
        %s405 = smul.u32 2, %s23
        %p406 = scmp.lt.s32.totalorder %s22, 1
        %s407 = scalar_select %p406, %s22, 1
        %p408 = scmp.lt.s32.totalorder %s405, 1
        %s409 = scalar_select %p408, %s405, 1
        %s410 = smul.addr %s407, 2
        %s411 = sadd.s32 %s409, %s410
        %s412 = smul.addr %s411, 8
        %s413 = scalar_lea.vmem %s2, %s412
      $region52: #{birealnet_forward.21} parent=47 // pred_fallthru
        _
      // Predicated region
      $region53: #{birealnet_forward.21} parent=47 // pred_check
        %p414 = pneg %p129
      $region54: #{birealnet_forward.21} parent=47 // pred_check_branch
        %416 = sbr.rel (%p414) target = $region56
      $region55: #{birealnet_forward.21} parent=47 // pred_region
        %p417 = scmp.lt.s32.totalorder %s22, 1
        %s418 = scalar_select %p417, %s22, 1
        %s419 = scalar_lea.vmem %s3, %s418
      $region56: #{birealnet_forward.21} parent=47 // pred_fallthru
        _
      // Predicated region
      $region57: #{birealnet_forward.21} parent=47 // pred_check
        %p420 = pneg %p155
      $region58: #{birealnet_forward.21} parent=47 // pred_check_branch
        %422 = sbr.rel (%p420) target = $region60
      $region59: #{birealnet_forward.21} parent=47 // pred_region
        %p423 = scmp.lt.s32.totalorder %s22, 1
        %s424 = scalar_select %p423, %s22, 1
        %s425 = scalar_lea.vmem %s4, %s424
      $region60: #{birealnet_forward.21} parent=47 // pred_fallthru
        _
    $region48: #{birealnet_forward.21} parent=5 // pred_fallthru
      _
  $region6: #{birealnet_forward.21} parent=0 // loop_footer
    %s15 = sadd.s32 1, %s11
  $region7: #{birealnet_forward.21} parent=0 // loop_footer_branch
    %10 = sbr.rel target = $region3
  $region8: #{birealnet_forward.21} parent=0 // loop_exit
    _

// kernel: birealnet_forward.23
$region0: #{birealnet_forward.23}
  #allocation0 [shape = 'u32[]', space=smem, size = 0x4, offset = 0x4, fixed_abs, tag = 'smem constant byte address 0x4 - core index']
  #allocation1 [shape = 'u32[72,128]{1,0:T(1,128)}', space=vmem, size = 0x9000, scoped, tag = 'internal scratch']
  %s0 = inlined_call_operand.vmem [shape: f32[32,128], index: 0, kind: input, shape index: {}]
  %s1 = inlined_call_operand.vmem [shape: f32[1,128], index: 1, kind: input, shape index: {}]
  %s2 = inlined_call_operand.vmem [shape: f32[1,128], index: 2, kind: input, shape index: {}]
  %s3 = inlined_call_operand.vmem [shape: f32[32,128], index: 3, kind: input, shape index: {}]
  %s4 = inlined_call_operand.vmem [shape: f32[32,128], index: 4, kind: output, shape index: {}]
  %s5 = sld [smem:[#allocation0]]
  $region26: #{birealnet_forward.23} parent=0
    _
  %s7 = ssub.s32 1, %s5
  %s8 = scalar_select 0, %s7, %s5
  // Predicated region
  $region2: #{birealnet_forward.23} parent=0 // pred_check
    _
  $region3: #{birealnet_forward.23} parent=0 // pred_check_branch
    %10 = sbr.rel (0) target = $region5
  $region4: #{birealnet_forward.23} parent=0 // pred_region
    _
  $region5: #{birealnet_forward.23} parent=0 // pred_fallthru
    _
  // Predicated region
  $region6: #{birealnet_forward.23} parent=0 // pred_check
    _
  $region7: #{birealnet_forward.23} parent=0 // pred_check_branch
    %12 = sbr.rel (0) target = $region9
  $region8: #{birealnet_forward.23} parent=0 // pred_region
    _
  $region9: #{birealnet_forward.23} parent=0 // pred_fallthru
    _
  // Predicated region
  $region10: #{birealnet_forward.23} parent=0 // pred_check
    _
  $region11: #{birealnet_forward.23} parent=0 // pred_check_branch
    %14 = sbr.rel (0) target = $region13
  $region12: #{birealnet_forward.23} parent=0 // pred_region
    _
  $region13: #{birealnet_forward.23} parent=0 // pred_fallthru
    _
  // Predicated region
  $region14: #{birealnet_forward.23} parent=0 // pred_check
    _
  $region15: #{birealnet_forward.23} parent=0 // pred_check_branch
    %16 = sbr.rel (0) target = $region17
  $region16: #{birealnet_forward.23} parent=0 // pred_region
    _
  $region17: #{birealnet_forward.23} parent=0 // pred_fallthru
    _
  %v17 = vld [vmem:[%s0] sm:$0xff]
  %v18 = vld [vmem:[%s0 + $0x8] sm:$0xff]
  %v19 = vld [vmem:[%s0 + $0x10] sm:$0xff]
  %v20 = vld [vmem:[%s0 + $0x18] sm:$0xff]
  %v21 = vld [vmem:[%s1] sm:$0x1]
  %v23 = vperm.slane %v21, 0
  %v25 = vmul.f32 %v17, %v23
  %v26 = vmul.f32 %v18, %v23
  %v27 = vmul.f32 %v19, %v23
  %v28 = vmul.f32 %v20, %v23
  %v29 = vld [vmem:[%s2] sm:$0x1]
  %v31 = vperm.slane %v29, 0
  %v33 = vadd.f32 %v25, %v31
  %v34 = vadd.f32 %v26, %v31
  %v35 = vadd.f32 %v27, %v31
  %v36 = vadd.f32 %v28, %v31
  %v37 = vld [vmem:[%s3] sm:$0xff]
  %v38 = vld [vmem:[%s3 + $0x8] sm:$0xff]
  %v39 = vld [vmem:[%s3 + $0x10] sm:$0xff]
  %v40 = vld [vmem:[%s3 + $0x18] sm:$0xff]
  %v41 = vadd.f32 %v33, %v37
  %v42 = vadd.f32 %v34, %v38
  %v43 = vadd.f32 %v35, %v39
  %v44 = vadd.f32 %v36, %v40
  %45 = vst [vmem:[%s4] sm:$0xff] %v41
  %46 = vst [vmem:[%s4 + $0x8] sm:$0xff] %v42
  %47 = vst [vmem:[%s4 + $0x10] sm:$0xff] %v43
  %48 = vst [vmem:[%s4 + $0x18] sm:$0xff] %v44
  // Predicated region
  $region18: #{birealnet_forward.23} parent=0 // pred_check
    _
  $region19: #{birealnet_forward.23} parent=0 // pred_check_branch
    %50 = sbr.rel (0) target = $region21
  $region20: #{birealnet_forward.23} parent=0 // pred_region
    _
  $region21: #{birealnet_forward.23} parent=0 // pred_fallthru
    _
  // Predicated region
  $region22: #{birealnet_forward.23} parent=0 // pred_check
    _
  $region23: #{birealnet_forward.23} parent=0 // pred_check_branch
    %52 = sbr.rel (0) target = $region25
  $region24: #{birealnet_forward.23} parent=0 // pred_region
    _
  $region25: #{birealnet_forward.23} parent=0 // pred_fallthru
    _

// kernel: birealnet_forward.20
$region0: #{birealnet_forward.20}
  #allocation0 [shape = 'u32[]', space=smem, size = 0x4, offset = 0x4, fixed_abs, tag = 'smem constant byte address 0x4 - core index']
  #allocation1 [shape = 'u32[72,128]{1,0:T(1,128)}', space=vmem, size = 0x9000, scoped, tag = 'internal scratch']
  %s0 = inlined_call_operand.vmem [shape: bf16[2,16,256], index: 0, kind: input, shape index: {}]
  %s1 = inlined_call_operand.vmem [shape: bf16[2,128,128], index: 1, kind: input, shape index: {}]
  %s2 = inlined_call_operand.vmem [shape: f32[2,16,128], index: 2, kind: output, shape index: {0}]
  %s3 = inlined_call_operand.vmem [shape: f32[2,1,128], index: 3, kind: output, shape index: {1}]
  %s4 = inlined_call_operand.vmem [shape: f32[2,1,128], index: 4, kind: output, shape index: {2}]
  %5 = xla_tuple %s2, %s3, %s4
  %s6 = sld [smem:[#allocation0]]
  $region61: #{birealnet_forward.20} parent=0
    _
  %s8 = ssub.s32 1, %s6
  %s9 = scalar_select 0, %s8, %s6
  loop: start=0, step=1, limit=4
  $region2: #{birealnet_forward.20} parent=0 // loop_pre_header
    _
  $region3: #{birealnet_forward.20} parent=0 // loop_header
    %s11 = sphi 0, %s15
    %p12 = scmp.ge.s32.totalorder %s11, 4
    %s18 = sphi 0, %s30
    %s19 = sphi 0, %s26
    %s20 = sphi 0, %s18
    %s21 = sphi 0, %s19
    %s22 = sphi 0, %s20
    %s23 = sphi 0, %s21
    %s35 = sphi 0, %s37
    %s38 = sphi 0, %s35
    %s39 = sphi 0, %s38
    %s55 = sphi 0, %s39
    %s59 = sphi 0, %s59
    %s61 = sphi 0, %s59
    %s62 = sphi 0, %s61
    %s76 = sphi 0, %s62
    %s84 = sphi 0, %s86
    %s87 = sphi 0, %s84
    %s88 = sphi 0, %s87
    %s104 = sphi 0, %s88
    %s110 = sphi 0, %s112
    %s113 = sphi 0, %s110
    %s114 = sphi 0, %s113
    %s130 = sphi 0, %s114
    %s136 = sphi 0, %s138
    %s139 = sphi 0, %s136
    %s140 = sphi 0, %s139
    %s156 = sphi 0, %s140
  $region4: #{birealnet_forward.20} parent=0 // loop_header_branch
    %14 = sbr.rel (%p12) target = $region8
  $region5: #{birealnet_forward.20} parent=0 // loop_body
    %s16 = ssub.s32 %s11, 1
    %s17 = ssub.s32 %s11, 2
    %s24 = sadd.s32 1, %s19
    %p25 = scmp.ge.s32.totalorder %s24, 1
    %s26 = scalar_select %p25, 0, %s24
    %s27 = sadd.s32 1, %s18
    %s28 = scalar_select %p25, %s27, %s18
    %p29 = scmp.ge.s32.totalorder %s28, 2
    %s30 = scalar_select %p29, 0, %s28
    %s31 = ssub.s32 %s18, %s30
    %s32 = ssub.s32 %s19, %s26
    %s33 = sor.u32 %s31, %s32
    %p34 = scmp.eq.s32.totalorder %s33, 0
    %s36 = sadd.s32 %s35, 1
    %s37 = scalar_select %p34, %s35, %s36
    %p40 = pneg %p34
    %p41 = scmp.eq.s32.totalorder %s11, 1
    %p42 = por %p40, %p41
    %p43 = scmp.ne.s32.totalorder %s35, %s38
    %p44 = scmp.eq.s32.totalorder %s11, 0
    %p45 = por %p43, %p44
    %p46 = scmp.ne.s32.totalorder %s35, %s38
    %p47 = scmp.eq.s32.totalorder %s16, 1
    %p48 = por %p46, %p47
    %p49 = scmp.ne.s32.totalorder %s38, %s39
    %p50 = scmp.eq.s32.totalorder %s16, 0
    %p51 = por %p49, %p50
    %p52 = scmp.ne.s32.totalorder %s38, %s39
    %p53 = scmp.eq.s32.totalorder %s17, 1
    %p54 = por %p52, %p53
    %p56 = scmp.ne.s32.totalorder %s39, %s55
    %p57 = scmp.eq.s32.totalorder %s17, 0
    %p58 = por %p56, %p57
    %s60 = sadd.s32 %s59, 1
    %p63 = scmp.eq.s32.totalorder %s11, 1
    %p64 = scmp.ne.s32.totalorder %s59, %s61
    %p65 = scmp.eq.s32.totalorder %s11, 0
    %p66 = por %p64, %p65
    %p67 = scmp.ne.s32.totalorder %s59, %s61
    %p68 = scmp.eq.s32.totalorder %s16, 1
    %p69 = por %p67, %p68
    %p70 = scmp.ne.s32.totalorder %s61, %s62
    %p71 = scmp.eq.s32.totalorder %s16, 0
    %p72 = por %p70, %p71
    %p73 = scmp.ne.s32.totalorder %s61, %s62
    %p74 = scmp.eq.s32.totalorder %s17, 1
    %p75 = por %p73, %p74
    %p77 = scmp.ne.s32.totalorder %s62, %s76
    %p78 = scmp.eq.s32.totalorder %s17, 0
    %p79 = por %p77, %p78
    %s80 = ssub.s32 %s18, %s30
    %s81 = ssub.s32 %s19, %s26
    %s82 = sor.u32 %s80, %s81
    %p83 = scmp.eq.s32.totalorder %s82, 0
    %s85 = sadd.s32 %s84, 1
    %s86 = scalar_select %p83, %s84, %s85
    %p89 = pneg %p83
    %p90 = scmp.eq.s32.totalorder %s11, 1
    %p91 = por %p89, %p90
    %p92 = scmp.ne.s32.totalorder %s84, %s87
    %p93 = scmp.eq.s32.totalorder %s11, 0
    %p94 = por %p92, %p93
    %p95 = scmp.ne.s32.totalorder %s84, %s87
    %p96 = scmp.eq.s32.totalorder %s16, 1
    %p97 = por %p95, %p96
    %p98 = scmp.ne.s32.totalorder %s87, %s88
    %p99 = scmp.eq.s32.totalorder %s16, 0
    %p100 = por %p98, %p99
    %p101 = scmp.ne.s32.totalorder %s87, %s88
    %p102 = scmp.eq.s32.totalorder %s17, 1
    %p103 = por %p101, %p102
    %p105 = scmp.ne.s32.totalorder %s88, %s104
    %p106 = scmp.eq.s32.totalorder %s17, 0
    %p107 = por %p105, %p106
    %s108 = ssub.s32 %s18, %s30
    %p109 = scmp.eq.s32.totalorder %s108, 0
    %s111 = sadd.s32 %s110, 1
    %s112 = scalar_select %p109, %s110, %s111
    %p115 = pneg %p109
    %p116 = scmp.eq.s32.totalorder %s11, 1
    %p117 = por %p115, %p116
    %p118 = scmp.ne.s32.totalorder %s110, %s113
    %p119 = scmp.eq.s32.totalorder %s11, 0
    %p120 = por %p118, %p119
    %p121 = scmp.ne.s32.totalorder %s110, %s113
    %p122 = scmp.eq.s32.totalorder %s16, 1
    %p123 = por %p121, %p122
    %p124 = scmp.ne.s32.totalorder %s113, %s114
    %p125 = scmp.eq.s32.totalorder %s16, 0
    %p126 = por %p124, %p125
    %p127 = scmp.ne.s32.totalorder %s113, %s114
    %p128 = scmp.eq.s32.totalorder %s17, 1
    %p129 = por %p127, %p128
    %p131 = scmp.ne.s32.totalorder %s114, %s130
    %p132 = scmp.eq.s32.totalorder %s17, 0
    %p133 = por %p131, %p132
    %s134 = ssub.s32 %s18, %s30
    %p135 = scmp.eq.s32.totalorder %s134, 0
    %s137 = sadd.s32 %s136, 1
    %s138 = scalar_select %p135, %s136, %s137
    %p141 = pneg %p135
    %p142 = scmp.eq.s32.totalorder %s11, 1
    %p143 = por %p141, %p142
    %p144 = scmp.ne.s32.totalorder %s136, %s139
    %p145 = scmp.eq.s32.totalorder %s11, 0
    %p146 = por %p144, %p145
    %p147 = scmp.ne.s32.totalorder %s136, %s139
    %p148 = scmp.eq.s32.totalorder %s16, 1
    %p149 = por %p147, %p148
    %p150 = scmp.ne.s32.totalorder %s139, %s140
    %p151 = scmp.eq.s32.totalorder %s16, 0
    %p152 = por %p150, %p151
    %p153 = scmp.ne.s32.totalorder %s139, %s140
    %p154 = scmp.eq.s32.totalorder %s17, 1
    %p155 = por %p153, %p154
    %p157 = scmp.ne.s32.totalorder %s140, %s156
    %p158 = scmp.eq.s32.totalorder %s17, 0
    %p159 = por %p157, %p158
    %p160 = scmp.le.s32.totalorder 1, %s11
    %p161 = scmp.lt.s32.totalorder %s11, 3
    %p162 = pnand %p160, %p161
    %p163 = pneg %p162
    // Predicated region
    $region9: #{birealnet_forward.20} parent=5 // pred_check
      _
    $region10: #{birealnet_forward.20} parent=5 // pred_check_branch
      %165 = sbr.rel (%p162) target = $region12
    $region11: #{birealnet_forward.20} parent=5 // pred_region
      %s166 = ssub.s32 %s11, 1
      // Predicated region
      $region13: #{birealnet_forward.20} parent=11 // pred_check
        %p167 = pneg %p72
      $region14: #{birealnet_forward.20} parent=11 // pred_check_branch
        %169 = sbr.rel (%p167) target = $region16
      $region15: #{birealnet_forward.20} parent=11 // pred_region
        _
      $region16: #{birealnet_forward.20} parent=11 // pred_fallthru
        _
    $region12: #{birealnet_forward.20} parent=5 // pred_fallthru
      _
    %p170 = scmp.lt.s32.totalorder %s11, 2
    // Predicated region
    $region17: #{birealnet_forward.20} parent=5 // pred_check
      %p171 = pneg %p170
    $region18: #{birealnet_forward.20} parent=5 // pred_check_branch
      %173 = sbr.rel (%p171) target = $region20
    $region19: #{birealnet_forward.20} parent=5 // pred_region
      // Predicated region
      $region21: #{birealnet_forward.20} parent=19 // pred_check
        %p174 = pneg %p45
      $region22: #{birealnet_forward.20} parent=19 // pred_check_branch
        %176 = sbr.rel (%p174) target = $region24
      $region23: #{birealnet_forward.20} parent=19 // pred_region
        %s177 = smul.u32 2, %s19
        %p178 = scmp.lt.s32.totalorder %s18, 1
        %s179 = scalar_select %p178, %s18, 1
        %p180 = scmp.lt.s32.totalorder %s177, 1
        %s181 = scalar_select %p180, %s177, 1
        %s182 = smul.addr %s181, 2
        %s183 = smul.addr %s179, 4
        %s184 = sadd.s32 %s182, %s183
        %s185 = smul.addr %s184, 4
        %s186 = scalar_lea.vmem %s0, %s185
        %s187 = smul.u32 2, %s19
      $region24: #{birealnet_forward.20} parent=19 // pred_fallthru
        _
    $region20: #{birealnet_forward.20} parent=5 // pred_fallthru
      _
    %p188 = scmp.le.s32.totalorder 1, %s11
    %p189 = scmp.lt.s32.totalorder %s11, 3
    %p190 = pnand %p188, %p189
    %p191 = pneg %p190
    // Predicated region
    $region25: #{birealnet_forward.20} parent=5 // pred_check
      _
    $region26: #{birealnet_forward.20} parent=5 // pred_check_branch
      %193 = sbr.rel (%p190) target = $region28
    $region27: #{birealnet_forward.20} parent=5 // pred_region
      %s194 = ssub.s32 %s11, 1
      %s195 = smul.u32 2, %s21
      %p196 = scmp.lt.s32.totalorder %s20, 1
      %s197 = scalar_select %p196, %s20, 1
      %p198 = scmp.lt.s32.totalorder %s195, 1
      %s199 = scalar_select %p198, %s195, 1
      %s200 = smul.addr %s199, 2
      %s201 = smul.addr %s197, 4
      %s202 = sadd.s32 %s200, %s201
      %s203 = smul.addr %s202, 4
      %s204 = scalar_lea.vmem %s0, %s203
      %p205 = pneg %p51
      %p206 = pneg %p48
      %p207 = pneg %p72
      %p208 = pneg %p69
      %p209 = pneg %p100
      %p210 = pneg %p97
      %s211 = smul.u32 2, %s21
      %p212 = scmp.lt.s32.totalorder %s20, 1
      %s213 = scalar_select %p212, %s20, 1
      %p214 = scmp.lt.s32.totalorder %s211, 1
      %s215 = scalar_select %p214, %s211, 1
      %s216 = smul.addr %s213, 2
      %s217 = sadd.s32 %s215, %s216
      %s218 = smul.addr %s217, 8
      %s219 = scalar_lea.vmem %s2, %s218
      %p220 = pneg %p126
      %p221 = pneg %p123
      %p222 = scmp.lt.s32.totalorder %s20, 1
      %s223 = scalar_select %p222, %s20, 1
      %s224 = scalar_lea.vmem %s3, %s223
      %p225 = pneg %p152
      %p226 = pneg %p149
      %p227 = scmp.lt.s32.totalorder %s20, 1
      %s228 = scalar_select %p227, %s20, 1
      %s229 = scalar_lea.vmem %s4, %s228
      %s230 = smul.u32 2, %s21
      %p231 = scmp.lt.s32.totalorder %s20, 1
      %s232 = scalar_select %p231, %s20, 1
      %p233 = scmp.lt.s32.totalorder %s230, 1
      %s234 = scalar_select %p233, %s230, 1
      %s235 = smul.addr %s234, 2
      %s236 = smul.addr %s232, 4
      %s237 = sadd.s32 %s235, %s236
      %s238 = smul.addr %s237, 4
      %s239 = scalar_lea.vmem %s0, %s238
      %s240 = smul.u32 2, %s21
      %s241 = smul.u32 2, %s21
      %p242 = scmp.lt.s32.totalorder %s20, 1
      %s243 = scalar_select %p242, %s20, 1
      %p244 = scmp.lt.s32.totalorder %s241, 1
      %s245 = scalar_select %p244, %s241, 1
      %s246 = smul.addr %s243, 2
      %s247 = sadd.s32 %s245, %s246
      %s248 = smul.addr %s247, 8
      %s249 = scalar_lea.vmem %s2, %s248
      %s250 = smul.u32 2, %s21
      %p251 = scmp.lt.s32.totalorder %s20, 1
      %s252 = scalar_select %p251, %s20, 1
      %s253 = scalar_lea.vmem %s3, %s252
      %p254 = scmp.lt.s32.totalorder %s20, 1
      %s255 = scalar_select %p254, %s20, 1
      %s256 = scalar_lea.vmem %s4, %s255
      %p257 = scmp.eq.s32.totalorder %s21, 0
      // Predicated region
      $region29: #{birealnet_forward.20} parent=27 // pred_check
        %p258 = pneg %p257
      $region30: #{birealnet_forward.20} parent=27 // pred_check_branch
        %260 = sbr.rel (%p258) target = $region32
      $region31: #{birealnet_forward.20} parent=27 // pred_region
        %261 = vst [vmem:[%s253] sm:$0x1] 0.0
        %262 = vst [vmem:[%s256] sm:$0x1] 0.0
      $region32: #{birealnet_forward.20} parent=27 // pred_fallthru
        _
      %v263 = vld [vmem:[%s239] sm:$0xf]
      %v264 = vld [vmem:[%s239 + $0x8] sm:$0xf]
      %v265 = vld [vmem:[%s1] sm:$0xf]
      %v266 = vld [vmem:[%s1 + $0x4] sm:$0xf]
      %v267 = vld [vmem:[%s1 + $0x8] sm:$0xf]
      %v268 = vld [vmem:[%s1 + $0xc] sm:$0xf]
      %v269 = vld [vmem:[%s1 + $0x10] sm:$0xf]
      %v270 = vld [vmem:[%s1 + $0x14] sm:$0xf]
      %v271 = vld [vmem:[%s1 + $0x18] sm:$0xf]
      %v272 = vld [vmem:[%s1 + $0x1c] sm:$0xf]
      %v273 = vld [vmem:[%s1 + $0x20] sm:$0xf]
      %v274 = vld [vmem:[%s1 + $0x24] sm:$0xf]
      %v275 = vld [vmem:[%s1 + $0x28] sm:$0xf]
      %v276 = vld [vmem:[%s1 + $0x2c] sm:$0xf]
      %v277 = vld [vmem:[%s1 + $0x30] sm:$0xf]
      %v278 = vld [vmem:[%s1 + $0x34] sm:$0xf]
      %v279 = vld [vmem:[%s1 + $0x38] sm:$0xf]
      %v280 = vld [vmem:[%s1 + $0x3c] sm:$0xf]
      %v283 = vunpack.c.l.b16 %v263
      %v284 = vunpack.c.l.b16 %v264
      %v285 = vpack.c.b16 %v284, %v283
      %v303 = vunpack.c.l.b16 %v265
      %v304 = vunpack.c.l.b16 %v266
      %v305 = vunpack.c.l.b16 %v267
      %v306 = vunpack.c.l.b16 %v268
      %v307 = vunpack.c.l.b16 %v269
      %v308 = vunpack.c.l.b16 %v270
      %v309 = vunpack.c.l.b16 %v271
      %v310 = vunpack.c.l.b16 %v272
      %v311 = vunpack.c.l.b16 %v273
      %v312 = vunpack.c.l.b16 %v274
      %v313 = vunpack.c.l.b16 %v275
      %v314 = vunpack.c.l.b16 %v276
      %v315 = vunpack.c.l.b16 %v277
      %v316 = vunpack.c.l.b16 %v278
      %v317 = vunpack.c.l.b16 %v279
      %v318 = vunpack.c.l.b16 %v280
      %v319 = vpack.c.b16 %v304, %v303
      %v320 = vpack.c.b16 %v306, %v305
      %v321 = vpack.c.b16 %v308, %v307
      %v322 = vpack.c.b16 %v310, %v309
      %v323 = vpack.c.b16 %v312, %v311
      %v324 = vpack.c.b16 %v314, %v313
      %v325 = vpack.c.b16 %v316, %v315
      %v326 = vpack.c.b16 %v318, %v317
      %335 = vmatpush.bf16.msra.mxu0 %v326
      %336 = vmatpush.bf16.msra.mxu0 %v325
      %337 = vmatpush.bf16.msra.mxu0 %v324
      %338 = vmatpush.bf16.msra.mxu0 %v323
      %339 = vmatpush.bf16.msra.mxu0 %v322
      %340 = vmatpush.bf16.msra.mxu0 %v321
      %341 = vmatpush.bf16.msra.mxu0 %v320
      %342 = vmatpush.bf16.msra.mxu0 %v319
      %343 = vmatmul.bf16.gmra.mxu0 %v285
      %v344 = vpop.f32.mrf.mxu0
      %v345 = vadd.f32 0.0, %v344
      %v346 = vpop.f32.mrf.mxu0
      %v347 = vadd.f32 0.0, %v346
      %348 = vdwg.mxu0
      %349 = vst [vmem:[%s249] sm:$0xff] %v345
      %350 = vst [vmem:[%s249 + $0x8] sm:$0xff] %v347
      %v351 = vld [vmem:[%s249] sm:$0xff]
      %v352 = vld [vmem:[%s249 + $0x8] sm:$0xff]
      %v353 = vld [vmem:[%s239 + $0x4] sm:$0xf]
      %v354 = vld [vmem:[%s239 + $0xc] sm:$0xf]
      %s355 = scalar_lea.vmem %s1, 64
      %v356 = vld [vmem:[%s355] sm:$0xf]
      %v357 = vld [vmem:[%s355 + $0x4] sm:$0xf]
      %v358 = vld [vmem:[%s355 + $0x8] sm:$0xf]
      %v359 = vld [vmem:[%s355 + $0xc] sm:$0xf]
      %v360 = vld [vmem:[%s355 + $0x10] sm:$0xf]
      %v361 = vld [vmem:[%s355 + $0x14] sm:$0xf]
      %v362 = vld [vmem:[%s355 + $0x18] sm:$0xf]
      %v363 = vld [vmem:[%s355 + $0x1c] sm:$0xf]
      %v364 = vld [vmem:[%s355 + $0x20] sm:$0xf]
      %v365 = vld [vmem:[%s355 + $0x24] sm:$0xf]
      %v366 = vld [vmem:[%s355 + $0x28] sm:$0xf]
      %v367 = vld [vmem:[%s355 + $0x2c] sm:$0xf]
      %v368 = vld [vmem:[%s355 + $0x30] sm:$0xf]
      %v369 = vld [vmem:[%s355 + $0x34] sm:$0xf]
      %v370 = vld [vmem:[%s355 + $0x38] sm:$0xf]
      %v371 = vld [vmem:[%s355 + $0x3c] sm:$0xf]
      %v374 = vunpack.c.l.b16 %v353
      %v375 = vunpack.c.l.b16 %v354
      %v376 = vpack.c.b16 %v375, %v374
      %v394 = vunpack.c.l.b16 %v356
      %v395 = vunpack.c.l.b16 %v357
      %v396 = vunpack.c.l.b16 %v358
      %v397 = vunpack.c.l.b16 %v359
      %v398 = vunpack.c.l.b16 %v360
      %v399 = vunpack.c.l.b16 %v361
      %v400 = vunpack.c.l.b16 %v362
      %v401 = vunpack.c.l.b16 %v363
      %v402 = vunpack.c.l.b16 %v364
      %v403 = vunpack.c.l.b16 %v365
      %v404 = vunpack.c.l.b16 %v366
      %v405 = vunpack.c.l.b16 %v367
      %v406 = vunpack.c.l.b16 %v368
      %v407 = vunpack.c.l.b16 %v369
      %v408 = vunpack.c.l.b16 %v370
      %v409 = vunpack.c.l.b16 %v371
      %v410 = vpack.c.b16 %v395, %v394
      %v411 = vpack.c.b16 %v397, %v396
      %v412 = vpack.c.b16 %v399, %v398
      %v413 = vpack.c.b16 %v401, %v400
      %v414 = vpack.c.b16 %v403, %v402
      %v415 = vpack.c.b16 %v405, %v404
      %v416 = vpack.c.b16 %v407, %v406
      %v417 = vpack.c.b16 %v409, %v408
      %426 = vmatpush.bf16.msra.mxu0 %v417
      %427 = vmatpush.bf16.msra.mxu0 %v416
      %428 = vmatpush.bf16.msra.mxu0 %v415
      %429 = vmatpush.bf16.msra.mxu0 %v414
      %430 = vmatpush.bf16.msra.mxu0 %v413
      %431 = vmatpush.bf16.msra.mxu0 %v412
      %432 = vmatpush.bf16.msra.mxu0 %v411
      %433 = vmatpush.bf16.msra.mxu0 %v410
      %434 = vmatmul.bf16.gmra.mxu0 %v376
      %v435 = vpop.f32.mrf.mxu0
      %v436 = vadd.f32 0.0, %v435
      %v437 = vpop.f32.mrf.mxu0
      %v438 = vadd.f32 0.0, %v437
      %439 = vdwg.mxu0
      %v440 = vadd.f32 %v351, %v436
      %v441 = vadd.f32 %v352, %v438
      %442 = vst [vmem:[%s249] sm:$0xff] %v440
      %443 = vst [vmem:[%s249 + $0x8] sm:$0xff] %v441
      %v444 = vld [vmem:[%s249] sm:$0xff]
      %v445 = vld [vmem:[%s249 + $0x8] sm:$0xff]
      %v446 = vld [vmem:[%s253] sm:$0x1]
      %v447 = vadd.f32 %v444, %v445
      %v448 = vrot.slane %v447, 4
      %v449 = vadd.f32 %v447, %v448
      %v450 = vrot.slane %v449, 2
      %v451 = vadd.f32 %v449, %v450
      %v452 = vrot.slane %v451, 1
      %v453 = vadd.f32 %v451, %v452
      %v454 = vadd.f32 %v446, %v453
      %455 = vst [vmem:[%s253] sm:$0x1] %v454
      %v456 = vld [vmem:[%s256] sm:$0x1]
      %v457 = vmul.f32 %v444, %v444
      %v458 = vmul.f32 %v445, %v445
      %v459 = vadd.f32 %v457, %v458
      %v460 = vrot.slane %v459, 4
      %v461 = vadd.f32 %v459, %v460
      %v462 = vrot.slane %v461, 2
      %v463 = vadd.f32 %v461, %v462
      %v464 = vrot.slane %v463, 1
      %v465 = vadd.f32 %v463, %v464
      %v466 = vadd.f32 %v456, %v465
      %467 = vst [vmem:[%s256] sm:$0x1] %v466
      %s468 = smul.u32 2, %s21
      %p469 = scmp.lt.s32.totalorder %s20, 1
      %s470 = scalar_select %p469, %s20, 1
      %p471 = scmp.lt.s32.totalorder %s468, 1
      %s472 = scalar_select %p471, %s468, 1
      %s473 = smul.addr %s470, 2
      %s474 = sadd.s32 %s472, %s473
      %s475 = smul.addr %s474, 8
      %s476 = scalar_lea.vmem %s2, %s475
      %p477 = scmp.lt.s32.totalorder %s20, 1
      %s478 = scalar_select %p477, %s20, 1
      %s479 = scalar_lea.vmem %s3, %s478
      %p480 = scmp.lt.s32.totalorder %s20, 1
      %s481 = scalar_select %p480, %s20, 1
      %s482 = scalar_lea.vmem %s4, %s481
      // Predicated region
      $region33: #{birealnet_forward.20} parent=27 // pred_check
        %p483 = pneg %p97
      $region34: #{birealnet_forward.20} parent=27 // pred_check_branch
        %485 = sbr.rel (%p483) target = $region36
      $region35: #{birealnet_forward.20} parent=27 // pred_region
        %s486 = smul.u32 2, %s21
      $region36: #{birealnet_forward.20} parent=27 // pred_fallthru
        _
      // Predicated region
      $region37: #{birealnet_forward.20} parent=27 // pred_check
        %p487 = pneg %p123
      $region38: #{birealnet_forward.20} parent=27 // pred_check_branch
        %489 = sbr.rel (%p487) target = $region40
      $region39: #{birealnet_forward.20} parent=27 // pred_region
        _
      $region40: #{birealnet_forward.20} parent=27 // pred_fallthru
        _
      // Predicated region
      $region41: #{birealnet_forward.20} parent=27 // pred_check
        %p490 = pneg %p149
      $region42: #{birealnet_forward.20} parent=27 // pred_check_branch
        %492 = sbr.rel (%p490) target = $region44
      $region43: #{birealnet_forward.20} parent=27 // pred_region
        _
      $region44: #{birealnet_forward.20} parent=27 // pred_fallthru
        _
    $region28: #{birealnet_forward.20} parent=5 // pred_fallthru
      _
    %p493 = scmp.le.s32.totalorder 2, %s11
    // Predicated region
    $region45: #{birealnet_forward.20} parent=5 // pred_check
      %p494 = pneg %p493
    $region46: #{birealnet_forward.20} parent=5 // pred_check_branch
      %496 = sbr.rel (%p494) target = $region48
    $region47: #{birealnet_forward.20} parent=5 // pred_region
      %s497 = ssub.s32 %s11, 2
      // Predicated region
      $region49: #{birealnet_forward.20} parent=47 // pred_check
        %p498 = pneg %p103
      $region50: #{birealnet_forward.20} parent=47 // pred_check_branch
        %500 = sbr.rel (%p498) target = $region52
      $region51: #{birealnet_forward.20} parent=47 // pred_region
        %s501 = smul.u32 2, %s23
        %p502 = scmp.lt.s32.totalorder %s22, 1
        %s503 = scalar_select %p502, %s22, 1
        %p504 = scmp.lt.s32.totalorder %s501, 1
        %s505 = scalar_select %p504, %s501, 1
        %s506 = smul.addr %s503, 2
        %s507 = sadd.s32 %s505, %s506
        %s508 = smul.addr %s507, 8
        %s509 = scalar_lea.vmem %s2, %s508
      $region52: #{birealnet_forward.20} parent=47 // pred_fallthru
        _
      // Predicated region
      $region53: #{birealnet_forward.20} parent=47 // pred_check
        %p510 = pneg %p129
      $region54: #{birealnet_forward.20} parent=47 // pred_check_branch
        %512 = sbr.rel (%p510) target = $region56
      $region55: #{birealnet_forward.20} parent=47 // pred_region
        %p513 = scmp.lt.s32.totalorder %s22, 1
        %s514 = scalar_select %p513, %s22, 1
        %s515 = scalar_lea.vmem %s3, %s514
      $region56: #{birealnet_forward.20} parent=47 // pred_fallthru
        _
      // Predicated region
      $region57: #{birealnet_forward.20} parent=47 // pred_check
        %p516 = pneg %p155
      $region58: #{birealnet_forward.20} parent=47 // pred_check_branch
        %518 = sbr.rel (%p516) target = $region60
      $region59: #{birealnet_forward.20} parent=47 // pred_region
        %p519 = scmp.lt.s32.totalorder %s22, 1
        %s520 = scalar_select %p519, %s22, 1
        %s521 = scalar_lea.vmem %s4, %s520
      $region60: #{birealnet_forward.20} parent=47 // pred_fallthru
        _
    $region48: #{birealnet_forward.20} parent=5 // pred_fallthru
      _
  $region6: #{birealnet_forward.20} parent=0 // loop_footer
    %s15 = sadd.s32 1, %s11
  $region7: #{birealnet_forward.20} parent=0 // loop_footer_branch
    %10 = sbr.rel target = $region3
  $region8: #{birealnet_forward.20} parent=0 // loop_exit
    _

</llo_original>
